<compile_context>
chip_gen: v6e
topology: v6e:2x2x1
jax: 0.10.0
libtpu: 0.0.40
codegen_flags: <defaults>
</compile_context>

<pallas_src>
import functools

import jax
import jax.numpy as jnp
from jax.experimental import pallas as pl
from jax.experimental.pallas import tpu as pltpu

EPS = 1e-5


def _double_conv_kernel(x_ref, w1_ref, b1_ref, w2_ref, b2_ref, o_ref,
                        xpad_ref, im1_ref, hpad_ref, im2_ref,
                        *, row_tile, lane_dense_out):
    """Fused conv3x3+BN+ReLU (x2) for one (batch, row-tile) grid step.

    x_ref : (H, W, Cin)          bf16, full image of this batch element (resident)
    w1_ref: (9*Cin, C1)          bf16, BN1 scale folded in, rows ordered (ky*3+kx, cin)
    b1_ref: (1, C1)              f32 folded BN1 bias
    w2_ref: (9*C1, C2)           bf16, BN2 scale folded in
    b2_ref: (1, C2)              f32 folded BN2 bias
    o_ref : (TH, W*C2) or (TH*W, C2)   f32 output row tile
    xpad_ref: (TH+4, W+2, Cin)   bf16 zero-bordered input slab (2-row halo)
    im1_ref : (TH+2, W, 9*Cin)   bf16 stage-1 im2col slab
    hpad_ref: (TH+2, W+2, C1)    bf16 zero-bordered stage-1 activation slab
    im2_ref : (TH, W, 9*C1)      bf16 stage-2 im2col slab
    """
    H, W, Cin = x_ref.shape
    TH = row_tile
    C1 = w1_ref.shape[1]
    C2 = w2_ref.shape[1]
    R1 = TH + 2                                    # stage-1 rows (1-row halo each side)

    rt = pl.program_id(1)
    r0 = pl.multiple_of(rt * TH, TH)               # first output row of this tile

    # ---- padded input slab: x rows [r0-2, r0+TH+2), zeros outside the image ----
    zcol = jnp.zeros((TH + 4, 1, Cin), xpad_ref.dtype)
    xpad_ref[:, 0:1, :] = zcol                     # left / right zero padding columns
    xpad_ref[:, W + 1:W + 2, :] = zcol
    # interior rows [r0, r0+TH) are always in range: one big vectorized copy
    xpad_ref[2:TH + 2, 1:W + 1, :] = x_ref[pl.ds(r0, TH), :, :]
    # 2-row halo above / below, zero-masked at the image boundary
    zrow = jnp.zeros((1, W, Cin), xpad_ref.dtype)
    for dst, off in ((0, -2), (1, -1), (TH + 2, TH), (TH + 3, TH + 1)):
        g = r0 + off
        src = jnp.clip(g, 0, H - 1)
        valid = jnp.logical_and(g >= 0, g < H)
        xpad_ref[dst:dst + 1, 1:W + 1, :] = jnp.where(
            valid, x_ref[pl.ds(src, 1), :, :], zrow)

    # ---- stage 1: im2col slab (K = 9*Cin) -> single MXU matmul -> bias + ReLU ----
    for ky in range(3):
        for kx in range(3):
            t = ky * 3 + kx
            im1_ref[:, :, t * Cin:(t + 1) * Cin] = xpad_ref[ky:ky + R1, kx:kx + W, :]
    acc1 = jnp.dot(im1_ref[...].reshape(R1 * W, 9 * Cin), w1_ref[...],
                   preferred_element_type=jnp.float32)
    h = jnp.maximum(acc1 + b1_ref[...], 0.0).reshape(R1, W, C1)
    # halo rows outside the image are conv2's ZERO padding (not relu(bias)): mask them
    gy = r0 - 1 + jax.lax.broadcasted_iota(jnp.int32, (R1, 1, 1), 0)
    h = jnp.where(jnp.logical_and(gy >= 0, gy < H), h, 0.0)

    # ---- stage-1 activation slab, zero W borders, stays entirely in VMEM ----
    zcol1 = jnp.zeros((R1, 1, C1), hpad_ref.dtype)
    hpad_ref[:, 0:1, :] = zcol1
    hpad_ref[:, W + 1:W + 2, :] = zcol1
    hpad_ref[:, 1:W + 1, :] = h.astype(hpad_ref.dtype)

    # ---- stage 2: im2col slab (K = 9*C1) -> single MXU matmul -> bias + ReLU ----
    for ky in range(3):
        for kx in range(3):
            t = ky * 3 + kx
            im2_ref[:, :, t * C1:(t + 1) * C1] = hpad_ref[ky:ky + TH, kx:kx + W, :]
    acc2 = jnp.dot(im2_ref[...].reshape(TH * W, 9 * C1), w2_ref[...],
                   preferred_element_type=jnp.float32)
    y = jnp.maximum(acc2 + b2_ref[...], 0.0)       # (TH*W, C2) f32

    if lane_dense_out:
        # lane-dense store: last dim W*C2 (multiple of 128 at realistic shapes)
        o_ref[...] = y.reshape(TH, W * C2).astype(o_ref.dtype)
    else:
        o_ref[...] = y.astype(o_ref.dtype)


def _fold_bn(w_oihw, gamma, beta, mean, var):
    """Torch OIHW conv weight + BN -> (9*Cin, Cout) bf16 scaled weight, (1, Cout) f32 bias."""
    cout, cin = w_oihw.shape[0], w_oihw.shape[1]
    scale = (gamma / jnp.sqrt(var + EPS)).astype(jnp.float32)
    w = jnp.transpose(w_oihw.astype(jnp.float32), (2, 3, 1, 0)).reshape(9 * cin, cout)
    w = (w * scale[None, :]).astype(jnp.bfloat16)      # BN scale folded into columns
    bias = (beta - mean * scale).reshape(1, cout).astype(jnp.float32)
    return w, bias


def _pick_row_tile(H, W, cin, c1, c2, budget_bytes=8 << 20):
    """Largest row tile (multiple of 8, divides H) whose working set fits the budget."""
    def est(th):
        return ((th + 4) * (W + 2) * cin * 2        # xpad slab (bf16)
                + (th + 2) * W * 9 * cin * 2        # stage-1 im2col slab
                + (th + 2) * (W + 2) * c1 * 2       # stage-1 activation slab
                + th * W * 9 * c1 * 2               # stage-2 im2col slab
                + (th + 2) * W * c1 * 4             # stage-1 f32 values
                + 3 * th * W * c2 * 4)              # f32 result + double-buffered out block
    cands = [t for t in range(8, H + 1, 8) if H % t == 0]
    fitting = [t for t in cands if est(t) <= budget_bytes]
    if fitting:
        return max(fitting)
    return min(cands) if cands else H


def double_conv_pallas(x_nchw, p, row_tile=None):
    """Forward of DoubleConv. Input/output NCHW (PyTorch convention)."""
    N, Cin, H, W = x_nchw.shape
    C1 = p["w1"].shape[0]
    C2 = p["w2"].shape[0]

    x = jnp.transpose(x_nchw, (0, 2, 3, 1)).astype(jnp.bfloat16)   # NCHW -> NHWC bf16
    w1, b1 = _fold_bn(p["w1"], p["g1"], p["b1"], p["m1"], p["v1"])
    w2, b2 = _fold_bn(p["w2"], p["g2"], p["b2"], p["m2"], p["v2"])

    TH = row_tile if row_tile is not None else _pick_row_tile(H, W, Cin, C1, C2)
    if H % TH != 0 or (TH != H and TH % 8 != 0):
        raise ValueError(f"row_tile {TH} must divide H={H} and be a multiple of 8")

    def call(lane_dense):
        if lane_dense:
            out_shape = jax.ShapeDtypeStruct((N, H, W * C2), jnp.float32)
            out_spec = pl.BlockSpec((None, TH, W * C2), lambda n, rt: (n, rt, 0))
        else:
            out_shape = jax.ShapeDtypeStruct((N, H * W, C2), jnp.float32)
            out_spec = pl.BlockSpec((None, TH * W, C2), lambda n, rt: (n, rt, 0))
        kern = functools.partial(_double_conv_kernel, row_tile=TH,
                                 lane_dense_out=lane_dense)
        return pl.pallas_call(
            kern,
            out_shape=out_shape,
            grid=(N, H // TH),
            in_specs=[
                # Full image per batch element; block index is constant across the
                # row-tile axis, so it is fetched once per batch (per core) and the
                # halo is sliced from it in-kernel (overlapping halo blocks are not
                # expressible with Blocked index maps).
                pl.BlockSpec((None, H, W, Cin), lambda n, rt: (n, 0, 0, 0)),
                pl.BlockSpec((9 * Cin, C1), lambda n, rt: (0, 0)),
                pl.BlockSpec((1, C1), lambda n, rt: (0, 0)),
                pl.BlockSpec((9 * C1, C2), lambda n, rt: (0, 0)),
                pl.BlockSpec((1, C2), lambda n, rt: (0, 0)),
            ],
            out_specs=out_spec,
            scratch_shapes=[
                pltpu.VMEM((TH + 4, W + 2, Cin), jnp.bfloat16),    # padded input slab
                pltpu.VMEM((TH + 2, W, 9 * Cin), jnp.bfloat16),    # stage-1 im2col
                pltpu.VMEM((TH + 2, W + 2, C1), jnp.bfloat16),     # stage-1 activation
                pltpu.VMEM((TH, W, 9 * C1), jnp.bfloat16),         # stage-2 im2col
            ],
            compiler_params=pltpu.CompilerParams(
                # every (n, rt) step is independent -> both axes shardable across
                # TensorCores (v7x megacore).
                dimension_semantics=("parallel", "parallel"),
                # TODO(synk): re-derive per generation (64 MiB physical on v7x);
                # 32 MiB is safe everywhere and well above this kernel's footprint.
                vmem_limit_bytes=32 * 1024 * 1024,
            ),
        )(x, w1, b1, w2, b2)

    try:
        out = jax.block_until_ready(call(lane_dense=True))
    except Exception:
        # Fallback if this Mosaic build cannot lower the minor-dim reshape used
        # for the lane-dense store; same fused kernel, plain (rows, Cout) store.
        out = jax.block_until_ready(call(lane_dense=False))

    out = out.reshape(N, H, W, C2)                 # undo output packing (free in XLA)
    return jnp.transpose(out, (0, 3, 1, 2)).astype(x_nchw.dtype)   # NHWC -> NCHW


def init_double_conv_params(key, in_channels, out_channels):
    ks = jax.random.split(key, 10)
    return {
        "w1": 0.1 * jax.random.normal(ks[0], (out_channels, in_channels, 3, 3), jnp.float32),
        "g1": 1.0 + 0.1 * jax.random.normal(ks[1], (out_channels,), jnp.float32),
        "b1": 0.1 * jax.random.normal(ks[2], (out_channels,), jnp.float32),
        "m1": 0.05 * jax.random.normal(ks[3], (out_channels,), jnp.float32),
        "v1": 1.0 + 0.1 * jax.random.uniform(ks[4], (out_channels,), jnp.float32),
        "w2": 0.1 * jax.random.normal(ks[5], (out_channels, out_channels, 3, 3), jnp.float32),
        "g2": 1.0 + 0.1 * jax.random.normal(ks[6], (out_channels,), jnp.float32),
        "b2": 0.1 * jax.random.normal(ks[7], (out_channels,), jnp.float32),
        "m2": 0.05 * jax.random.normal(ks[8], (out_channels,), jnp.float32),
        "v2": 1.0 + 0.1 * jax.random.uniform(ks[9], (out_channels,), jnp.float32),
    }


def double_conv_reference(x_nchw, p):
    """Pure-JAX f32 reference (lax.conv) for correctness checking."""
    def block(x, w, g, b, m, v):
        y = jax.lax.conv_general_dilated(
            x, w, window_strides=(1, 1), padding=((1, 1), (1, 1)),
            dimension_numbers=("NCHW", "OIHW", "NCHW"))
        s = g / jnp.sqrt(v + EPS)
        y = y * s[None, :, None, None] + (b - m * s)[None, :, None, None]
        return jnp.maximum(y, 0.0)

    y = block(x_nchw, p["w1"], p["g1"], p["b1"], p["m1"], p["v1"])
    y = block(y, p["w2"], p["g2"], p["b2"], p["m2"], p["v2"])
    return y


if __name__ == "__main__":
    key = jax.random.PRNGKey(0)
    kx_, kp_ = jax.random.split(key)

    N, Cin, Cout, H, W = 2, 4, 8, 16, 16
    x = jax.random.normal(kx_, (N, Cin, H, W), jnp.float32)   # NCHW, like PyTorch
    params = init_double_conv_params(kp_, Cin, Cout)

    out = double_conv_pallas(x, params, row_tile=8)           # 2 row tiles -> grid (2, 2)
    out = jax.block_until_ready(out)

    ref = double_conv_reference(x, params)
    assert out.shape == (N, Cout, H, W), out.shape
    max_err = float(jnp.max(jnp.abs(out - ref)))
    # bf16 matmul operands with f32 accumulation -> loosened tolerance vs pure f32.
    assert jnp.allclose(out, ref, atol=5e-2, rtol=5e-2), max_err

    print("KERNEL_OK")
</pallas_src>

<mosaic_0001>
module attributes {stable_mosaic.version = 11 : i64} {
  func.func @_double_conv_kernel(%arg0: i32, %arg1: i32, %arg2: memref<1x16x16x4xbf16, #tpu.memory_space<vmem>>, %arg3: memref<36x8xbf16, #tpu.memory_space<vmem>>, %arg4: memref<1x8xf32, #tpu.memory_space<vmem>>, %arg5: memref<72x8xbf16, #tpu.memory_space<vmem>>, %arg6: memref<1x8xf32, #tpu.memory_space<vmem>>, %arg7: memref<1x8x128xf32, #tpu.memory_space<vmem>>, %arg8: memref<12x18x4xbf16, #tpu.memory_space<vmem>>, %arg9: memref<10x16x36xbf16, #tpu.memory_space<vmem>>, %arg10: memref<10x18x8xbf16, #tpu.memory_space<vmem>>, %arg11: memref<8x16x72xbf16, #tpu.memory_space<vmem>>) attributes {dimension_semantics = [#tpu.dimension_semantics<parallel>, #tpu.dimension_semantics<parallel>], iteration_bounds = array<i64: 2, 2>, scalar_prefetch = 0 : i64, scratch_operands = 4 : i64, tpu.core_type = #tpu.core_type<tc>, window_params = [{transform_indices = @transform_0, window_bounds = array<i64: 1, 16, 16, 4>}, {pipeline_mode = #tpu.pipeline_mode<synchronous>, transform_indices = @transform_1, window_bounds = array<i64: 36, 8>}, {pipeline_mode = #tpu.pipeline_mode<synchronous>, transform_indices = @transform_2, window_bounds = array<i64: 1, 8>}, {pipeline_mode = #tpu.pipeline_mode<synchronous>, transform_indices = @transform_3, window_bounds = array<i64: 72, 8>}, {pipeline_mode = #tpu.pipeline_mode<synchronous>, transform_indices = @transform_4, window_bounds = array<i64: 1, 8>}, {transform_indices = @transform_5, window_bounds = array<i64: 1, 8, 128>}]} {
    %c8_i32 = arith.constant 8 : i32
    %0 = arith.muli %arg1, %c8_i32 : i32
    %1 = tpu.assume_multiple %0, 8 : i32
    %cst = arith.constant 0.000000e+00 : bf16
    %2 = vector.broadcast %cst : bf16 to vector<12x1x4xbf16>
    %c0 = arith.constant 0 : index
    %c0_0 = arith.constant 0 : index
    %c0_1 = arith.constant 0 : index
    %3 = vector.load %arg8[%c0, %c0_0, %c0_1] : memref<12x18x4xbf16, #tpu.memory_space<vmem>>, vector<12x1x4xbf16>
    tpu.vector_store %arg8[%c0, %c0_0, %c0_1], %2 {strides = array<i32>} : memref<12x18x4xbf16, #tpu.memory_space<vmem>>, vector<12x1x4xbf16>,
    %c0_2 = arith.constant 0 : index
    %c17 = arith.constant 17 : index
    %c0_3 = arith.constant 0 : index
    %4 = vector.load %arg8[%c0_2, %c17, %c0_3] : memref<12x18x4xbf16, #tpu.memory_space<vmem>>, vector<12x1x4xbf16>
    tpu.vector_store %arg8[%c0_2, %c17, %c0_3], %2 {strides = array<i32>} : memref<12x18x4xbf16, #tpu.memory_space<vmem>>, vector<12x1x4xbf16>,
    %c0_4 = arith.constant 0 : index
    %5 = arith.index_cast %1 : i32 to index
    %c0_5 = arith.constant 0 : index
    %c0_6 = arith.constant 0 : index
    %6 = vector.load %arg2[%c0_4, %5, %c0_5, %c0_6] : memref<1x16x16x4xbf16, #tpu.memory_space<vmem>>, vector<1x8x16x4xbf16>
    %7 = vector.shape_cast %6 : vector<1x8x16x4xbf16> to vector<8x16x4xbf16>
    %c2 = arith.constant 2 : index
    %c1 = arith.constant 1 : index
    %c0_7 = arith.constant 0 : index
    %8 = vector.load %arg8[%c2, %c1, %c0_7] : memref<12x18x4xbf16, #tpu.memory_space<vmem>>, vector<8x16x4xbf16>
    tpu.vector_store %arg8[%c2, %c1, %c0_7], %7 {strides = array<i32>} : memref<12x18x4xbf16, #tpu.memory_space<vmem>>, vector<8x16x4xbf16>,
    %cst_8 = arith.constant 0.000000e+00 : bf16
    %9 = vector.broadcast %cst_8 : bf16 to vector<1x16x4xbf16>
    %c-2_i32 = arith.constant -2 : i32
    %10 = arith.addi %1, %c-2_i32 : i32
    %c0_i32 = arith.constant 0 : i32
    %c15_i32 = arith.constant 15 : i32
    %11 = arith.maxsi %c0_i32, %10 : i32
    %12 = arith.minsi %c15_i32, %11 : i32
    %c0_i32_9 = arith.constant 0 : i32
    %13 = arith.cmpi sge, %10, %c0_i32_9 : i32
    %c16_i32 = arith.constant 16 : i32
    %14 = arith.cmpi slt, %10, %c16_i32 : i32
    %15 = arith.andi %13, %14 : i1
    %c0_10 = arith.constant 0 : index
    %16 = arith.index_cast %12 : i32 to index
    %c0_11 = arith.constant 0 : index
    %c0_12 = arith.constant 0 : index
    %17 = vector.load %arg2[%c0_10, %16, %c0_11, %c0_12] : memref<1x16x16x4xbf16, #tpu.memory_space<vmem>>, vector<1x1x16x4xbf16>
    %18 = vector.shape_cast %17 : vector<1x1x16x4xbf16> to vector<1x16x4xbf16>
    %19 = arith.select %15, %18, %9 : vector<1x16x4xbf16>
    %c0_13 = arith.constant 0 : index
    %c1_14 = arith.constant 1 : index
    %c0_15 = arith.constant 0 : index
    %20 = vector.load %arg8[%c0_13, %c1_14, %c0_15] : memref<12x18x4xbf16, #tpu.memory_space<vmem>>, vector<1x16x4xbf16>
    tpu.vector_store %arg8[%c0_13, %c1_14, %c0_15], %19 {strides = array<i32>} : memref<12x18x4xbf16, #tpu.memory_space<vmem>>, vector<1x16x4xbf16>,
    %c-1_i32 = arith.constant -1 : i32
    %21 = arith.addi %1, %c-1_i32 : i32
    %c0_i32_16 = arith.constant 0 : i32
    %c15_i32_17 = arith.constant 15 : i32
    %22 = arith.maxsi %c0_i32_16, %21 : i32
    %23 = arith.minsi %c15_i32_17, %22 : i32
    %c0_i32_18 = arith.constant 0 : i32
    %24 = arith.cmpi sge, %21, %c0_i32_18 : i32
    %c16_i32_19 = arith.constant 16 : i32
    %25 = arith.cmpi slt, %21, %c16_i32_19 : i32
    %26 = arith.andi %24, %25 : i1
    %c0_20 = arith.constant 0 : index
    %27 = arith.index_cast %23 : i32 to index
    %c0_21 = arith.constant 0 : index
    %c0_22 = arith.constant 0 : index
    %28 = vector.load %arg2[%c0_20, %27, %c0_21, %c0_22] : memref<1x16x16x4xbf16, #tpu.memory_space<vmem>>, vector<1x1x16x4xbf16>
    %29 = vector.shape_cast %28 : vector<1x1x16x4xbf16> to vector<1x16x4xbf16>
    %30 = arith.select %26, %29, %9 : vector<1x16x4xbf16>
    %c1_23 = arith.constant 1 : index
    %c1_24 = arith.constant 1 : index
    %c0_25 = arith.constant 0 : index
    %31 = vector.load %arg8[%c1_23, %c1_24, %c0_25] : memref<12x18x4xbf16, #tpu.memory_space<vmem>>, vector<1x16x4xbf16>
    tpu.vector_store %arg8[%c1_23, %c1_24, %c0_25], %30 {strides = array<i32>} : memref<12x18x4xbf16, #tpu.memory_space<vmem>>, vector<1x16x4xbf16>,
    %c8_i32_26 = arith.constant 8 : i32
    %32 = arith.addi %1, %c8_i32_26 : i32
    %c0_i32_27 = arith.constant 0 : i32
    %c15_i32_28 = arith.constant 15 : i32
    %33 = arith.maxsi %c0_i32_27, %32 : i32
    %34 = arith.minsi %c15_i32_28, %33 : i32
    %c0_i32_29 = arith.constant 0 : i32
    %35 = arith.cmpi sge, %32, %c0_i32_29 : i32
    %c16_i32_30 = arith.constant 16 : i32
    %36 = arith.cmpi slt, %32, %c16_i32_30 : i32
    %37 = arith.andi %35, %36 : i1
    %c0_31 = arith.constant 0 : index
    %38 = arith.index_cast %34 : i32 to index
    %c0_32 = arith.constant 0 : index
    %c0_33 = arith.constant 0 : index
    %39 = vector.load %arg2[%c0_31, %38, %c0_32, %c0_33] : memref<1x16x16x4xbf16, #tpu.memory_space<vmem>>, vector<1x1x16x4xbf16>
    %40 = vector.shape_cast %39 : vector<1x1x16x4xbf16> to vector<1x16x4xbf16>
    %41 = arith.select %37, %40, %9 : vector<1x16x4xbf16>
    %c10 = arith.constant 10 : index
    %c1_34 = arith.constant 1 : index
    %c0_35 = arith.constant 0 : index
    %42 = vector.load %arg8[%c10, %c1_34, %c0_35] : memref<12x18x4xbf16, #tpu.memory_space<vmem>>, vector<1x16x4xbf16>
    tpu.vector_store %arg8[%c10, %c1_34, %c0_35], %41 {strides = array<i32>} : memref<12x18x4xbf16, #tpu.memory_space<vmem>>, vector<1x16x4xbf16>,
    %c9_i32 = arith.constant 9 : i32
    %43 = arith.addi %1, %c9_i32 : i32
    %c0_i32_36 = arith.constant 0 : i32
    %c15_i32_37 = arith.constant 15 : i32
    %44 = arith.maxsi %c0_i32_36, %43 : i32
    %45 = arith.minsi %c15_i32_37, %44 : i32
    %c0_i32_38 = arith.constant 0 : i32
    %46 = arith.cmpi sge, %43, %c0_i32_38 : i32
    %c16_i32_39 = arith.constant 16 : i32
    %47 = arith.cmpi slt, %43, %c16_i32_39 : i32
    %48 = arith.andi %46, %47 : i1
    %c0_40 = arith.constant 0 : index
    %49 = arith.index_cast %45 : i32 to index
    %c0_41 = arith.constant 0 : index
    %c0_42 = arith.constant 0 : index
    %50 = vector.load %arg2[%c0_40, %49, %c0_41, %c0_42] : memref<1x16x16x4xbf16, #tpu.memory_space<vmem>>, vector<1x1x16x4xbf16>
    %51 = vector.shape_cast %50 : vector<1x1x16x4xbf16> to vector<1x16x4xbf16>
    %52 = arith.select %48, %51, %9 : vector<1x16x4xbf16>
    %c11 = arith.constant 11 : index
    %c1_43 = arith.constant 1 : index
    %c0_44 = arith.constant 0 : index
    %53 = vector.load %arg8[%c11, %c1_43, %c0_44] : memref<12x18x4xbf16, #tpu.memory_space<vmem>>, vector<1x16x4xbf16>
    tpu.vector_store %arg8[%c11, %c1_43, %c0_44], %52 {strides = array<i32>} : memref<12x18x4xbf16, #tpu.memory_space<vmem>>, vector<1x16x4xbf16>,
    %c0_45 = arith.constant 0 : index
    %c0_46 = arith.constant 0 : index
    %c0_47 = arith.constant 0 : index
    %54 = vector.load %arg8[%c0_45, %c0_46, %c0_47] : memref<12x18x4xbf16, #tpu.memory_space<vmem>>, vector<10x16x4xbf16>
    %c0_48 = arith.constant 0 : index
    %c0_49 = arith.constant 0 : index
    %c0_50 = arith.constant 0 : index
    %55 = vector.load %arg9[%c0_48, %c0_49, %c0_50] : memref<10x16x36xbf16, #tpu.memory_space<vmem>>, vector<10x16x4xbf16>
    tpu.vector_store %arg9[%c0_48, %c0_49, %c0_50], %54 {strides = array<i32>} : memref<10x16x36xbf16, #tpu.memory_space<vmem>>, vector<10x16x4xbf16>,
    %c0_51 = arith.constant 0 : index
    %c1_52 = arith.constant 1 : index
    %c0_53 = arith.constant 0 : index
    %56 = vector.load %arg8[%c0_51, %c1_52, %c0_53] : memref<12x18x4xbf16, #tpu.memory_space<vmem>>, vector<10x16x4xbf16>
    %c0_54 = arith.constant 0 : index
    %c0_55 = arith.constant 0 : index
    %c4 = arith.constant 4 : index
    %57 = vector.load %arg9[%c0_54, %c0_55, %c4] : memref<10x16x36xbf16, #tpu.memory_space<vmem>>, vector<10x16x4xbf16>
    tpu.vector_store %arg9[%c0_54, %c0_55, %c4], %56 {strides = array<i32>} : memref<10x16x36xbf16, #tpu.memory_space<vmem>>, vector<10x16x4xbf16>,
    %c0_56 = arith.constant 0 : index
    %c2_57 = arith.constant 2 : index
    %c0_58 = arith.constant 0 : index
    %58 = vector.load %arg8[%c0_56, %c2_57, %c0_58] : memref<12x18x4xbf16, #tpu.memory_space<vmem>>, vector<10x16x4xbf16>
    %c0_59 = arith.constant 0 : index
    %c0_60 = arith.constant 0 : index
    %c8 = arith.constant 8 : index
    %59 = vector.load %arg9[%c0_59, %c0_60, %c8] : memref<10x16x36xbf16, #tpu.memory_space<vmem>>, vector<10x16x4xbf16>
    tpu.vector_store %arg9[%c0_59, %c0_60, %c8], %58 {strides = array<i32>} : memref<10x16x36xbf16, #tpu.memory_space<vmem>>, vector<10x16x4xbf16>,
    %c1_61 = arith.constant 1 : index
    %c0_62 = arith.constant 0 : index
    %c0_63 = arith.constant 0 : index
    %60 = vector.load %arg8[%c1_61, %c0_62, %c0_63] : memref<12x18x4xbf16, #tpu.memory_space<vmem>>, vector<10x16x4xbf16>
    %c0_64 = arith.constant 0 : index
    %c0_65 = arith.constant 0 : index
    %c12 = arith.constant 12 : index
    %61 = vector.load %arg9[%c0_64, %c0_65, %c12] : memref<10x16x36xbf16, #tpu.memory_space<vmem>>, vector<10x16x4xbf16>
    tpu.vector_store %arg9[%c0_64, %c0_65, %c12], %60 {strides = array<i32>} : memref<10x16x36xbf16, #tpu.memory_space<vmem>>, vector<10x16x4xbf16>,
    %c1_66 = arith.constant 1 : index
    %c1_67 = arith.constant 1 : index
    %c0_68 = arith.constant 0 : index
    %62 = vector.load %arg8[%c1_66, %c1_67, %c0_68] : memref<12x18x4xbf16, #tpu.memory_space<vmem>>, vector<10x16x4xbf16>
    %c0_69 = arith.constant 0 : index
    %c0_70 = arith.constant 0 : index
    %c16 = arith.constant 16 : index
    %63 = vector.load %arg9[%c0_69, %c0_70, %c16] : memref<10x16x36xbf16, #tpu.memory_space<vmem>>, vector<10x16x4xbf16>
    tpu.vector_store %arg9[%c0_69, %c0_70, %c16], %62 {strides = array<i32>} : memref<10x16x36xbf16, #tpu.memory_space<vmem>>, vector<10x16x4xbf16>,
    %c1_71 = arith.constant 1 : index
    %c2_72 = arith.constant 2 : index
    %c0_73 = arith.constant 0 : index
    %64 = vector.load %arg8[%c1_71, %c2_72, %c0_73] : memref<12x18x4xbf16, #tpu.memory_space<vmem>>, vector<10x16x4xbf16>
    %c0_74 = arith.constant 0 : index
    %c0_75 = arith.constant 0 : index
    %c20 = arith.constant 20 : index
    %65 = vector.load %arg9[%c0_74, %c0_75, %c20] : memref<10x16x36xbf16, #tpu.memory_space<vmem>>, vector<10x16x4xbf16>
    tpu.vector_store %arg9[%c0_74, %c0_75, %c20], %64 {strides = array<i32>} : memref<10x16x36xbf16, #tpu.memory_space<vmem>>, vector<10x16x4xbf16>,
    %c2_76 = arith.constant 2 : index
    %c0_77 = arith.constant 0 : index
    %c0_78 = arith.constant 0 : index
    %66 = vector.load %arg8[%c2_76, %c0_77, %c0_78] : memref<12x18x4xbf16, #tpu.memory_space<vmem>>, vector<10x16x4xbf16>
    %c0_79 = arith.constant 0 : index
    %c0_80 = arith.constant 0 : index
    %c24 = arith.constant 24 : index
    %67 = vector.load %arg9[%c0_79, %c0_80, %c24] : memref<10x16x36xbf16, #tpu.memory_space<vmem>>, vector<10x16x4xbf16>
    tpu.vector_store %arg9[%c0_79, %c0_80, %c24], %66 {strides = array<i32>} : memref<10x16x36xbf16, #tpu.memory_space<vmem>>, vector<10x16x4xbf16>,
    %c2_81 = arith.constant 2 : index
    %c1_82 = arith.constant 1 : index
    %c0_83 = arith.constant 0 : index
    %68 = vector.load %arg8[%c2_81, %c1_82, %c0_83] : memref<12x18x4xbf16, #tpu.memory_space<vmem>>, vector<10x16x4xbf16>
    %c0_84 = arith.constant 0 : index
    %c0_85 = arith.constant 0 : index
    %c28 = arith.constant 28 : index
    %69 = vector.load %arg9[%c0_84, %c0_85, %c28] : memref<10x16x36xbf16, #tpu.memory_space<vmem>>, vector<10x16x4xbf16>
    tpu.vector_store %arg9[%c0_84, %c0_85, %c28], %68 {strides = array<i32>} : memref<10x16x36xbf16, #tpu.memory_space<vmem>>, vector<10x16x4xbf16>,
    %c2_86 = arith.constant 2 : index
    %c2_87 = arith.constant 2 : index
    %c0_88 = arith.constant 0 : index
    %70 = vector.load %arg8[%c2_86, %c2_87, %c0_88] : memref<12x18x4xbf16, #tpu.memory_space<vmem>>, vector<10x16x4xbf16>
    %c0_89 = arith.constant 0 : index
    %c0_90 = arith.constant 0 : index
    %c32 = arith.constant 32 : index
    %71 = vector.load %arg9[%c0_89, %c0_90, %c32] : memref<10x16x36xbf16, #tpu.memory_space<vmem>>, vector<10x16x4xbf16>
    tpu.vector_store %arg9[%c0_89, %c0_90, %c32], %70 {strides = array<i32>} : memref<10x16x36xbf16, #tpu.memory_space<vmem>>, vector<10x16x4xbf16>,
    %c0_91 = arith.constant 0 : index
    %c0_92 = arith.constant 0 : index
    %c0_93 = arith.constant 0 : index
    %72 = vector.load %arg9[%c0_91, %c0_92, %c0_93] : memref<10x16x36xbf16, #tpu.memory_space<vmem>>, vector<10x16x36xbf16>
    %73 = vector.shape_cast %72 : vector<10x16x36xbf16> to vector<160x36xbf16>
    %c0_94 = arith.constant 0 : index
    %c0_95 = arith.constant 0 : index
    %74 = vector.load %arg3[%c0_94, %c0_95] : memref<36x8xbf16, #tpu.memory_space<vmem>>, vector<36x8xbf16>
    %cst_96 = arith.constant dense<0.000000e+00> : vector<160x8xf32>
    %75 = tpu.matmul %73, %74, %cst_96 {dimension_numbers = #tpu.dot_dimension_numbers<[1], [0], [0], [1], [0, 0, 1, 1], [], []>} : vector<160x36xbf16>, vector<36x8xbf16>, vector<160x8xf32> -> vector<160x8xf32>
    %c0_97 = arith.constant 0 : index
    %c0_98 = arith.constant 0 : index
    %76 = vector.load %arg4[%c0_97, %c0_98] : memref<1x8xf32, #tpu.memory_space<vmem>>, vector<1x8xf32>
    %77 = vector.broadcast %76 : vector<1x8xf32> to vector<160x8xf32>
    %78 = arith.addf %75, %77 : vector<160x8xf32>
    %cst_99 = arith.constant 0.000000e+00 : f32
    %79 = vector.broadcast %cst_99 : f32 to vector<160x8xf32>
    %80 = arith.maximumf %78, %79 : vector<160x8xf32>
    %81 = vector.shape_cast %80 : vector<160x8xf32> to vector<10x16x8xf32>
    %c1_i32 = arith.constant 1 : i32
    %82 = arith.subi %1, %c1_i32 : i32
    %83 = tpu.iota {dimensions = array<i32: 0>} : vector<10x1x1xi32>
    %84 = vector.broadcast %82 : i32 to vector<10x1x1xi32>
    %85 = arith.addi %84, %83 : vector<10x1x1xi32>
    %c0_i32_100 = arith.constant 0 : i32
    %86 = vector.broadcast %c0_i32_100 : i32 to vector<10x1x1xi32>
    %87 = arith.cmpi sge, %85, %86 : vector<10x1x1xi32>
    %c16_i32_101 = arith.constant 16 : i32
    %88 = vector.broadcast %c16_i32_101 : i32 to vector<10x1x1xi32>
    %89 = arith.cmpi slt, %85, %88 : vector<10x1x1xi32>
    %90 = arith.andi %87, %89 : vector<10x1x1xi1>
    %cst_102 = arith.constant 0.000000e+00 : f32
    %91 = vector.shape_cast %90 : vector<10x1x1xi1> to vector<10x1x1xi1>
    %92 = vector.broadcast %91 : vector<10x1x1xi1> to vector<10x16x8xi1>
    %93 = vector.broadcast %cst_102 : f32 to vector<10x16x8xf32>
    %94 = arith.select %92, %81, %93 : vector<10x16x8xi1>, vector<10x16x8xf32>
    %cst_103 = arith.constant 0.000000e+00 : bf16
    %95 = vector.broadcast %cst_103 : bf16 to vector<10x1x8xbf16>
    %c0_104 = arith.constant 0 : index
    %c0_105 = arith.constant 0 : index
    %c0_106 = arith.constant 0 : index
    %96 = vector.load %arg10[%c0_104, %c0_105, %c0_106] : memref<10x18x8xbf16, #tpu.memory_space<vmem>>, vector<10x1x8xbf16>
    tpu.vector_store %arg10[%c0_104, %c0_105, %c0_106], %95 {strides = array<i32>} : memref<10x18x8xbf16, #tpu.memory_space<vmem>>, vector<10x1x8xbf16>,
    %c0_107 = arith.constant 0 : index
    %c17_108 = arith.constant 17 : index
    %c0_109 = arith.constant 0 : index
    %97 = vector.load %arg10[%c0_107, %c17_108, %c0_109] : memref<10x18x8xbf16, #tpu.memory_space<vmem>>, vector<10x1x8xbf16>
    tpu.vector_store %arg10[%c0_107, %c17_108, %c0_109], %95 {strides = array<i32>} : memref<10x18x8xbf16, #tpu.memory_space<vmem>>, vector<10x1x8xbf16>,
    %98 = arith.truncf %94 : vector<10x16x8xf32> to vector<10x16x8xbf16>
    %c0_110 = arith.constant 0 : index
    %c1_111 = arith.constant 1 : index
    %c0_112 = arith.constant 0 : index
    %99 = vector.load %arg10[%c0_110, %c1_111, %c0_112] : memref<10x18x8xbf16, #tpu.memory_space<vmem>>, vector<10x16x8xbf16>
    tpu.vector_store %arg10[%c0_110, %c1_111, %c0_112], %98 {strides = array<i32>} : memref<10x18x8xbf16, #tpu.memory_space<vmem>>, vector<10x16x8xbf16>,
    %c0_113 = arith.constant 0 : index
    %c0_114 = arith.constant 0 : index
    %c0_115 = arith.constant 0 : index
    %100 = vector.load %arg10[%c0_113, %c0_114, %c0_115] : memref<10x18x8xbf16, #tpu.memory_space<vmem>>, vector<8x16x8xbf16>
    %c0_116 = arith.constant 0 : index
    %c0_117 = arith.constant 0 : index
    %c0_118 = arith.constant 0 : index
    %101 = vector.load %arg11[%c0_116, %c0_117, %c0_118] : memref<8x16x72xbf16, #tpu.memory_space<vmem>>, vector<8x16x8xbf16>
    tpu.vector_store %arg11[%c0_116, %c0_117, %c0_118], %100 {strides = array<i32>} : memref<8x16x72xbf16, #tpu.memory_space<vmem>>, vector<8x16x8xbf16>,
    %c0_119 = arith.constant 0 : index
    %c1_120 = arith.constant 1 : index
    %c0_121 = arith.constant 0 : index
    %102 = vector.load %arg10[%c0_119, %c1_120, %c0_121] : memref<10x18x8xbf16, #tpu.memory_space<vmem>>, vector<8x16x8xbf16>
    %c0_122 = arith.constant 0 : index
    %c0_123 = arith.constant 0 : index
    %c8_124 = arith.constant 8 : index
    %103 = vector.load %arg11[%c0_122, %c0_123, %c8_124] : memref<8x16x72xbf16, #tpu.memory_space<vmem>>, vector<8x16x8xbf16>
    tpu.vector_store %arg11[%c0_122, %c0_123, %c8_124], %102 {strides = array<i32>} : memref<8x16x72xbf16, #tpu.memory_space<vmem>>, vector<8x16x8xbf16>,
    %c0_125 = arith.constant 0 : index
    %c2_126 = arith.constant 2 : index
    %c0_127 = arith.constant 0 : index
    %104 = vector.load %arg10[%c0_125, %c2_126, %c0_127] : memref<10x18x8xbf16, #tpu.memory_space<vmem>>, vector<8x16x8xbf16>
    %c0_128 = arith.constant 0 : index
    %c0_129 = arith.constant 0 : index
    %c16_130 = arith.constant 16 : index
    %105 = vector.load %arg11[%c0_128, %c0_129, %c16_130] : memref<8x16x72xbf16, #tpu.memory_space<vmem>>, vector<8x16x8xbf16>
    tpu.vector_store %arg11[%c0_128, %c0_129, %c16_130], %104 {strides = array<i32>} : memref<8x16x72xbf16, #tpu.memory_space<vmem>>, vector<8x16x8xbf16>,
    %c1_131 = arith.constant 1 : index
    %c0_132 = arith.constant 0 : index
    %c0_133 = arith.constant 0 : index
    %106 = vector.load %arg10[%c1_131, %c0_132, %c0_133] : memref<10x18x8xbf16, #tpu.memory_space<vmem>>, vector<8x16x8xbf16>
    %c0_134 = arith.constant 0 : index
    %c0_135 = arith.constant 0 : index
    %c24_136 = arith.constant 24 : index
    %107 = vector.load %arg11[%c0_134, %c0_135, %c24_136] : memref<8x16x72xbf16, #tpu.memory_space<vmem>>, vector<8x16x8xbf16>
    tpu.vector_store %arg11[%c0_134, %c0_135, %c24_136], %106 {strides = array<i32>} : memref<8x16x72xbf16, #tpu.memory_space<vmem>>, vector<8x16x8xbf16>,
    %c1_137 = arith.constant 1 : index
    %c1_138 = arith.constant 1 : index
    %c0_139 = arith.constant 0 : index
    %108 = vector.load %arg10[%c1_137, %c1_138, %c0_139] : memref<10x18x8xbf16, #tpu.memory_space<vmem>>, vector<8x16x8xbf16>
    %c0_140 = arith.constant 0 : index
    %c0_141 = arith.constant 0 : index
    %c32_142 = arith.constant 32 : index
    %109 = vector.load %arg11[%c0_140, %c0_141, %c32_142] : memref<8x16x72xbf16, #tpu.memory_space<vmem>>, vector<8x16x8xbf16>
    tpu.vector_store %arg11[%c0_140, %c0_141, %c32_142], %108 {strides = array<i32>} : memref<8x16x72xbf16, #tpu.memory_space<vmem>>, vector<8x16x8xbf16>,
    %c1_143 = arith.constant 1 : index
    %c2_144 = arith.constant 2 : index
    %c0_145 = arith.constant 0 : index
    %110 = vector.load %arg10[%c1_143, %c2_144, %c0_145] : memref<10x18x8xbf16, #tpu.memory_space<vmem>>, vector<8x16x8xbf16>
    %c0_146 = arith.constant 0 : index
    %c0_147 = arith.constant 0 : index
    %c40 = arith.constant 40 : index
    %111 = vector.load %arg11[%c0_146, %c0_147, %c40] : memref<8x16x72xbf16, #tpu.memory_space<vmem>>, vector<8x16x8xbf16>
    tpu.vector_store %arg11[%c0_146, %c0_147, %c40], %110 {strides = array<i32>} : memref<8x16x72xbf16, #tpu.memory_space<vmem>>, vector<8x16x8xbf16>,
    %c2_148 = arith.constant 2 : index
    %c0_149 = arith.constant 0 : index
    %c0_150 = arith.constant 0 : index
    %112 = vector.load %arg10[%c2_148, %c0_149, %c0_150] : memref<10x18x8xbf16, #tpu.memory_space<vmem>>, vector<8x16x8xbf16>
    %c0_151 = arith.constant 0 : index
    %c0_152 = arith.constant 0 : index
    %c48 = arith.constant 48 : index
    %113 = vector.load %arg11[%c0_151, %c0_152, %c48] : memref<8x16x72xbf16, #tpu.memory_space<vmem>>, vector<8x16x8xbf16>
    tpu.vector_store %arg11[%c0_151, %c0_152, %c48], %112 {strides = array<i32>} : memref<8x16x72xbf16, #tpu.memory_space<vmem>>, vector<8x16x8xbf16>,
    %c2_153 = arith.constant 2 : index
    %c1_154 = arith.constant 1 : index
    %c0_155 = arith.constant 0 : index
    %114 = vector.load %arg10[%c2_153, %c1_154, %c0_155] : memref<10x18x8xbf16, #tpu.memory_space<vmem>>, vector<8x16x8xbf16>
    %c0_156 = arith.constant 0 : index
    %c0_157 = arith.constant 0 : index
    %c56 = arith.constant 56 : index
    %115 = vector.load %arg11[%c0_156, %c0_157, %c56] : memref<8x16x72xbf16, #tpu.memory_space<vmem>>, vector<8x16x8xbf16>
    tpu.vector_store %arg11[%c0_156, %c0_157, %c56], %114 {strides = array<i32>} : memref<8x16x72xbf16, #tpu.memory_space<vmem>>, vector<8x16x8xbf16>,
    %c2_158 = arith.constant 2 : index
    %c2_159 = arith.constant 2 : index
    %c0_160 = arith.constant 0 : index
    %116 = vector.load %arg10[%c2_158, %c2_159, %c0_160] : memref<10x18x8xbf16, #tpu.memory_space<vmem>>, vector<8x16x8xbf16>
    %c0_161 = arith.constant 0 : index
    %c0_162 = arith.constant 0 : index
    %c64 = arith.constant 64 : index
    %117 = vector.load %arg11[%c0_161, %c0_162, %c64] : memref<8x16x72xbf16, #tpu.memory_space<vmem>>, vector<8x16x8xbf16>
    tpu.vector_store %arg11[%c0_161, %c0_162, %c64], %116 {strides = array<i32>} : memref<8x16x72xbf16, #tpu.memory_space<vmem>>, vector<8x16x8xbf16>,
    %c0_163 = arith.constant 0 : index
    %c0_164 = arith.constant 0 : index
    %c0_165 = arith.constant 0 : index
    %118 = vector.load %arg11[%c0_163, %c0_164, %c0_165] : memref<8x16x72xbf16, #tpu.memory_space<vmem>>, vector<8x16x72xbf16>
    %119 = vector.shape_cast %118 : vector<8x16x72xbf16> to vector<128x72xbf16>
    %c0_166 = arith.constant 0 : index
    %c0_167 = arith.constant 0 : index
    %120 = vector.load %arg5[%c0_166, %c0_167] : memref<72x8xbf16, #tpu.memory_space<vmem>>, vector<72x8xbf16>
    %cst_168 = arith.constant dense<0.000000e+00> : vector<128x8xf32>
    %121 = tpu.matmul %119, %120, %cst_168 {dimension_numbers = #tpu.dot_dimension_numbers<[1], [0], [0], [1], [0, 0, 1, 1], [], []>} : vector<128x72xbf16>, vector<72x8xbf16>, vector<128x8xf32> -> vector<128x8xf32>
    %c0_169 = arith.constant 0 : index
    %c0_170 = arith.constant 0 : index
    %122 = vector.load %arg6[%c0_169, %c0_170] : memref<1x8xf32, #tpu.memory_space<vmem>>, vector<1x8xf32>
    %123 = vector.broadcast %122 : vector<1x8xf32> to vector<128x8xf32>
    %124 = arith.addf %121, %123 : vector<128x8xf32>
    %cst_171 = arith.constant 0.000000e+00 : f32
    %125 = vector.broadcast %cst_171 : f32 to vector<128x8xf32>
    %126 = arith.maximumf %124, %125 : vector<128x8xf32>
    %127 = vector.shape_cast %126 : vector<128x8xf32> to vector<8x128xf32>
    %c0_172 = arith.constant 0 : index
    %c0_173 = arith.constant 0 : index
    %c0_174 = arith.constant 0 : index
    %128 = vector.load %arg7[%c0_172, %c0_173, %c0_174] : memref<1x8x128xf32, #tpu.memory_space<vmem>>, vector<1x8x128xf32>
    %129 = vector.shape_cast %128 : vector<1x8x128xf32> to vector<8x128xf32>
    %130 = vector.shape_cast %127 : vector<8x128xf32> to vector<1x8x128xf32>
    tpu.vector_store %arg7[%c0_172, %c0_173, %c0_174], %130 {strides = array<i32>} : memref<1x8x128xf32, #tpu.memory_space<vmem>>, vector<1x8x128xf32>,
    return
  }
  func.func @transform_0(%arg0: i32, %arg1: i32) -> (i32, i32, i32, i32) {
    %c0_i32 = arith.constant 0 : i32
    %c0_i32_0 = arith.constant 0 : i32
    %c0_i32_1 = arith.constant 0 : i32
    %c0_i32_2 = arith.constant 0 : i32
    return %arg0, %c0_i32, %c0_i32_0, %c0_i32_1 : i32, i32, i32, i32
  }
  func.func @transform_1(%arg0: i32, %arg1: i32) -> (i32, i32) {
    %c0_i32 = arith.constant 0 : i32
    %c0_i32_0 = arith.constant 0 : i32
    %c0_i32_1 = arith.constant 0 : i32
    return %c0_i32, %c0_i32_0 : i32, i32
  }
  func.func @transform_2(%arg0: i32, %arg1: i32) -> (i32, i32) {
    %c0_i32 = arith.constant 0 : i32
    %c0_i32_0 = arith.constant 0 : i32
    %c0_i32_1 = arith.constant 0 : i32
    return %c0_i32, %c0_i32_0 : i32, i32
  }
  func.func @transform_3(%arg0: i32, %arg1: i32) -> (i32, i32) {
    %c0_i32 = arith.constant 0 : i32
    %c0_i32_0 = arith.constant 0 : i32
    %c0_i32_1 = arith.constant 0 : i32
    return %c0_i32, %c0_i32_0 : i32, i32
  }
  func.func @transform_4(%arg0: i32, %arg1: i32) -> (i32, i32) {
    %c0_i32 = arith.constant 0 : i32
    %c0_i32_0 = arith.constant 0 : i32
    %c0_i32_1 = arith.constant 0 : i32
    return %c0_i32, %c0_i32_0 : i32, i32
  }
  func.func @transform_5(%arg0: i32, %arg1: i32) -> (i32, i32, i32) {
    %c0_i32 = arith.constant 0 : i32
    %c0_i32_0 = arith.constant 0 : i32
    return %arg0, %arg1, %c0_i32 : i32, i32, i32
  }
}

module attributes {stable_mosaic.version = 11 : i64} {
  func.func @_double_conv_kernel(%arg0: i32, %arg1: i32, %arg2: memref<1x16x16x4xbf16, #tpu.memory_space<vmem>>, %arg3: memref<36x8xbf16, #tpu.memory_space<vmem>>, %arg4: memref<1x8xf32, #tpu.memory_space<vmem>>, %arg5: memref<72x8xbf16, #tpu.memory_space<vmem>>, %arg6: memref<1x8xf32, #tpu.memory_space<vmem>>, %arg7: memref<1x128x8xf32, #tpu.memory_space<vmem>>, %arg8: memref<12x18x4xbf16, #tpu.memory_space<vmem>>, %arg9: memref<10x16x36xbf16, #tpu.memory_space<vmem>>, %arg10: memref<10x18x8xbf16, #tpu.memory_space<vmem>>, %arg11: memref<8x16x72xbf16, #tpu.memory_space<vmem>>) attributes {dimension_semantics = [#tpu.dimension_semantics<parallel>, #tpu.dimension_semantics<parallel>], iteration_bounds = array<i64: 2, 2>, scalar_prefetch = 0 : i64, scratch_operands = 4 : i64, tpu.core_type = #tpu.core_type<tc>, window_params = [{transform_indices = @transform_0, window_bounds = array<i64: 1, 16, 16, 4>}, {pipeline_mode = #tpu.pipeline_mode<synchronous>, transform_indices = @transform_1, window_bounds = array<i64: 36, 8>}, {pipeline_mode = #tpu.pipeline_mode<synchronous>, transform_indices = @transform_2, window_bounds = array<i64: 1, 8>}, {pipeline_mode = #tpu.pipeline_mode<synchronous>, transform_indices = @transform_3, window_bounds = array<i64: 72, 8>}, {pipeline_mode = #tpu.pipeline_mode<synchronous>, transform_indices = @transform_4, window_bounds = array<i64: 1, 8>}, {transform_indices = @transform_5, window_bounds = array<i64: 1, 128, 8>}]} {
    %c8_i32 = arith.constant 8 : i32
    %0 = arith.muli %arg1, %c8_i32 : i32
    %1 = tpu.assume_multiple %0, 8 : i32
    %cst = arith.constant 0.000000e+00 : bf16
    %2 = vector.broadcast %cst : bf16 to vector<12x1x4xbf16>
    %c0 = arith.constant 0 : index
    %c0_0 = arith.constant 0 : index
    %c0_1 = arith.constant 0 : index
    %3 = vector.load %arg8[%c0, %c0_0, %c0_1] : memref<12x18x4xbf16, #tpu.memory_space<vmem>>, vector<12x1x4xbf16>
    tpu.vector_store %arg8[%c0, %c0_0, %c0_1], %2 {strides = array<i32>} : memref<12x18x4xbf16, #tpu.memory_space<vmem>>, vector<12x1x4xbf16>,
    %c0_2 = arith.constant 0 : index
    %c17 = arith.constant 17 : index
    %c0_3 = arith.constant 0 : index
    %4 = vector.load %arg8[%c0_2, %c17, %c0_3] : memref<12x18x4xbf16, #tpu.memory_space<vmem>>, vector<12x1x4xbf16>
    tpu.vector_store %arg8[%c0_2, %c17, %c0_3], %2 {strides = array<i32>} : memref<12x18x4xbf16, #tpu.memory_space<vmem>>, vector<12x1x4xbf16>,
    %c0_4 = arith.constant 0 : index
    %5 = arith.index_cast %1 : i32 to index
    %c0_5 = arith.constant 0 : index
    %c0_6 = arith.constant 0 : index
    %6 = vector.load %arg2[%c0_4, %5, %c0_5, %c0_6] : memref<1x16x16x4xbf16, #tpu.memory_space<vmem>>, vector<1x8x16x4xbf16>
    %7 = vector.shape_cast %6 : vector<1x8x16x4xbf16> to vector<8x16x4xbf16>
    %c2 = arith.constant 2 : index
    %c1 = arith.constant 1 : index
    %c0_7 = arith.constant 0 : index
    %8 = vector.load %arg8[%c2, %c1, %c0_7] : memref<12x18x4xbf16, #tpu.memory_space<vmem>>, vector<8x16x4xbf16>
    tpu.vector_store %arg8[%c2, %c1, %c0_7], %7 {strides = array<i32>} : memref<12x18x4xbf16, #tpu.memory_space<vmem>>, vector<8x16x4xbf16>,
    %cst_8 = arith.constant 0.000000e+00 : bf16
    %9 = vector.broadcast %cst_8 : bf16 to vector<1x16x4xbf16>
    %c-2_i32 = arith.constant -2 : i32
    %10 = arith.addi %1, %c-2_i32 : i32
    %c0_i32 = arith.constant 0 : i32
    %c15_i32 = arith.constant 15 : i32
    %11 = arith.maxsi %c0_i32, %10 : i32
    %12 = arith.minsi %c15_i32, %11 : i32
    %c0_i32_9 = arith.constant 0 : i32
    %13 = arith.cmpi sge, %10, %c0_i32_9 : i32
    %c16_i32 = arith.constant 16 : i32
    %14 = arith.cmpi slt, %10, %c16_i32 : i32
    %15 = arith.andi %13, %14 : i1
    %c0_10 = arith.constant 0 : index
    %16 = arith.index_cast %12 : i32 to index
    %c0_11 = arith.constant 0 : index
    %c0_12 = arith.constant 0 : index
    %17 = vector.load %arg2[%c0_10, %16, %c0_11, %c0_12] : memref<1x16x16x4xbf16, #tpu.memory_space<vmem>>, vector<1x1x16x4xbf16>
    %18 = vector.shape_cast %17 : vector<1x1x16x4xbf16> to vector<1x16x4xbf16>
    %19 = arith.select %15, %18, %9 : vector<1x16x4xbf16>
    %c0_13 = arith.constant 0 : index
    %c1_14 = arith.constant 1 : index
    %c0_15 = arith.constant 0 : index
    %20 = vector.load %arg8[%c0_13, %c1_14, %c0_15] : memref<12x18x4xbf16, #tpu.memory_space<vmem>>, vector<1x16x4xbf16>
    tpu.vector_store %arg8[%c0_13, %c1_14, %c0_15], %19 {strides = array<i32>} : memref<12x18x4xbf16, #tpu.memory_space<vmem>>, vector<1x16x4xbf16>,
    %c-1_i32 = arith.constant -1 : i32
    %21 = arith.addi %1, %c-1_i32 : i32
    %c0_i32_16 = arith.constant 0 : i32
    %c15_i32_17 = arith.constant 15 : i32
    %22 = arith.maxsi %c0_i32_16, %21 : i32
    %23 = arith.minsi %c15_i32_17, %22 : i32
    %c0_i32_18 = arith.constant 0 : i32
    %24 = arith.cmpi sge, %21, %c0_i32_18 : i32
    %c16_i32_19 = arith.constant 16 : i32
    %25 = arith.cmpi slt, %21, %c16_i32_19 : i32
    %26 = arith.andi %24, %25 : i1
    %c0_20 = arith.constant 0 : index
    %27 = arith.index_cast %23 : i32 to index
    %c0_21 = arith.constant 0 : index
    %c0_22 = arith.constant 0 : index
    %28 = vector.load %arg2[%c0_20, %27, %c0_21, %c0_22] : memref<1x16x16x4xbf16, #tpu.memory_space<vmem>>, vector<1x1x16x4xbf16>
    %29 = vector.shape_cast %28 : vector<1x1x16x4xbf16> to vector<1x16x4xbf16>
    %30 = arith.select %26, %29, %9 : vector<1x16x4xbf16>
    %c1_23 = arith.constant 1 : index
    %c1_24 = arith.constant 1 : index
    %c0_25 = arith.constant 0 : index
    %31 = vector.load %arg8[%c1_23, %c1_24, %c0_25] : memref<12x18x4xbf16, #tpu.memory_space<vmem>>, vector<1x16x4xbf16>
    tpu.vector_store %arg8[%c1_23, %c1_24, %c0_25], %30 {strides = array<i32>} : memref<12x18x4xbf16, #tpu.memory_space<vmem>>, vector<1x16x4xbf16>,
    %c8_i32_26 = arith.constant 8 : i32
    %32 = arith.addi %1, %c8_i32_26 : i32
    %c0_i32_27 = arith.constant 0 : i32
    %c15_i32_28 = arith.constant 15 : i32
    %33 = arith.maxsi %c0_i32_27, %32 : i32
    %34 = arith.minsi %c15_i32_28, %33 : i32
    %c0_i32_29 = arith.constant 0 : i32
    %35 = arith.cmpi sge, %32, %c0_i32_29 : i32
    %c16_i32_30 = arith.constant 16 : i32
    %36 = arith.cmpi slt, %32, %c16_i32_30 : i32
    %37 = arith.andi %35, %36 : i1
    %c0_31 = arith.constant 0 : index
    %38 = arith.index_cast %34 : i32 to index
    %c0_32 = arith.constant 0 : index
    %c0_33 = arith.constant 0 : index
    %39 = vector.load %arg2[%c0_31, %38, %c0_32, %c0_33] : memref<1x16x16x4xbf16, #tpu.memory_space<vmem>>, vector<1x1x16x4xbf16>
    %40 = vector.shape_cast %39 : vector<1x1x16x4xbf16> to vector<1x16x4xbf16>
    %41 = arith.select %37, %40, %9 : vector<1x16x4xbf16>
    %c10 = arith.constant 10 : index
    %c1_34 = arith.constant 1 : index
    %c0_35 = arith.constant 0 : index
    %42 = vector.load %arg8[%c10, %c1_34, %c0_35] : memref<12x18x4xbf16, #tpu.memory_space<vmem>>, vector<1x16x4xbf16>
    tpu.vector_store %arg8[%c10, %c1_34, %c0_35], %41 {strides = array<i32>} : memref<12x18x4xbf16, #tpu.memory_space<vmem>>, vector<1x16x4xbf16>,
    %c9_i32 = arith.constant 9 : i32
    %43 = arith.addi %1, %c9_i32 : i32
    %c0_i32_36 = arith.constant 0 : i32
    %c15_i32_37 = arith.constant 15 : i32
    %44 = arith.maxsi %c0_i32_36, %43 : i32
    %45 = arith.minsi %c15_i32_37, %44 : i32
    %c0_i32_38 = arith.constant 0 : i32
    %46 = arith.cmpi sge, %43, %c0_i32_38 : i32
    %c16_i32_39 = arith.constant 16 : i32
    %47 = arith.cmpi slt, %43, %c16_i32_39 : i32
    %48 = arith.andi %46, %47 : i1
    %c0_40 = arith.constant 0 : index
    %49 = arith.index_cast %45 : i32 to index
    %c0_41 = arith.constant 0 : index
    %c0_42 = arith.constant 0 : index
    %50 = vector.load %arg2[%c0_40, %49, %c0_41, %c0_42] : memref<1x16x16x4xbf16, #tpu.memory_space<vmem>>, vector<1x1x16x4xbf16>
    %51 = vector.shape_cast %50 : vector<1x1x16x4xbf16> to vector<1x16x4xbf16>
    %52 = arith.select %48, %51, %9 : vector<1x16x4xbf16>
    %c11 = arith.constant 11 : index
    %c1_43 = arith.constant 1 : index
    %c0_44 = arith.constant 0 : index
    %53 = vector.load %arg8[%c11, %c1_43, %c0_44] : memref<12x18x4xbf16, #tpu.memory_space<vmem>>, vector<1x16x4xbf16>
    tpu.vector_store %arg8[%c11, %c1_43, %c0_44], %52 {strides = array<i32>} : memref<12x18x4xbf16, #tpu.memory_space<vmem>>, vector<1x16x4xbf16>,
    %c0_45 = arith.constant 0 : index
    %c0_46 = arith.constant 0 : index
    %c0_47 = arith.constant 0 : index
    %54 = vector.load %arg8[%c0_45, %c0_46, %c0_47] : memref<12x18x4xbf16, #tpu.memory_space<vmem>>, vector<10x16x4xbf16>
    %c0_48 = arith.constant 0 : index
    %c0_49 = arith.constant 0 : index
    %c0_50 = arith.constant 0 : index
    %55 = vector.load %arg9[%c0_48, %c0_49, %c0_50] : memref<10x16x36xbf16, #tpu.memory_space<vmem>>, vector<10x16x4xbf16>
    tpu.vector_store %arg9[%c0_48, %c0_49, %c0_50], %54 {strides = array<i32>} : memref<10x16x36xbf16, #tpu.memory_space<vmem>>, vector<10x16x4xbf16>,
    %c0_51 = arith.constant 0 : index
    %c1_52 = arith.constant 1 : index
    %c0_53 = arith.constant 0 : index
    %56 = vector.load %arg8[%c0_51, %c1_52, %c0_53] : memref<12x18x4xbf16, #tpu.memory_space<vmem>>, vector<10x16x4xbf16>
    %c0_54 = arith.constant 0 : index
    %c0_55 = arith.constant 0 : index
    %c4 = arith.constant 4 : index
    %57 = vector.load %arg9[%c0_54, %c0_55, %c4] : memref<10x16x36xbf16, #tpu.memory_space<vmem>>, vector<10x16x4xbf16>
    tpu.vector_store %arg9[%c0_54, %c0_55, %c4], %56 {strides = array<i32>} : memref<10x16x36xbf16, #tpu.memory_space<vmem>>, vector<10x16x4xbf16>,
    %c0_56 = arith.constant 0 : index
    %c2_57 = arith.constant 2 : index
    %c0_58 = arith.constant 0 : index
    %58 = vector.load %arg8[%c0_56, %c2_57, %c0_58] : memref<12x18x4xbf16, #tpu.memory_space<vmem>>, vector<10x16x4xbf16>
    %c0_59 = arith.constant 0 : index
    %c0_60 = arith.constant 0 : index
    %c8 = arith.constant 8 : index
    %59 = vector.load %arg9[%c0_59, %c0_60, %c8] : memref<10x16x36xbf16, #tpu.memory_space<vmem>>, vector<10x16x4xbf16>
    tpu.vector_store %arg9[%c0_59, %c0_60, %c8], %58 {strides = array<i32>} : memref<10x16x36xbf16, #tpu.memory_space<vmem>>, vector<10x16x4xbf16>,
    %c1_61 = arith.constant 1 : index
    %c0_62 = arith.constant 0 : index
    %c0_63 = arith.constant 0 : index
    %60 = vector.load %arg8[%c1_61, %c0_62, %c0_63] : memref<12x18x4xbf16, #tpu.memory_space<vmem>>, vector<10x16x4xbf16>
    %c0_64 = arith.constant 0 : index
    %c0_65 = arith.constant 0 : index
    %c12 = arith.constant 12 : index
    %61 = vector.load %arg9[%c0_64, %c0_65, %c12] : memref<10x16x36xbf16, #tpu.memory_space<vmem>>, vector<10x16x4xbf16>
    tpu.vector_store %arg9[%c0_64, %c0_65, %c12], %60 {strides = array<i32>} : memref<10x16x36xbf16, #tpu.memory_space<vmem>>, vector<10x16x4xbf16>,
    %c1_66 = arith.constant 1 : index
    %c1_67 = arith.constant 1 : index
    %c0_68 = arith.constant 0 : index
    %62 = vector.load %arg8[%c1_66, %c1_67, %c0_68] : memref<12x18x4xbf16, #tpu.memory_space<vmem>>, vector<10x16x4xbf16>
    %c0_69 = arith.constant 0 : index
    %c0_70 = arith.constant 0 : index
    %c16 = arith.constant 16 : index
    %63 = vector.load %arg9[%c0_69, %c0_70, %c16] : memref<10x16x36xbf16, #tpu.memory_space<vmem>>, vector<10x16x4xbf16>
    tpu.vector_store %arg9[%c0_69, %c0_70, %c16], %62 {strides = array<i32>} : memref<10x16x36xbf16, #tpu.memory_space<vmem>>, vector<10x16x4xbf16>,
    %c1_71 = arith.constant 1 : index
    %c2_72 = arith.constant 2 : index
    %c0_73 = arith.constant 0 : index
    %64 = vector.load %arg8[%c1_71, %c2_72, %c0_73] : memref<12x18x4xbf16, #tpu.memory_space<vmem>>, vector<10x16x4xbf16>
    %c0_74 = arith.constant 0 : index
    %c0_75 = arith.constant 0 : index
    %c20 = arith.constant 20 : index
    %65 = vector.load %arg9[%c0_74, %c0_75, %c20] : memref<10x16x36xbf16, #tpu.memory_space<vmem>>, vector<10x16x4xbf16>
    tpu.vector_store %arg9[%c0_74, %c0_75, %c20], %64 {strides = array<i32>} : memref<10x16x36xbf16, #tpu.memory_space<vmem>>, vector<10x16x4xbf16>,
    %c2_76 = arith.constant 2 : index
    %c0_77 = arith.constant 0 : index
    %c0_78 = arith.constant 0 : index
    %66 = vector.load %arg8[%c2_76, %c0_77, %c0_78] : memref<12x18x4xbf16, #tpu.memory_space<vmem>>, vector<10x16x4xbf16>
    %c0_79 = arith.constant 0 : index
    %c0_80 = arith.constant 0 : index
    %c24 = arith.constant 24 : index
    %67 = vector.load %arg9[%c0_79, %c0_80, %c24] : memref<10x16x36xbf16, #tpu.memory_space<vmem>>, vector<10x16x4xbf16>
    tpu.vector_store %arg9[%c0_79, %c0_80, %c24], %66 {strides = array<i32>} : memref<10x16x36xbf16, #tpu.memory_space<vmem>>, vector<10x16x4xbf16>,
    %c2_81 = arith.constant 2 : index
    %c1_82 = arith.constant 1 : index
    %c0_83 = arith.constant 0 : index
    %68 = vector.load %arg8[%c2_81, %c1_82, %c0_83] : memref<12x18x4xbf16, #tpu.memory_space<vmem>>, vector<10x16x4xbf16>
    %c0_84 = arith.constant 0 : index
    %c0_85 = arith.constant 0 : index
    %c28 = arith.constant 28 : index
    %69 = vector.load %arg9[%c0_84, %c0_85, %c28] : memref<10x16x36xbf16, #tpu.memory_space<vmem>>, vector<10x16x4xbf16>
    tpu.vector_store %arg9[%c0_84, %c0_85, %c28], %68 {strides = array<i32>} : memref<10x16x36xbf16, #tpu.memory_space<vmem>>, vector<10x16x4xbf16>,
    %c2_86 = arith.constant 2 : index
    %c2_87 = arith.constant 2 : index
    %c0_88 = arith.constant 0 : index
    %70 = vector.load %arg8[%c2_86, %c2_87, %c0_88] : memref<12x18x4xbf16, #tpu.memory_space<vmem>>, vector<10x16x4xbf16>
    %c0_89 = arith.constant 0 : index
    %c0_90 = arith.constant 0 : index
    %c32 = arith.constant 32 : index
    %71 = vector.load %arg9[%c0_89, %c0_90, %c32] : memref<10x16x36xbf16, #tpu.memory_space<vmem>>, vector<10x16x4xbf16>
    tpu.vector_store %arg9[%c0_89, %c0_90, %c32], %70 {strides = array<i32>} : memref<10x16x36xbf16, #tpu.memory_space<vmem>>, vector<10x16x4xbf16>,
    %c0_91 = arith.constant 0 : index
    %c0_92 = arith.constant 0 : index
    %c0_93 = arith.constant 0 : index
    %72 = vector.load %arg9[%c0_91, %c0_92, %c0_93] : memref<10x16x36xbf16, #tpu.memory_space<vmem>>, vector<10x16x36xbf16>
    %73 = vector.shape_cast %72 : vector<10x16x36xbf16> to vector<160x36xbf16>
    %c0_94 = arith.constant 0 : index
    %c0_95 = arith.constant 0 : index
    %74 = vector.load %arg3[%c0_94, %c0_95] : memref<36x8xbf16, #tpu.memory_space<vmem>>, vector<36x8xbf16>
    %cst_96 = arith.constant dense<0.000000e+00> : vector<160x8xf32>
    %75 = tpu.matmul %73, %74, %cst_96 {dimension_numbers = #tpu.dot_dimension_numbers<[1], [0], [0], [1], [0, 0, 1, 1], [], []>} : vector<160x36xbf16>, vector<36x8xbf16>, vector<160x8xf32> -> vector<160x8xf32>
    %c0_97 = arith.constant 0 : index
    %c0_98 = arith.constant 0 : index
    %76 = vector.load %arg4[%c0_97, %c0_98] : memref<1x8xf32, #tpu.memory_space<vmem>>, vector<1x8xf32>
    %77 = vector.broadcast %76 : vector<1x8xf32> to vector<160x8xf32>
    %78 = arith.addf %75, %77 : vector<160x8xf32>
    %cst_99 = arith.constant 0.000000e+00 : f32
    %79 = vector.broadcast %cst_99 : f32 to vector<160x8xf32>
    %80 = arith.maximumf %78, %79 : vector<160x8xf32>
    %81 = vector.shape_cast %80 : vector<160x8xf32> to vector<10x16x8xf32>
    %c1_i32 = arith.constant 1 : i32
    %82 = arith.subi %1, %c1_i32 : i32
    %83 = tpu.iota {dimensions = array<i32: 0>} : vector<10x1x1xi32>
    %84 = vector.broadcast %82 : i32 to vector<10x1x1xi32>
    %85 = arith.addi %84, %83 : vector<10x1x1xi32>
    %c0_i32_100 = arith.constant 0 : i32
    %86 = vector.broadcast %c0_i32_100 : i32 to vector<10x1x1xi32>
    %87 = arith.cmpi sge, %85, %86 : vector<10x1x1xi32>
    %c16_i32_101 = arith.constant 16 : i32
    %88 = vector.broadcast %c16_i32_101 : i32 to vector<10x1x1xi32>
    %89 = arith.cmpi slt, %85, %88 : vector<10x1x1xi32>
    %90 = arith.andi %87, %89 : vector<10x1x1xi1>
    %cst_102 = arith.constant 0.000000e+00 : f32
    %91 = vector.shape_cast %90 : vector<10x1x1xi1> to vector<10x1x1xi1>
    %92 = vector.broadcast %91 : vector<10x1x1xi1> to vector<10x16x8xi1>
    %93 = vector.broadcast %cst_102 : f32 to vector<10x16x8xf32>
    %94 = arith.select %92, %81, %93 : vector<10x16x8xi1>, vector<10x16x8xf32>
    %cst_103 = arith.constant 0.000000e+00 : bf16
    %95 = vector.broadcast %cst_103 : bf16 to vector<10x1x8xbf16>
    %c0_104 = arith.constant 0 : index
    %c0_105 = arith.constant 0 : index
    %c0_106 = arith.constant 0 : index
    %96 = vector.load %arg10[%c0_104, %c0_105, %c0_106] : memref<10x18x8xbf16, #tpu.memory_space<vmem>>, vector<10x1x8xbf16>
    tpu.vector_store %arg10[%c0_104, %c0_105, %c0_106], %95 {strides = array<i32>} : memref<10x18x8xbf16, #tpu.memory_space<vmem>>, vector<10x1x8xbf16>,
    %c0_107 = arith.constant 0 : index
    %c17_108 = arith.constant 17 : index
    %c0_109 = arith.constant 0 : index
    %97 = vector.load %arg10[%c0_107, %c17_108, %c0_109] : memref<10x18x8xbf16, #tpu.memory_space<vmem>>, vector<10x1x8xbf16>
    tpu.vector_store %arg10[%c0_107, %c17_108, %c0_109], %95 {strides = array<i32>} : memref<10x18x8xbf16, #tpu.memory_space<vmem>>, vector<10x1x8xbf16>,
    %98 = arith.truncf %94 : vector<10x16x8xf32> to vector<10x16x8xbf16>
    %c0_110 = arith.constant 0 : index
    %c1_111 = arith.constant 1 : index
    %c0_112 = arith.constant 0 : index
    %99 = vector.load %arg10[%c0_110, %c1_111, %c0_112] : memref<10x18x8xbf16, #tpu.memory_space<vmem>>, vector<10x16x8xbf16>
    tpu.vector_store %arg10[%c0_110, %c1_111, %c0_112], %98 {strides = array<i32>} : memref<10x18x8xbf16, #tpu.memory_space<vmem>>, vector<10x16x8xbf16>,
    %c0_113 = arith.constant 0 : index
    %c0_114 = arith.constant 0 : index
    %c0_115 = arith.constant 0 : index
    %100 = vector.load %arg10[%c0_113, %c0_114, %c0_115] : memref<10x18x8xbf16, #tpu.memory_space<vmem>>, vector<8x16x8xbf16>
    %c0_116 = arith.constant 0 : index
    %c0_117 = arith.constant 0 : index
    %c0_118 = arith.constant 0 : index
    %101 = vector.load %arg11[%c0_116, %c0_117, %c0_118] : memref<8x16x72xbf16, #tpu.memory_space<vmem>>, vector<8x16x8xbf16>
    tpu.vector_store %arg11[%c0_116, %c0_117, %c0_118], %100 {strides = array<i32>} : memref<8x16x72xbf16, #tpu.memory_space<vmem>>, vector<8x16x8xbf16>,
    %c0_119 = arith.constant 0 : index
    %c1_120 = arith.constant 1 : index
    %c0_121 = arith.constant 0 : index
    %102 = vector.load %arg10[%c0_119, %c1_120, %c0_121] : memref<10x18x8xbf16, #tpu.memory_space<vmem>>, vector<8x16x8xbf16>
    %c0_122 = arith.constant 0 : index
    %c0_123 = arith.constant 0 : index
    %c8_124 = arith.constant 8 : index
    %103 = vector.load %arg11[%c0_122, %c0_123, %c8_124] : memref<8x16x72xbf16, #tpu.memory_space<vmem>>, vector<8x16x8xbf16>
    tpu.vector_store %arg11[%c0_122, %c0_123, %c8_124], %102 {strides = array<i32>} : memref<8x16x72xbf16, #tpu.memory_space<vmem>>, vector<8x16x8xbf16>,
    %c0_125 = arith.constant 0 : index
    %c2_126 = arith.constant 2 : index
    %c0_127 = arith.constant 0 : index
    %104 = vector.load %arg10[%c0_125, %c2_126, %c0_127] : memref<10x18x8xbf16, #tpu.memory_space<vmem>>, vector<8x16x8xbf16>
    %c0_128 = arith.constant 0 : index
    %c0_129 = arith.constant 0 : index
    %c16_130 = arith.constant 16 : index
    %105 = vector.load %arg11[%c0_128, %c0_129, %c16_130] : memref<8x16x72xbf16, #tpu.memory_space<vmem>>, vector<8x16x8xbf16>
    tpu.vector_store %arg11[%c0_128, %c0_129, %c16_130], %104 {strides = array<i32>} : memref<8x16x72xbf16, #tpu.memory_space<vmem>>, vector<8x16x8xbf16>,
    %c1_131 = arith.constant 1 : index
    %c0_132 = arith.constant 0 : index
    %c0_133 = arith.constant 0 : index
    %106 = vector.load %arg10[%c1_131, %c0_132, %c0_133] : memref<10x18x8xbf16, #tpu.memory_space<vmem>>, vector<8x16x8xbf16>
    %c0_134 = arith.constant 0 : index
    %c0_135 = arith.constant 0 : index
    %c24_136 = arith.constant 24 : index
    %107 = vector.load %arg11[%c0_134, %c0_135, %c24_136] : memref<8x16x72xbf16, #tpu.memory_space<vmem>>, vector<8x16x8xbf16>
    tpu.vector_store %arg11[%c0_134, %c0_135, %c24_136], %106 {strides = array<i32>} : memref<8x16x72xbf16, #tpu.memory_space<vmem>>, vector<8x16x8xbf16>,
    %c1_137 = arith.constant 1 : index
    %c1_138 = arith.constant 1 : index
    %c0_139 = arith.constant 0 : index
    %108 = vector.load %arg10[%c1_137, %c1_138, %c0_139] : memref<10x18x8xbf16, #tpu.memory_space<vmem>>, vector<8x16x8xbf16>
    %c0_140 = arith.constant 0 : index
    %c0_141 = arith.constant 0 : index
    %c32_142 = arith.constant 32 : index
    %109 = vector.load %arg11[%c0_140, %c0_141, %c32_142] : memref<8x16x72xbf16, #tpu.memory_space<vmem>>, vector<8x16x8xbf16>
    tpu.vector_store %arg11[%c0_140, %c0_141, %c32_142], %108 {strides = array<i32>} : memref<8x16x72xbf16, #tpu.memory_space<vmem>>, vector<8x16x8xbf16>,
    %c1_143 = arith.constant 1 : index
    %c2_144 = arith.constant 2 : index
    %c0_145 = arith.constant 0 : index
    %110 = vector.load %arg10[%c1_143, %c2_144, %c0_145] : memref<10x18x8xbf16, #tpu.memory_space<vmem>>, vector<8x16x8xbf16>
    %c0_146 = arith.constant 0 : index
    %c0_147 = arith.constant 0 : index
    %c40 = arith.constant 40 : index
    %111 = vector.load %arg11[%c0_146, %c0_147, %c40] : memref<8x16x72xbf16, #tpu.memory_space<vmem>>, vector<8x16x8xbf16>
    tpu.vector_store %arg11[%c0_146, %c0_147, %c40], %110 {strides = array<i32>} : memref<8x16x72xbf16, #tpu.memory_space<vmem>>, vector<8x16x8xbf16>,
    %c2_148 = arith.constant 2 : index
    %c0_149 = arith.constant 0 : index
    %c0_150 = arith.constant 0 : index
    %112 = vector.load %arg10[%c2_148, %c0_149, %c0_150] : memref<10x18x8xbf16, #tpu.memory_space<vmem>>, vector<8x16x8xbf16>
    %c0_151 = arith.constant 0 : index
    %c0_152 = arith.constant 0 : index
    %c48 = arith.constant 48 : index
    %113 = vector.load %arg11[%c0_151, %c0_152, %c48] : memref<8x16x72xbf16, #tpu.memory_space<vmem>>, vector<8x16x8xbf16>
    tpu.vector_store %arg11[%c0_151, %c0_152, %c48], %112 {strides = array<i32>} : memref<8x16x72xbf16, #tpu.memory_space<vmem>>, vector<8x16x8xbf16>,
    %c2_153 = arith.constant 2 : index
    %c1_154 = arith.constant 1 : index
    %c0_155 = arith.constant 0 : index
    %114 = vector.load %arg10[%c2_153, %c1_154, %c0_155] : memref<10x18x8xbf16, #tpu.memory_space<vmem>>, vector<8x16x8xbf16>
    %c0_156 = arith.constant 0 : index
    %c0_157 = arith.constant 0 : index
    %c56 = arith.constant 56 : index
    %115 = vector.load %arg11[%c0_156, %c0_157, %c56] : memref<8x16x72xbf16, #tpu.memory_space<vmem>>, vector<8x16x8xbf16>
    tpu.vector_store %arg11[%c0_156, %c0_157, %c56], %114 {strides = array<i32>} : memref<8x16x72xbf16, #tpu.memory_space<vmem>>, vector<8x16x8xbf16>,
    %c2_158 = arith.constant 2 : index
    %c2_159 = arith.constant 2 : index
    %c0_160 = arith.constant 0 : index
    %116 = vector.load %arg10[%c2_158, %c2_159, %c0_160] : memref<10x18x8xbf16, #tpu.memory_space<vmem>>, vector<8x16x8xbf16>
    %c0_161 = arith.constant 0 : index
    %c0_162 = arith.constant 0 : index
    %c64 = arith.constant 64 : index
    %117 = vector.load %arg11[%c0_161, %c0_162, %c64] : memref<8x16x72xbf16, #tpu.memory_space<vmem>>, vector<8x16x8xbf16>
    tpu.vector_store %arg11[%c0_161, %c0_162, %c64], %116 {strides = array<i32>} : memref<8x16x72xbf16, #tpu.memory_space<vmem>>, vector<8x16x8xbf16>,
    %c0_163 = arith.constant 0 : index
    %c0_164 = arith.constant 0 : index
    %c0_165 = arith.constant 0 : index
    %118 = vector.load %arg11[%c0_163, %c0_164, %c0_165] : memref<8x16x72xbf16, #tpu.memory_space<vmem>>, vector<8x16x72xbf16>
    %119 = vector.shape_cast %118 : vector<8x16x72xbf16> to vector<128x72xbf16>
    %c0_166 = arith.constant 0 : index
    %c0_167 = arith.constant 0 : index
    %120 = vector.load %arg5[%c0_166, %c0_167] : memref<72x8xbf16, #tpu.memory_space<vmem>>, vector<72x8xbf16>
    %cst_168 = arith.constant dense<0.000000e+00> : vector<128x8xf32>
    %121 = tpu.matmul %119, %120, %cst_168 {dimension_numbers = #tpu.dot_dimension_numbers<[1], [0], [0], [1], [0, 0, 1, 1], [], []>} : vector<128x72xbf16>, vector<72x8xbf16>, vector<128x8xf32> -> vector<128x8xf32>
    %c0_169 = arith.constant 0 : index
    %c0_170 = arith.constant 0 : index
    %122 = vector.load %arg6[%c0_169, %c0_170] : memref<1x8xf32, #tpu.memory_space<vmem>>, vector<1x8xf32>
    %123 = vector.broadcast %122 : vector<1x8xf32> to vector<128x8xf32>
    %124 = arith.addf %121, %123 : vector<128x8xf32>
    %cst_171 = arith.constant 0.000000e+00 : f32
    %125 = vector.broadcast %cst_171 : f32 to vector<128x8xf32>
    %126 = arith.maximumf %124, %125 : vector<128x8xf32>
    %c0_172 = arith.constant 0 : index
    %c0_173 = arith.constant 0 : index
    %c0_174 = arith.constant 0 : index
    %127 = vector.load %arg7[%c0_172, %c0_173, %c0_174] : memref<1x128x8xf32, #tpu.memory_space<vmem>>, vector<1x128x8xf32>
    %128 = vector.shape_cast %127 : vector<1x128x8xf32> to vector<128x8xf32>
    %129 = vector.shape_cast %126 : vector<128x8xf32> to vector<1x128x8xf32>
    tpu.vector_store %arg7[%c0_172, %c0_173, %c0_174], %129 {strides = array<i32>} : memref<1x128x8xf32, #tpu.memory_space<vmem>>, vector<1x128x8xf32>,
    return
  }
  func.func @transform_0(%arg0: i32, %arg1: i32) -> (i32, i32, i32, i32) {
    %c0_i32 = arith.constant 0 : i32
    %c0_i32_0 = arith.constant 0 : i32
    %c0_i32_1 = arith.constant 0 : i32
    %c0_i32_2 = arith.constant 0 : i32
    return %arg0, %c0_i32, %c0_i32_0, %c0_i32_1 : i32, i32, i32, i32
  }
  func.func @transform_1(%arg0: i32, %arg1: i32) -> (i32, i32) {
    %c0_i32 = arith.constant 0 : i32
    %c0_i32_0 = arith.constant 0 : i32
    %c0_i32_1 = arith.constant 0 : i32
    return %c0_i32, %c0_i32_0 : i32, i32
  }
  func.func @transform_2(%arg0: i32, %arg1: i32) -> (i32, i32) {
    %c0_i32 = arith.constant 0 : i32
    %c0_i32_0 = arith.constant 0 : i32
    %c0_i32_1 = arith.constant 0 : i32
    return %c0_i32, %c0_i32_0 : i32, i32
  }
  func.func @transform_3(%arg0: i32, %arg1: i32) -> (i32, i32) {
    %c0_i32 = arith.constant 0 : i32
    %c0_i32_0 = arith.constant 0 : i32
    %c0_i32_1 = arith.constant 0 : i32
    return %c0_i32, %c0_i32_0 : i32, i32
  }
  func.func @transform_4(%arg0: i32, %arg1: i32) -> (i32, i32) {
    %c0_i32 = arith.constant 0 : i32
    %c0_i32_0 = arith.constant 0 : i32
    %c0_i32_1 = arith.constant 0 : i32
    return %c0_i32, %c0_i32_0 : i32, i32
  }
  func.func @transform_5(%arg0: i32, %arg1: i32) -> (i32, i32, i32) {
    %c0_i32 = arith.constant 0 : i32
    %c0_i32_0 = arith.constant 0 : i32
    return %arg0, %arg1, %c0_i32 : i32, i32, i32
  }
}

</mosaic_0001>

<llo_original>
// kernel: tpu_custom_call.1
$region0: #{tpu_custom_call.1}
  #allocation0 [shape = 'u32[]', space=smem, size = 0x4, offset = 0x4, fixed_abs, tag = 'smem constant byte address 0x4 - core index']
  #allocation1 [shape = 'u32[144,128]{1,0:T(1,128)}', space=vmem, size = 0x12000, scoped, tag = 'internal scratch']
  #allocation2 [shape = 'bf16[12,18,4]{2,1,0:T(8,128)(2,1)}', space=vmem, size = 0x12000, scoped, tag = 'scratch operand']
  #allocation3 [shape = 'bf16[10,16,36]{2,1,0:T(8,128)(2,1)}', space=vmem, size = 0xa000, scoped, tag = 'scratch operand']
  #allocation4 [shape = 'bf16[10,18,8]{2,1,0:T(8,128)(2,1)}', space=vmem, size = 0xf000, scoped, tag = 'scratch operand']
  #allocation5 [shape = 'bf16[8,16,72]{2,1,0:T(8,128)(2,1)}', space=vmem, size = 0x8000, scoped, tag = 'scratch operand']
  %s0 = inlined_call_operand.vmem [shape: bf16[2,16,16,4], index: 0, kind: input, shape index: {}]
  %s1 = inlined_call_operand.vmem [shape: bf16[36,8], index: 1, kind: input, shape index: {}]
  %s2 = inlined_call_operand.vmem [shape: f32[1,8], index: 2, kind: input, shape index: {}]
  %s3 = inlined_call_operand.vmem [shape: bf16[72,8], index: 3, kind: input, shape index: {}]
  %s4 = inlined_call_operand.vmem [shape: f32[1,8], index: 4, kind: input, shape index: {}]
  %s5 = inlined_call_operand.vmem [shape: f32[2,256,8], index: 5, kind: output, shape index: {}]
  %s6 = sld [smem:[#allocation0]]
  $region53: #{tpu_custom_call.1} parent=0
    _
  %s8 = ssub.s32 1, %s6
  %s9 = scalar_select 0, %s8, %s6
  loop: start=0, step=1, limit=6
  $region2: #{tpu_custom_call.1} parent=0 // loop_pre_header
    _
  $region3: #{tpu_custom_call.1} parent=0 // loop_header
    %s11 = sphi 0, %s15
    %p12 = scmp.ge.s32.totalorder %s11, 6
    %s18 = sphi 0, %s30
    %s19 = sphi 0, %s26
    %s20 = sphi 0, %s18
    %s21 = sphi 0, %s19
    %s22 = sphi 0, %s20
    %s23 = sphi 0, %s21
    %s33 = sphi 0, %s35
    %s36 = sphi 0, %s33
    %s37 = sphi 0, %s36
    %s53 = sphi 0, %s37
    %s57 = sphi 0, %s57
    %s59 = sphi 0, %s57
    %s60 = sphi 0, %s59
    %s74 = sphi 0, %s60
    %s78 = sphi 0, %s78
    %s80 = sphi 0, %s78
    %s81 = sphi 0, %s80
    %s95 = sphi 0, %s81
    %s99 = sphi 0, %s99
    %s101 = sphi 0, %s99
    %s102 = sphi 0, %s101
    %s116 = sphi 0, %s102
    %s120 = sphi 0, %s120
    %s122 = sphi 0, %s120
    %s123 = sphi 0, %s122
    %s137 = sphi 0, %s123
    %s145 = sphi 0, %s147
    %s148 = sphi 0, %s145
    %s149 = sphi 0, %s148
    %s165 = sphi 0, %s149
  $region4: #{tpu_custom_call.1} parent=0 // loop_header_branch
    %14 = sbr.rel (%p12) target = $region8
  $region5: #{tpu_custom_call.1} parent=0 // loop_body
    %s16 = ssub.s32 %s11, 1
    %s17 = ssub.s32 %s11, 2
    %s24 = sadd.s32 1, %s19
    %p25 = scmp.ge.s32.totalorder %s24, 2
    %s26 = scalar_select %p25, 0, %s24
    %s27 = sadd.s32 1, %s18
    %s28 = scalar_select %p25, %s27, %s18
    %p29 = scmp.ge.s32.totalorder %s28, 2
    %s30 = scalar_select %p29, 0, %s28
    %s31 = ssub.s32 %s18, %s30
    %p32 = scmp.eq.s32.totalorder %s31, 0
    %s34 = sadd.s32 %s33, 1
    %s35 = scalar_select %p32, %s33, %s34
    %p38 = pneg %p32
    %p39 = scmp.eq.s32.totalorder %s11, 3
    %p40 = por %p38, %p39
    %p41 = scmp.ne.s32.totalorder %s33, %s36
    %p42 = scmp.eq.s32.totalorder %s11, 0
    %p43 = por %p41, %p42
    %p44 = scmp.ne.s32.totalorder %s33, %s36
    %p45 = scmp.eq.s32.totalorder %s16, 3
    %p46 = por %p44, %p45
    %p47 = scmp.ne.s32.totalorder %s36, %s37
    %p48 = scmp.eq.s32.totalorder %s16, 0
    %p49 = por %p47, %p48
    %p50 = scmp.ne.s32.totalorder %s36, %s37
    %p51 = scmp.eq.s32.totalorder %s17, 3
    %p52 = por %p50, %p51
    %p54 = scmp.ne.s32.totalorder %s37, %s53
    %p55 = scmp.eq.s32.totalorder %s17, 0
    %p56 = por %p54, %p55
    %s58 = sadd.s32 %s57, 1
    %p61 = scmp.eq.s32.totalorder %s11, 3
    %p62 = scmp.ne.s32.totalorder %s57, %s59
    %p63 = scmp.eq.s32.totalorder %s11, 0
    %p64 = por %p62, %p63
    %p65 = scmp.ne.s32.totalorder %s57, %s59
    %p66 = scmp.eq.s32.totalorder %s16, 3
    %p67 = por %p65, %p66
    %p68 = scmp.ne.s32.totalorder %s59, %s60
    %p69 = scmp.eq.s32.totalorder %s16, 0
    %p70 = por %p68, %p69
    %p71 = scmp.ne.s32.totalorder %s59, %s60
    %p72 = scmp.eq.s32.totalorder %s17, 3
    %p73 = por %p71, %p72
    %p75 = scmp.ne.s32.totalorder %s60, %s74
    %p76 = scmp.eq.s32.totalorder %s17, 0
    %p77 = por %p75, %p76
    %s79 = sadd.s32 %s78, 1
    %p82 = scmp.eq.s32.totalorder %s11, 3
    %p83 = scmp.ne.s32.totalorder %s78, %s80
    %p84 = scmp.eq.s32.totalorder %s11, 0
    %p85 = por %p83, %p84
    %p86 = scmp.ne.s32.totalorder %s78, %s80
    %p87 = scmp.eq.s32.totalorder %s16, 3
    %p88 = por %p86, %p87
    %p89 = scmp.ne.s32.totalorder %s80, %s81
    %p90 = scmp.eq.s32.totalorder %s16, 0
    %p91 = por %p89, %p90
    %p92 = scmp.ne.s32.totalorder %s80, %s81
    %p93 = scmp.eq.s32.totalorder %s17, 3
    %p94 = por %p92, %p93
    %p96 = scmp.ne.s32.totalorder %s81, %s95
    %p97 = scmp.eq.s32.totalorder %s17, 0
    %p98 = por %p96, %p97
    %s100 = sadd.s32 %s99, 1
    %p103 = scmp.eq.s32.totalorder %s11, 3
    %p104 = scmp.ne.s32.totalorder %s99, %s101
    %p105 = scmp.eq.s32.totalorder %s11, 0
    %p106 = por %p104, %p105
    %p107 = scmp.ne.s32.totalorder %s99, %s101
    %p108 = scmp.eq.s32.totalorder %s16, 3
    %p109 = por %p107, %p108
    %p110 = scmp.ne.s32.totalorder %s101, %s102
    %p111 = scmp.eq.s32.totalorder %s16, 0
    %p112 = por %p110, %p111
    %p113 = scmp.ne.s32.totalorder %s101, %s102
    %p114 = scmp.eq.s32.totalorder %s17, 3
    %p115 = por %p113, %p114
    %p117 = scmp.ne.s32.totalorder %s102, %s116
    %p118 = scmp.eq.s32.totalorder %s17, 0
    %p119 = por %p117, %p118
    %s121 = sadd.s32 %s120, 1
    %p124 = scmp.eq.s32.totalorder %s11, 3
    %p125 = scmp.ne.s32.totalorder %s120, %s122
    %p126 = scmp.eq.s32.totalorder %s11, 0
    %p127 = por %p125, %p126
    %p128 = scmp.ne.s32.totalorder %s120, %s122
    %p129 = scmp.eq.s32.totalorder %s16, 3
    %p130 = por %p128, %p129
    %p131 = scmp.ne.s32.totalorder %s122, %s123
    %p132 = scmp.eq.s32.totalorder %s16, 0
    %p133 = por %p131, %p132
    %p134 = scmp.ne.s32.totalorder %s122, %s123
    %p135 = scmp.eq.s32.totalorder %s17, 3
    %p136 = por %p134, %p135
    %p138 = scmp.ne.s32.totalorder %s123, %s137
    %p139 = scmp.eq.s32.totalorder %s17, 0
    %p140 = por %p138, %p139
    %s141 = ssub.s32 %s18, %s30
    %s142 = ssub.s32 %s19, %s26
    %s143 = sor.u32 %s141, %s142
    %p144 = scmp.eq.s32.totalorder %s143, 0
    %s146 = sadd.s32 %s145, 1
    %s147 = scalar_select %p144, %s145, %s146
    %p150 = pneg %p144
    %p151 = scmp.eq.s32.totalorder %s11, 3
    %p152 = por %p150, %p151
    %p153 = scmp.ne.s32.totalorder %s145, %s148
    %p154 = scmp.eq.s32.totalorder %s11, 0
    %p155 = por %p153, %p154
    %p156 = scmp.ne.s32.totalorder %s145, %s148
    %p157 = scmp.eq.s32.totalorder %s16, 3
    %p158 = por %p156, %p157
    %p159 = scmp.ne.s32.totalorder %s148, %s149
    %p160 = scmp.eq.s32.totalorder %s16, 0
    %p161 = por %p159, %p160
    %p162 = scmp.ne.s32.totalorder %s148, %s149
    %p163 = scmp.eq.s32.totalorder %s17, 3
    %p164 = por %p162, %p163
    %p166 = scmp.ne.s32.totalorder %s149, %s165
    %p167 = scmp.eq.s32.totalorder %s17, 0
    %p168 = por %p166, %p167
    %p169 = scmp.le.s32.totalorder 1, %s11
    %p170 = scmp.lt.s32.totalorder %s11, 5
    %p171 = pnand %p169, %p170
    %p172 = pneg %p171
    // Predicated region
    $region9: #{tpu_custom_call.1} parent=5 // pred_check
      _
    $region10: #{tpu_custom_call.1} parent=5 // pred_check_branch
      %174 = sbr.rel (%p171) target = $region12
    $region11: #{tpu_custom_call.1} parent=5 // pred_region
      %s175 = ssub.s32 %s11, 1
      // Predicated region
      $region13: #{tpu_custom_call.1} parent=11 // pred_check
        %p176 = pneg %p70
      $region14: #{tpu_custom_call.1} parent=11 // pred_check_branch
        %178 = sbr.rel (%p176) target = $region16
      $region15: #{tpu_custom_call.1} parent=11 // pred_region
        _
      $region16: #{tpu_custom_call.1} parent=11 // pred_fallthru
        _
      // Predicated region
      $region17: #{tpu_custom_call.1} parent=11 // pred_check
        %p179 = pneg %p91
      $region18: #{tpu_custom_call.1} parent=11 // pred_check_branch
        %181 = sbr.rel (%p179) target = $region20
      $region19: #{tpu_custom_call.1} parent=11 // pred_region
        _
      $region20: #{tpu_custom_call.1} parent=11 // pred_fallthru
        _
      // Predicated region
      $region21: #{tpu_custom_call.1} parent=11 // pred_check
        %p182 = pneg %p112
      $region22: #{tpu_custom_call.1} parent=11 // pred_check_branch
        %184 = sbr.rel (%p182) target = $region24
      $region23: #{tpu_custom_call.1} parent=11 // pred_region
        _
      $region24: #{tpu_custom_call.1} parent=11 // pred_fallthru
        _
      // Predicated region
      $region25: #{tpu_custom_call.1} parent=11 // pred_check
        %p185 = pneg %p133
      $region26: #{tpu_custom_call.1} parent=11 // pred_check_branch
        %187 = sbr.rel (%p185) target = $region28
      $region27: #{tpu_custom_call.1} parent=11 // pred_region
        _
      $region28: #{tpu_custom_call.1} parent=11 // pred_fallthru
        _
    $region12: #{tpu_custom_call.1} parent=5 // pred_fallthru
      _
    %p188 = scmp.lt.s32.totalorder %s11, 4
    // Predicated region
    $region29: #{tpu_custom_call.1} parent=5 // pred_check
      %p189 = pneg %p188
    $region30: #{tpu_custom_call.1} parent=5 // pred_check_branch
      %191 = sbr.rel (%p189) target = $region32
    $region31: #{tpu_custom_call.1} parent=5 // pred_region
      // Predicated region
      $region33: #{tpu_custom_call.1} parent=31 // pred_check
        %p192 = pneg %p43
      $region34: #{tpu_custom_call.1} parent=31 // pred_check_branch
        %194 = sbr.rel (%p192) target = $region36
      $region35: #{tpu_custom_call.1} parent=31 // pred_region
        %p195 = scmp.lt.s32.totalorder %s18, 1
        %s196 = scalar_select %p195, %s18, 1
        %s197 = smul.addr %s196, 32
        %s198 = smul.addr %s197, 4
        %s199 = scalar_lea.vmem %s0, %s198
      $region36: #{tpu_custom_call.1} parent=31 // pred_fallthru
        _
    $region32: #{tpu_custom_call.1} parent=5 // pred_fallthru
      _
    %p200 = scmp.le.s32.totalorder 1, %s11
    %p201 = scmp.lt.s32.totalorder %s11, 5
    %p202 = pnand %p200, %p201
    %p203 = pneg %p202
    // Predicated region
    $region37: #{tpu_custom_call.1} parent=5 // pred_check
      _
    $region38: #{tpu_custom_call.1} parent=5 // pred_check_branch
      %205 = sbr.rel (%p202) target = $region40
    $region39: #{tpu_custom_call.1} parent=5 // pred_region
      %s206 = ssub.s32 %s11, 1
      %p207 = scmp.lt.s32.totalorder %s20, 1
      %s208 = scalar_select %p207, %s20, 1
      %s209 = smul.addr %s208, 32
      %s210 = smul.addr %s209, 4
      %s211 = scalar_lea.vmem %s0, %s210
      %p212 = pneg %p49
      %p213 = pneg %p46
      %p214 = pneg %p70
      %p215 = pneg %p67
      %p216 = pneg %p91
      %p217 = pneg %p88
      %p218 = pneg %p112
      %p219 = pneg %p109
      %p220 = pneg %p133
      %p221 = pneg %p130
      %p222 = pneg %p161
      %p223 = pneg %p158
      %s224 = smul.u32 16, %s21
      %p225 = scmp.lt.s32.totalorder %s20, 1
      %s226 = scalar_select %p225, %s20, 1
      %p227 = scmp.lt.s32.totalorder %s224, 31
      %s228 = scalar_select %p227, %s224, 31
      %s229 = smul.addr %s226, 32
      %s230 = sadd.s32 %s228, %s229
      %s231 = smul.addr %s230, 8
      %s232 = scalar_lea.vmem %s5, %s231
      %p233 = scmp.lt.s32.totalorder %s20, 1
      %s234 = scalar_select %p233, %s20, 1
      %s235 = smul.addr %s234, 32
      %s236 = smul.addr %s235, 4
      %s237 = scalar_lea.vmem %s0, %s236
      %s238 = smul.u32 16, %s21
      %p239 = scmp.lt.s32.totalorder %s20, 1
      %s240 = scalar_select %p239, %s20, 1
      %p241 = scmp.lt.s32.totalorder %s238, 31
      %s242 = scalar_select %p241, %s238, 31
      %s243 = smul.addr %s240, 32
      %s244 = sadd.s32 %s242, %s243
      %s245 = smul.addr %s244, 8
      %s246 = scalar_lea.vmem %s5, %s245
      %s247 = smul.u32 16, %s21
      %s249 = smul.u32 %s21, 8
      %vm250 = vcmask 24576
      %vm251 = vsmask.f32 256
      %vm252 = vmand %vm250, %vm251
      %v253 = vld [vmem:[#allocation2] sm:$0x1]
      %v254 = vsel %vm252, 0, %v253
      %255 = vst [vmem:[#allocation2] sm:$0x1] %v254
      %v256 = vld [vmem:[#allocation2 + $0xc] sm:$0x1]
      %v257 = vsel %vm252, 0, %v256
      %258 = vst [vmem:[#allocation2 + $0xc] sm:$0x1] %v257
      %v259 = vld [vmem:[#allocation2 + $0x18] sm:$0x1]
      %v260 = vsel %vm252, 0, %v259
      %261 = vst [vmem:[#allocation2 + $0x18] sm:$0x1] %v260
      %v262 = vld [vmem:[#allocation2 + $0x24] sm:$0x1]
      %v263 = vsel %vm252, 0, %v262
      %264 = vst [vmem:[#allocation2 + $0x24] sm:$0x1] %v263
      %v265 = vld [vmem:[#allocation2 + $0x30] sm:$0x1]
      %v266 = vsel %vm252, 0, %v265
      %267 = vst [vmem:[#allocation2 + $0x30] sm:$0x1] %v266
      %v268 = vld [vmem:[#allocation2 + $0x3c] sm:$0x1]
      %v269 = vsel %vm252, 0, %v268
      %270 = vst [vmem:[#allocation2 + $0x3c] sm:$0x1] %v269
      %v271 = vld [vmem:[#allocation2 + $0x48] sm:$0x1]
      %v272 = vsel %vm252, 0, %v271
      %273 = vst [vmem:[#allocation2 + $0x48] sm:$0x1] %v272
      %v274 = vld [vmem:[#allocation2 + $0x54] sm:$0x1]
      %v275 = vsel %vm252, 0, %v274
      %276 = vst [vmem:[#allocation2 + $0x54] sm:$0x1] %v275
      %v277 = vld [vmem:[#allocation2 + $0x60] sm:$0x1]
      %v278 = vsel %vm252, 0, %v277
      %279 = vst [vmem:[#allocation2 + $0x60] sm:$0x1] %v278
      %v280 = vld [vmem:[#allocation2 + $0x6c] sm:$0x1]
      %v281 = vsel %vm252, 0, %v280
      %282 = vst [vmem:[#allocation2 + $0x6c] sm:$0x1] %v281
      %v283 = vld [vmem:[#allocation2 + $0x78] sm:$0x1]
      %v284 = vsel %vm252, 0, %v283
      %285 = vst [vmem:[#allocation2 + $0x78] sm:$0x1] %v284
      %v286 = vld [vmem:[#allocation2 + $0x84] sm:$0x1]
      %v287 = vsel %vm252, 0, %v286
      %288 = vst [vmem:[#allocation2 + $0x84] sm:$0x1] %v287
      %vm289 = vsmask.f32 7938
      %vm290 = vmand %vm250, %vm289
      %v291 = vld [vmem:[#allocation2 + $0x8] sm:$0x1]
      %v292 = vsel %vm290, 0, %v291
      %293 = vst [vmem:[#allocation2 + $0x8] sm:$0x1] %v292
      %v294 = vld [vmem:[#allocation2 + $0x14] sm:$0x1]
      %v295 = vsel %vm290, 0, %v294
      %296 = vst [vmem:[#allocation2 + $0x14] sm:$0x1] %v295
      %v297 = vld [vmem:[#allocation2 + $0x20] sm:$0x1]
      %v298 = vsel %vm290, 0, %v297
      %299 = vst [vmem:[#allocation2 + $0x20] sm:$0x1] %v298
      %v300 = vld [vmem:[#allocation2 + $0x2c] sm:$0x1]
      %v301 = vsel %vm290, 0, %v300
      %302 = vst [vmem:[#allocation2 + $0x2c] sm:$0x1] %v301
      %v303 = vld [vmem:[#allocation2 + $0x38] sm:$0x1]
      %v304 = vsel %vm290, 0, %v303
      %305 = vst [vmem:[#allocation2 + $0x38] sm:$0x1] %v304
      %v306 = vld [vmem:[#allocation2 + $0x44] sm:$0x1]
      %v307 = vsel %vm290, 0, %v306
      %308 = vst [vmem:[#allocation2 + $0x44] sm:$0x1] %v307
      %v309 = vld [vmem:[#allocation2 + $0x50] sm:$0x1]
      %v310 = vsel %vm290, 0, %v309
      %311 = vst [vmem:[#allocation2 + $0x50] sm:$0x1] %v310
      %v312 = vld [vmem:[#allocation2 + $0x5c] sm:$0x1]
      %v313 = vsel %vm290, 0, %v312
      %314 = vst [vmem:[#allocation2 + $0x5c] sm:$0x1] %v313
      %v315 = vld [vmem:[#allocation2 + $0x68] sm:$0x1]
      %v316 = vsel %vm290, 0, %v315
      %317 = vst [vmem:[#allocation2 + $0x68] sm:$0x1] %v316
      %v318 = vld [vmem:[#allocation2 + $0x74] sm:$0x1]
      %v319 = vsel %vm290, 0, %v318
      %320 = vst [vmem:[#allocation2 + $0x74] sm:$0x1] %v319
      %v321 = vld [vmem:[#allocation2 + $0x80] sm:$0x1]
      %v322 = vsel %vm290, 0, %v321
      %323 = vst [vmem:[#allocation2 + $0x80] sm:$0x1] %v322
      %v324 = vld [vmem:[#allocation2 + $0x8c] sm:$0x1]
      %v325 = vsel %vm290, 0, %v324
      %326 = vst [vmem:[#allocation2 + $0x8c] sm:$0x1] %v325
      %s327 = smul.u32 %s249, 2
      %s328 = smul.addr %s327, 4
      %s329 = scalar_lea.vmem %s237, %s328
      %v330 = vld [vmem:[%s329] sm:$0xf]
      %v331 = vld [vmem:[%s329 + $0x4] sm:$0xf]
      %v332 = vld [vmem:[%s329 + $0x8] sm:$0xf]
      %v333 = vld [vmem:[%s329 + $0xc] sm:$0xf]
      %v334 = vld [vmem:[%s329 + $0x10] sm:$0xf]
      %v335 = vld [vmem:[%s329 + $0x14] sm:$0xf]
      %v336 = vld [vmem:[%s329 + $0x18] sm:$0xf]
      %v337 = vld [vmem:[%s329 + $0x1c] sm:$0xf]
      %v338 = vld [vmem:[%s329 + $0x20] sm:$0xf]
      %v339 = vld [vmem:[%s329 + $0x24] sm:$0xf]
      %v340 = vld [vmem:[%s329 + $0x28] sm:$0xf]
      %v341 = vld [vmem:[%s329 + $0x2c] sm:$0xf]
      %v342 = vld [vmem:[%s329 + $0x30] sm:$0xf]
      %v343 = vld [vmem:[%s329 + $0x34] sm:$0xf]
      %v344 = vld [vmem:[%s329 + $0x38] sm:$0xf]
      %v345 = vld [vmem:[%s329 + $0x3c] sm:$0xf]
      %vm346 = vsmask.f32 4368
      %vm347 = vmor %vm251, %vm346
      %v349 = vshrl.u32 %v330, 16
      %v351 = vrot.slane %v349, 7
      %v352 = vshll.u32 %v330, 16
      %v354 = vor.u32 %v351, %v352
      %v355 = vrot.slane %v351, 4
      %v357 = vshrl.u32 %v331, 16
      %v359 = vrot.slane %v357, 7
      %v360 = vshll.u32 %v331, 16
      %v362 = vor.u32 %v359, %v360
      %v363 = vsel %vm347, %v355, %v362
      %v364 = vrot.slane %v359, 4
      %v366 = vshrl.u32 %v332, 16
      %v368 = vrot.slane %v366, 7
      %v369 = vshll.u32 %v332, 16
      %v371 = vor.u32 %v368, %v369
      %v372 = vrot.slane %v368, 4
      %v374 = vshrl.u32 %v333, 16
      %v376 = vrot.slane %v374, 7
      %v377 = vshll.u32 %v333, 16
      %v379 = vor.u32 %v376, %v377
      %v380 = vsel %vm347, %v372, %v379
      %v381 = vrot.slane %v376, 4
      %v383 = vshrl.u32 %v334, 16
      %v385 = vrot.slane %v383, 7
      %v386 = vshll.u32 %v334, 16
      %v388 = vor.u32 %v385, %v386
      %v389 = vrot.slane %v385, 4
      %v391 = vshrl.u32 %v335, 16
      %v393 = vrot.slane %v391, 7
      %v394 = vshll.u32 %v335, 16
      %v396 = vor.u32 %v393, %v394
      %v397 = vsel %vm347, %v389, %v396
      %v398 = vrot.slane %v393, 4
      %v400 = vshrl.u32 %v336, 16
      %v402 = vrot.slane %v400, 7
      %v403 = vshll.u32 %v336, 16
      %v405 = vor.u32 %v402, %v403
      %v406 = vrot.slane %v402, 4
      %v408 = vshrl.u32 %v337, 16
      %v410 = vrot.slane %v408, 7
      %v411 = vshll.u32 %v337, 16
      %v413 = vor.u32 %v410, %v411
      %v414 = vsel %vm347, %v406, %v413
      %v415 = vrot.slane %v410, 4
      %v417 = vshrl.u32 %v338, 16
      %v419 = vrot.slane %v417, 7
      %v420 = vshll.u32 %v338, 16
      %v422 = vor.u32 %v419, %v420
      %v423 = vrot.slane %v419, 4
      %v425 = vshrl.u32 %v339, 16
      %v427 = vrot.slane %v425, 7
      %v428 = vshll.u32 %v339, 16
      %v430 = vor.u32 %v427, %v428
      %v431 = vsel %vm347, %v423, %v430
      %v432 = vrot.slane %v427, 4
      %v434 = vshrl.u32 %v340, 16
      %v436 = vrot.slane %v434, 7
      %v437 = vshll.u32 %v340, 16
      %v439 = vor.u32 %v436, %v437
      %v440 = vrot.slane %v436, 4
      %v442 = vshrl.u32 %v341, 16
      %v444 = vrot.slane %v442, 7
      %v445 = vshll.u32 %v341, 16
      %v447 = vor.u32 %v444, %v445
      %v448 = vsel %vm347, %v440, %v447
      %v449 = vrot.slane %v444, 4
      %v451 = vshrl.u32 %v342, 16
      %v453 = vrot.slane %v451, 7
      %v454 = vshll.u32 %v342, 16
      %v456 = vor.u32 %v453, %v454
      %v457 = vrot.slane %v453, 4
      %v459 = vshrl.u32 %v343, 16
      %v461 = vrot.slane %v459, 7
      %v462 = vshll.u32 %v343, 16
      %v464 = vor.u32 %v461, %v462
      %v465 = vsel %vm347, %v457, %v464
      %v466 = vrot.slane %v461, 4
      %v468 = vshrl.u32 %v344, 16
      %v470 = vrot.slane %v468, 7
      %v471 = vshll.u32 %v344, 16
      %v473 = vor.u32 %v470, %v471
      %v474 = vrot.slane %v470, 4
      %v476 = vshrl.u32 %v345, 16
      %v478 = vrot.slane %v476, 7
      %v479 = vshll.u32 %v345, 16
      %v481 = vor.u32 %v478, %v479
      %v482 = vsel %vm347, %v474, %v481
      %v483 = vrot.slane %v478, 4
      %s508 = scalar_lea.vmem [#allocation2], 24
      %vm509 = vcmask 27648
      %vm510 = vmand %vm509, %vm289
      %v511 = vld [vmem:[%s508] sm:$0xf]
      %v512 = vsel %vm510, %v354, %v511
      %513 = vst [vmem:[%s508] sm:$0xf] %v512
      %vm514 = vcmask 27648
      %515 = vst.msk [vmem:[%s508 + $0x4] sm:$0xf] %vm514, %v363
      %v516 = vld [vmem:[%s508 + $0x8] sm:$0x1]
      %v517 = vsel %vm252, %v364, %v516
      %518 = vst [vmem:[%s508 + $0x8] sm:$0x1] %v517
      %v519 = vld [vmem:[%s508 + $0xc] sm:$0xf]
      %v520 = vsel %vm510, %v371, %v519
      %521 = vst [vmem:[%s508 + $0xc] sm:$0xf] %v520
      %522 = vst.msk [vmem:[%s508 + $0x10] sm:$0xf] %vm514, %v380
      %v523 = vld [vmem:[%s508 + $0x14] sm:$0x1]
      %v524 = vsel %vm252, %v381, %v523
      %525 = vst [vmem:[%s508 + $0x14] sm:$0x1] %v524
      %v526 = vld [vmem:[%s508 + $0x18] sm:$0xf]
      %v527 = vsel %vm510, %v388, %v526
      %528 = vst [vmem:[%s508 + $0x18] sm:$0xf] %v527
      %529 = vst.msk [vmem:[%s508 + $0x1c] sm:$0xf] %vm514, %v397
      %v530 = vld [vmem:[%s508 + $0x20] sm:$0x1]
      %v531 = vsel %vm252, %v398, %v530
      %532 = vst [vmem:[%s508 + $0x20] sm:$0x1] %v531
      %v533 = vld [vmem:[%s508 + $0x24] sm:$0xf]
      %v534 = vsel %vm510, %v405, %v533
      %535 = vst [vmem:[%s508 + $0x24] sm:$0xf] %v534
      %536 = vst.msk [vmem:[%s508 + $0x28] sm:$0xf] %vm514, %v414
      %v537 = vld [vmem:[%s508 + $0x2c] sm:$0x1]
      %v538 = vsel %vm252, %v415, %v537
      %539 = vst [vmem:[%s508 + $0x2c] sm:$0x1] %v538
      %v540 = vld [vmem:[%s508 + $0x30] sm:$0xf]
      %v541 = vsel %vm510, %v422, %v540
      %542 = vst [vmem:[%s508 + $0x30] sm:$0xf] %v541
      %543 = vst.msk [vmem:[%s508 + $0x34] sm:$0xf] %vm514, %v431
      %v544 = vld [vmem:[%s508 + $0x38] sm:$0x1]
      %v545 = vsel %vm252, %v432, %v544
      %546 = vst [vmem:[%s508 + $0x38] sm:$0x1] %v545
      %v547 = vld [vmem:[%s508 + $0x3c] sm:$0xf]
      %v548 = vsel %vm510, %v439, %v547
      %549 = vst [vmem:[%s508 + $0x3c] sm:$0xf] %v548
      %550 = vst.msk [vmem:[%s508 + $0x40] sm:$0xf] %vm514, %v448
      %v551 = vld [vmem:[%s508 + $0x44] sm:$0x1]
      %v552 = vsel %vm252, %v449, %v551
      %553 = vst [vmem:[%s508 + $0x44] sm:$0x1] %v552
      %v554 = vld [vmem:[%s508 + $0x48] sm:$0xf]
      %v555 = vsel %vm510, %v456, %v554
      %556 = vst [vmem:[%s508 + $0x48] sm:$0xf] %v555
      %557 = vst.msk [vmem:[%s508 + $0x4c] sm:$0xf] %vm514, %v465
      %v558 = vld [vmem:[%s508 + $0x50] sm:$0x1]
      %v559 = vsel %vm252, %v466, %v558
      %560 = vst [vmem:[%s508 + $0x50] sm:$0x1] %v559
      %v561 = vld [vmem:[%s508 + $0x54] sm:$0xf]
      %v562 = vsel %vm510, %v473, %v561
      %563 = vst [vmem:[%s508 + $0x54] sm:$0xf] %v562
      %564 = vst.msk [vmem:[%s508 + $0x58] sm:$0xf] %vm514, %v482
      %v565 = vld [vmem:[%s508 + $0x5c] sm:$0x1]
      %v566 = vsel %vm252, %v483, %v565
      %567 = vst [vmem:[%s508 + $0x5c] sm:$0x1] %v566
      %s568 = sadd.s32 %s249, 4294967294
      %p569 = scmp.gt.s32.totalorder %s568, 0
      %s570 = scalar_select %p569, %s568, 0
      %p571 = scmp.lt.s32.totalorder %s570, 15
      %s572 = scalar_select %p571, %s570, 15
      %p573 = scmp.ge.s32.totalorder %s568, 0
      %p574 = scmp.lt.s32.totalorder %s568, 16
      %p575 = pnand %p573, %p574
      %p576 = pneg %p575
      %s577 = smul.u32 %s572, 2
      %s578 = smul.addr %s577, 4
      %s579 = scalar_lea.vmem %s237, %s578
      %v580 = vld [vmem:[%s579] sm:$0xf]
      %v581 = vld [vmem:[%s579 + $0x4] sm:$0xf]
      %s582 = scalar_select %p576, 1, 0
      %v583 = vstv %s582
      %vm584 = vcmp.eq.s32.totalorder %v583, 1
      %v585 = vsel %vm584, %v580, 0
      %v586 = vsel %vm584, %v581, 0
      %v588 = vshrl.u32 %v585, 16
      %v590 = vrot.slane %v588, 7
      %v591 = vshll.u32 %v585, 16
      %v593 = vor.u32 %v590, %v591
      %v594 = vrot.slane %v590, 4
      %v596 = vshrl.u32 %v586, 16
      %v598 = vrot.slane %v596, 7
      %v599 = vshll.u32 %v586, 16
      %v601 = vor.u32 %v598, %v599
      %v602 = vsel %vm347, %v594, %v601
      %v603 = vrot.slane %v598, 4
      %v607 = vld [vmem:[#allocation2] sm:$0xf]
      %v608 = vsel %vm510, %v593, %v607
      %609 = vst [vmem:[#allocation2] sm:$0xf] %v608
      %610 = vst.msk [vmem:[#allocation2 + $0x4] sm:$0xf] %vm514, %v602
      %v611 = vld [vmem:[#allocation2 + $0x8] sm:$0x1]
      %v612 = vsel %vm252, %v603, %v611
      %613 = vst [vmem:[#allocation2 + $0x8] sm:$0x1] %v612
      %s614 = sadd.s32 %s249, 4294967295
      %p615 = scmp.gt.s32.totalorder %s614, 0
      %s616 = scalar_select %p615, %s614, 0
      %p617 = scmp.lt.s32.totalorder %s616, 15
      %s618 = scalar_select %p617, %s616, 15
      %p619 = scmp.ge.s32.totalorder %s614, 0
      %p620 = scmp.lt.s32.totalorder %s614, 16
      %p621 = pnand %p619, %p620
      %p622 = pneg %p621
      %s623 = smul.u32 %s618, 2
      %s624 = smul.addr %s623, 4
      %s625 = scalar_lea.vmem %s237, %s624
      %v626 = vld [vmem:[%s625] sm:$0xf]
      %v627 = vld [vmem:[%s625 + $0x4] sm:$0xf]
      %s628 = scalar_select %p622, 1, 0
      %v629 = vstv %s628
      %vm630 = vcmp.eq.s32.totalorder %v629, 1
      %v631 = vsel %vm630, %v626, 0
      %v632 = vsel %vm630, %v627, 0
      %v634 = vshrl.u32 %v631, 16
      %v636 = vrot.slane %v634, 7
      %v637 = vshll.u32 %v631, 16
      %v639 = vor.u32 %v636, %v637
      %v640 = vrot.slane %v636, 4
      %v642 = vshrl.u32 %v632, 16
      %v644 = vrot.slane %v642, 7
      %v645 = vshll.u32 %v632, 16
      %v647 = vor.u32 %v644, %v645
      %v648 = vsel %vm347, %v640, %v647
      %v649 = vrot.slane %v644, 4
      %s653 = scalar_lea.vmem [#allocation2], 12
      %v654 = vld [vmem:[%s653] sm:$0xf]
      %v655 = vsel %vm510, %v639, %v654
      %656 = vst [vmem:[%s653] sm:$0xf] %v655
      %657 = vst.msk [vmem:[%s653 + $0x4] sm:$0xf] %vm514, %v648
      %v658 = vld [vmem:[%s653 + $0x8] sm:$0x1]
      %v659 = vsel %vm252, %v649, %v658
      %660 = vst [vmem:[%s653 + $0x8] sm:$0x1] %v659
      %s661 = sadd.s32 %s249, 8
      %p662 = scmp.gt.s32.totalorder %s661, 0
      %s663 = scalar_select %p662, %s661, 0
      %p664 = scmp.lt.s32.totalorder %s663, 15
      %s665 = scalar_select %p664, %s663, 15
      %p666 = scmp.ge.s32.totalorder %s661, 0
      %p667 = scmp.lt.s32.totalorder %s661, 16
      %p668 = pnand %p666, %p667
      %p669 = pneg %p668
      %s670 = smul.u32 %s665, 2
      %s671 = smul.addr %s670, 4
      %s672 = scalar_lea.vmem %s237, %s671
      %v673 = vld [vmem:[%s672] sm:$0xf]
      %v674 = vld [vmem:[%s672 + $0x4] sm:$0xf]
      %s675 = scalar_select %p669, 1, 0
      %v676 = vstv %s675
      %vm677 = vcmp.eq.s32.totalorder %v676, 1
      %v678 = vsel %vm677, %v673, 0
      %v679 = vsel %vm677, %v674, 0
      %v681 = vshrl.u32 %v678, 16
      %v683 = vrot.slane %v681, 7
      %v684 = vshll.u32 %v678, 16
      %v686 = vor.u32 %v683, %v684
      %v687 = vrot.slane %v683, 4
      %v689 = vshrl.u32 %v679, 16
      %v691 = vrot.slane %v689, 7
      %v692 = vshll.u32 %v679, 16
      %v694 = vor.u32 %v691, %v692
      %v695 = vsel %vm347, %v687, %v694
      %v696 = vrot.slane %v691, 4
      %s700 = scalar_lea.vmem [#allocation2], 120
      %v701 = vld [vmem:[%s700] sm:$0xf]
      %v702 = vsel %vm510, %v686, %v701
      %703 = vst [vmem:[%s700] sm:$0xf] %v702
      %704 = vst.msk [vmem:[%s700 + $0x4] sm:$0xf] %vm514, %v695
      %v705 = vld [vmem:[%s700 + $0x8] sm:$0x1]
      %v706 = vsel %vm252, %v696, %v705
      %707 = vst [vmem:[%s700 + $0x8] sm:$0x1] %v706
      %s708 = sadd.s32 %s249, 9
      %p709 = scmp.gt.s32.totalorder %s708, 0
      %s710 = scalar_select %p709, %s708, 0
      %p711 = scmp.lt.s32.totalorder %s710, 15
      %s712 = scalar_select %p711, %s710, 15
      %p713 = scmp.ge.s32.totalorder %s708, 0
      %p714 = scmp.lt.s32.totalorder %s708, 16
      %p715 = pnand %p713, %p714
      %p716 = pneg %p715
      %s717 = smul.u32 %s712, 2
      %s718 = smul.addr %s717, 4
      %s719 = scalar_lea.vmem %s237, %s718
      %v720 = vld [vmem:[%s719] sm:$0xf]
      %v721 = vld [vmem:[%s719 + $0x4] sm:$0xf]
      %s722 = scalar_select %p716, 1, 0
      %v723 = vstv %s722
      %vm724 = vcmp.eq.s32.totalorder %v723, 1
      %v725 = vsel %vm724, %v720, 0
      %v726 = vsel %vm724, %v721, 0
      %v728 = vshrl.u32 %v725, 16
      %v730 = vrot.slane %v728, 7
      %v731 = vshll.u32 %v725, 16
      %v733 = vor.u32 %v730, %v731
      %v734 = vrot.slane %v730, 4
      %v736 = vshrl.u32 %v726, 16
      %v738 = vrot.slane %v736, 7
      %v739 = vshll.u32 %v726, 16
      %v741 = vor.u32 %v738, %v739
      %v742 = vsel %vm347, %v734, %v741
      %v743 = vrot.slane %v738, 4
      %s747 = scalar_lea.vmem [#allocation2], 132
      %v748 = vld [vmem:[%s747] sm:$0xf]
      %v749 = vsel %vm510, %v733, %v748
      %750 = vst [vmem:[%s747] sm:$0xf] %v749
      %751 = vst.msk [vmem:[%s747 + $0x4] sm:$0xf] %vm514, %v742
      %v752 = vld [vmem:[%s747 + $0x8] sm:$0x1]
      %v753 = vsel %vm252, %v743, %v752
      %754 = vst [vmem:[%s747 + $0x8] sm:$0x1] %v753
      %v755 = vld [vmem:[#allocation2] sm:$0xf]
      %v756 = vld [vmem:[#allocation2 + $0x4] sm:$0xf]
      %v757 = vld [vmem:[#allocation2 + $0xc] sm:$0xf]
      %v758 = vld [vmem:[#allocation2 + $0x10] sm:$0xf]
      %v759 = vld [vmem:[#allocation2 + $0x18] sm:$0xf]
      %v760 = vld [vmem:[#allocation2 + $0x1c] sm:$0xf]
      %v761 = vld [vmem:[#allocation2 + $0x24] sm:$0xf]
      %v762 = vld [vmem:[#allocation2 + $0x28] sm:$0xf]
      %v763 = vld [vmem:[#allocation2 + $0x30] sm:$0xf]
      %v764 = vld [vmem:[#allocation2 + $0x34] sm:$0xf]
      %v765 = vld [vmem:[#allocation2 + $0x3c] sm:$0xf]
      %v766 = vld [vmem:[#allocation2 + $0x40] sm:$0xf]
      %v767 = vld [vmem:[#allocation2 + $0x48] sm:$0xf]
      %v768 = vld [vmem:[#allocation2 + $0x4c] sm:$0xf]
      %v769 = vld [vmem:[#allocation2 + $0x54] sm:$0xf]
      %v770 = vld [vmem:[#allocation2 + $0x58] sm:$0xf]
      %v771 = vld [vmem:[#allocation2 + $0x60] sm:$0xf]
      %v772 = vld [vmem:[#allocation2 + $0x64] sm:$0xf]
      %v773 = vld [vmem:[#allocation2 + $0x6c] sm:$0xf]
      %v774 = vld [vmem:[#allocation2 + $0x70] sm:$0xf]
      %775 = vst.msk [vmem:[#allocation3] sm:$0xf] %vm514, %v755
      %776 = vst.msk [vmem:[#allocation3 + $0x4] sm:$0xf] %vm514, %v756
      %777 = vst.msk [vmem:[#allocation3 + $0x8] sm:$0xf] %vm514, %v757
      %778 = vst.msk [vmem:[#allocation3 + $0xc] sm:$0xf] %vm514, %v758
      %779 = vst.msk [vmem:[#allocation3 + $0x10] sm:$0xf] %vm514, %v759
      %780 = vst.msk [vmem:[#allocation3 + $0x14] sm:$0xf] %vm514, %v760
      %781 = vst.msk [vmem:[#allocation3 + $0x18] sm:$0xf] %vm514, %v761
      %782 = vst.msk [vmem:[#allocation3 + $0x1c] sm:$0xf] %vm514, %v762
      %783 = vst.msk [vmem:[#allocation3 + $0x20] sm:$0xf] %vm514, %v763
      %784 = vst.msk [vmem:[#allocation3 + $0x24] sm:$0xf] %vm514, %v764
      %785 = vst.msk [vmem:[#allocation3 + $0x28] sm:$0xf] %vm514, %v765
      %786 = vst.msk [vmem:[#allocation3 + $0x2c] sm:$0xf] %vm514, %v766
      %787 = vst.msk [vmem:[#allocation3 + $0x30] sm:$0xf] %vm514, %v767
      %788 = vst.msk [vmem:[#allocation3 + $0x34] sm:$0xf] %vm514, %v768
      %789 = vst.msk [vmem:[#allocation3 + $0x38] sm:$0xf] %vm514, %v769
      %790 = vst.msk [vmem:[#allocation3 + $0x3c] sm:$0xf] %vm514, %v770
      %791 = vst.msk [vmem:[#allocation3 + $0x40] sm:$0xf] %vm514, %v771
      %792 = vst.msk [vmem:[#allocation3 + $0x44] sm:$0xf] %vm514, %v772
      %793 = vst.msk [vmem:[#allocation3 + $0x48] sm:$0xf] %vm514, %v773
      %794 = vst.msk [vmem:[#allocation3 + $0x4c] sm:$0xf] %vm514, %v774
      %v795 = vld [vmem:[#allocation2] sm:$0xf]
      %v796 = vld [vmem:[#allocation2 + $0x4] sm:$0xf]
      %v797 = vld [vmem:[#allocation2 + $0x8] sm:$0x1]
      %v798 = vld [vmem:[#allocation2 + $0xc] sm:$0xf]
      %v799 = vld [vmem:[#allocation2 + $0x10] sm:$0xf]
      %v800 = vld [vmem:[#allocation2 + $0x14] sm:$0x1]
      %v801 = vld [vmem:[#allocation2 + $0x18] sm:$0xf]
      %v802 = vld [vmem:[#allocation2 + $0x1c] sm:$0xf]
      %v803 = vld [vmem:[#allocation2 + $0x20] sm:$0x1]
      %v804 = vld [vmem:[#allocation2 + $0x24] sm:$0xf]
      %v805 = vld [vmem:[#allocation2 + $0x28] sm:$0xf]
      %v806 = vld [vmem:[#allocation2 + $0x2c] sm:$0x1]
      %v807 = vld [vmem:[#allocation2 + $0x30] sm:$0xf]
      %v808 = vld [vmem:[#allocation2 + $0x34] sm:$0xf]
      %v809 = vld [vmem:[#allocation2 + $0x38] sm:$0x1]
      %v810 = vld [vmem:[#allocation2 + $0x3c] sm:$0xf]
      %v811 = vld [vmem:[#allocation2 + $0x40] sm:$0xf]
      %v812 = vld [vmem:[#allocation2 + $0x44] sm:$0x1]
      %v813 = vld [vmem:[#allocation2 + $0x48] sm:$0xf]
      %v814 = vld [vmem:[#allocation2 + $0x4c] sm:$0xf]
      %v815 = vld [vmem:[#allocation2 + $0x50] sm:$0x1]
      %v816 = vld [vmem:[#allocation2 + $0x54] sm:$0xf]
      %v817 = vld [vmem:[#allocation2 + $0x58] sm:$0xf]
      %v818 = vld [vmem:[#allocation2 + $0x5c] sm:$0x1]
      %v819 = vld [vmem:[#allocation2 + $0x60] sm:$0xf]
      %v820 = vld [vmem:[#allocation2 + $0x64] sm:$0xf]
      %v821 = vld [vmem:[#allocation2 + $0x68] sm:$0x1]
      %v822 = vld [vmem:[#allocation2 + $0x6c] sm:$0xf]
      %v823 = vld [vmem:[#allocation2 + $0x70] sm:$0xf]
      %v824 = vld [vmem:[#allocation2 + $0x74] sm:$0x1]
      %vm825 = vsmask.f32 3328
      %vm826 = vsmask.f32 7440
      %vm827 = vmor %vm825, %vm826
      %v829 = vshrl.u32 %v795, 16
      %v831 = vrot.slane %v829, 4
      %v832 = vshll.u32 %v795, 16
      %v834 = vrot.slane %v832, 5
      %v835 = vor.u32 %v831, %v834
      %v836 = vrot.slane %v835, 4
      %v838 = vshll.u32 %v796, 16
      %v840 = vrot.slane %v838, 5
      %v841 = vsel %vm827, %v836, %v840
      %v842 = vshrl.u32 %v796, 16
      %v844 = vrot.slane %v842, 4
      %v845 = vor.u32 %v844, %v840
      %v846 = vrot.slane %v845, 4
      %v848 = vshll.u32 %v797, 16
      %v850 = vrot.slane %v848, 5
      %v851 = vsel %vm827, %v846, %v850
      %v853 = vshrl.u32 %v798, 16
      %v855 = vrot.slane %v853, 4
      %v856 = vshll.u32 %v798, 16
      %v858 = vrot.slane %v856, 5
      %v859 = vor.u32 %v855, %v858
      %v860 = vrot.slane %v859, 4
      %v862 = vshll.u32 %v799, 16
      %v864 = vrot.slane %v862, 5
      %v865 = vsel %vm827, %v860, %v864
      %v866 = vshrl.u32 %v799, 16
      %v868 = vrot.slane %v866, 4
      %v869 = vor.u32 %v868, %v864
      %v870 = vrot.slane %v869, 4
      %v872 = vshll.u32 %v800, 16
      %v874 = vrot.slane %v872, 5
      %v875 = vsel %vm827, %v870, %v874
      %v877 = vshrl.u32 %v801, 16
      %v879 = vrot.slane %v877, 4
      %v880 = vshll.u32 %v801, 16
      %v882 = vrot.slane %v880, 5
      %v883 = vor.u32 %v879, %v882
      %v884 = vrot.slane %v883, 4
      %v886 = vshll.u32 %v802, 16
      %v888 = vrot.slane %v886, 5
      %v889 = vsel %vm827, %v884, %v888
      %v890 = vshrl.u32 %v802, 16
      %v892 = vrot.slane %v890, 4
      %v893 = vor.u32 %v892, %v888
      %v894 = vrot.slane %v893, 4
      %v896 = vshll.u32 %v803, 16
      %v898 = vrot.slane %v896, 5
      %v899 = vsel %vm827, %v894, %v898
      %v901 = vshrl.u32 %v804, 16
      %v903 = vrot.slane %v901, 4
      %v904 = vshll.u32 %v804, 16
      %v906 = vrot.slane %v904, 5
      %v907 = vor.u32 %v903, %v906
      %v908 = vrot.slane %v907, 4
      %v910 = vshll.u32 %v805, 16
      %v912 = vrot.slane %v910, 5
      %v913 = vsel %vm827, %v908, %v912
      %v914 = vshrl.u32 %v805, 16
      %v916 = vrot.slane %v914, 4
      %v917 = vor.u32 %v916, %v912
      %v918 = vrot.slane %v917, 4
      %v920 = vshll.u32 %v806, 16
      %v922 = vrot.slane %v920, 5
      %v923 = vsel %vm827, %v918, %v922
      %v925 = vshrl.u32 %v807, 16
      %v927 = vrot.slane %v925, 4
      %v928 = vshll.u32 %v807, 16
      %v930 = vrot.slane %v928, 5
      %v931 = vor.u32 %v927, %v930
      %v932 = vrot.slane %v931, 4
      %v934 = vshll.u32 %v808, 16
      %v936 = vrot.slane %v934, 5
      %v937 = vsel %vm827, %v932, %v936
      %v938 = vshrl.u32 %v808, 16
      %v940 = vrot.slane %v938, 4
      %v941 = vor.u32 %v940, %v936
      %v942 = vrot.slane %v941, 4
      %v944 = vshll.u32 %v809, 16
      %v946 = vrot.slane %v944, 5
      %v947 = vsel %vm827, %v942, %v946
      %v949 = vshrl.u32 %v810, 16
      %v951 = vrot.slane %v949, 4
      %v952 = vshll.u32 %v810, 16
      %v954 = vrot.slane %v952, 5
      %v955 = vor.u32 %v951, %v954
      %v956 = vrot.slane %v955, 4
      %v958 = vshll.u32 %v811, 16
      %v960 = vrot.slane %v958, 5
      %v961 = vsel %vm827, %v956, %v960
      %v962 = vshrl.u32 %v811, 16
      %v964 = vrot.slane %v962, 4
      %v965 = vor.u32 %v964, %v960
      %v966 = vrot.slane %v965, 4
      %v968 = vshll.u32 %v812, 16
      %v970 = vrot.slane %v968, 5
      %v971 = vsel %vm827, %v966, %v970
      %v973 = vshrl.u32 %v813, 16
      %v975 = vrot.slane %v973, 4
      %v976 = vshll.u32 %v813, 16
      %v978 = vrot.slane %v976, 5
      %v979 = vor.u32 %v975, %v978
      %v980 = vrot.slane %v979, 4
      %v982 = vshll.u32 %v814, 16
      %v984 = vrot.slane %v982, 5
      %v985 = vsel %vm827, %v980, %v984
      %v986 = vshrl.u32 %v814, 16
      %v988 = vrot.slane %v986, 4
      %v989 = vor.u32 %v988, %v984
      %v990 = vrot.slane %v989, 4
      %v992 = vshll.u32 %v815, 16
      %v994 = vrot.slane %v992, 5
      %v995 = vsel %vm827, %v990, %v994
      %v997 = vshrl.u32 %v816, 16
      %v999 = vrot.slane %v997, 4
      %v1000 = vshll.u32 %v816, 16
      %v1002 = vrot.slane %v1000, 5
      %v1003 = vor.u32 %v999, %v1002
      %v1004 = vrot.slane %v1003, 4
      %v1006 = vshll.u32 %v817, 16
      %v1008 = vrot.slane %v1006, 5
      %v1009 = vsel %vm827, %v1004, %v1008
      %v1010 = vshrl.u32 %v817, 16
      %v1012 = vrot.slane %v1010, 4
      %v1013 = vor.u32 %v1012, %v1008
      %v1014 = vrot.slane %v1013, 4
      %v1016 = vshll.u32 %v818, 16
      %v1018 = vrot.slane %v1016, 5
      %v1019 = vsel %vm827, %v1014, %v1018
      %v1021 = vshrl.u32 %v819, 16
      %v1023 = vrot.slane %v1021, 4
      %v1024 = vshll.u32 %v819, 16
      %v1026 = vrot.slane %v1024, 5
      %v1027 = vor.u32 %v1023, %v1026
      %v1028 = vrot.slane %v1027, 4
      %v1030 = vshll.u32 %v820, 16
      %v1032 = vrot.slane %v1030, 5
      %v1033 = vsel %vm827, %v1028, %v1032
      %v1034 = vshrl.u32 %v820, 16
      %v1036 = vrot.slane %v1034, 4
      %v1037 = vor.u32 %v1036, %v1032
      %v1038 = vrot.slane %v1037, 4
      %v1040 = vshll.u32 %v821, 16
      %v1042 = vrot.slane %v1040, 5
      %v1043 = vsel %vm827, %v1038, %v1042
      %v1045 = vshrl.u32 %v822, 16
      %v1047 = vrot.slane %v1045, 4
      %v1048 = vshll.u32 %v822, 16
      %v1050 = vrot.slane %v1048, 5
      %v1051 = vor.u32 %v1047, %v1050
      %v1052 = vrot.slane %v1051, 4
      %v1054 = vshll.u32 %v823, 16
      %v1056 = vrot.slane %v1054, 5
      %v1057 = vsel %vm827, %v1052, %v1056
      %v1058 = vshrl.u32 %v823, 16
      %v1060 = vrot.slane %v1058, 4
      %v1061 = vor.u32 %v1060, %v1056
      %v1062 = vrot.slane %v1061, 4
      %v1064 = vshll.u32 %v824, 16
      %v1066 = vrot.slane %v1064, 5
      %v1067 = vsel %vm827, %v1062, %v1066
      %1068 = vrot.lane.b32.xlu0 %v841, 4
      %v1069 = vpop.permute.xlu0 %1068
      %1070 = vrot.lane.b32.xlu0 %v851, 4
      %v1071 = vpop.permute.xlu0 %1070
      %1072 = vrot.lane.b32.xlu0 %v865, 4
      %v1073 = vpop.permute.xlu0 %1072
      %1074 = vrot.lane.b32.xlu0 %v875, 4
      %v1075 = vpop.permute.xlu0 %1074
      %1076 = vrot.lane.b32.xlu0 %v889, 4
      %v1077 = vpop.permute.xlu0 %1076
      %1078 = vrot.lane.b32.xlu0 %v899, 4
      %v1079 = vpop.permute.xlu0 %1078
      %1080 = vrot.lane.b32.xlu0 %v913, 4
      %v1081 = vpop.permute.xlu0 %1080
      %1082 = vrot.lane.b32.xlu0 %v923, 4
      %v1083 = vpop.permute.xlu0 %1082
      %1084 = vrot.lane.b32.xlu0 %v937, 4
      %v1085 = vpop.permute.xlu0 %1084
      %1086 = vrot.lane.b32.xlu0 %v947, 4
      %v1087 = vpop.permute.xlu0 %1086
      %1088 = vrot.lane.b32.xlu0 %v961, 4
      %v1089 = vpop.permute.xlu0 %1088
      %1090 = vrot.lane.b32.xlu0 %v971, 4
      %v1091 = vpop.permute.xlu0 %1090
      %1092 = vrot.lane.b32.xlu0 %v985, 4
      %v1093 = vpop.permute.xlu0 %1092
      %1094 = vrot.lane.b32.xlu0 %v995, 4
      %v1095 = vpop.permute.xlu0 %1094
      %1096 = vrot.lane.b32.xlu0 %v1009, 4
      %v1097 = vpop.permute.xlu0 %1096
      %1098 = vrot.lane.b32.xlu0 %v1019, 4
      %v1099 = vpop.permute.xlu0 %1098
      %1100 = vrot.lane.b32.xlu0 %v1033, 4
      %v1101 = vpop.permute.xlu0 %1100
      %1102 = vrot.lane.b32.xlu0 %v1043, 4
      %v1103 = vpop.permute.xlu0 %1102
      %1104 = vrot.lane.b32.xlu0 %v1057, 4
      %v1105 = vpop.permute.xlu0 %1104
      %1106 = vrot.lane.b32.xlu0 %v1067, 4
      %v1107 = vpop.permute.xlu0 %1106
      %vm1128 = vcmask 60448
      %1129 = vst.msk [vmem:[#allocation3] sm:$0xf] %vm1128, %v1069
      %1130 = vst.msk [vmem:[#allocation3 + $0x4] sm:$0xf] %vm1128, %v1071
      %1131 = vst.msk [vmem:[#allocation3 + $0x8] sm:$0xf] %vm1128, %v1073
      %1132 = vst.msk [vmem:[#allocation3 + $0xc] sm:$0xf] %vm1128, %v1075
      %1133 = vst.msk [vmem:[#allocation3 + $0x10] sm:$0xf] %vm1128, %v1077
      %1134 = vst.msk [vmem:[#allocation3 + $0x14] sm:$0xf] %vm1128, %v1079
      %1135 = vst.msk [vmem:[#allocation3 + $0x18] sm:$0xf] %vm1128, %v1081
      %1136 = vst.msk [vmem:[#allocation3 + $0x1c] sm:$0xf] %vm1128, %v1083
      %1137 = vst.msk [vmem:[#allocation3 + $0x20] sm:$0xf] %vm1128, %v1085
      %1138 = vst.msk [vmem:[#allocation3 + $0x24] sm:$0xf] %vm1128, %v1087
      %1139 = vst.msk [vmem:[#allocation3 + $0x28] sm:$0xf] %vm1128, %v1089
      %1140 = vst.msk [vmem:[#allocation3 + $0x2c] sm:$0xf] %vm1128, %v1091
      %1141 = vst.msk [vmem:[#allocation3 + $0x30] sm:$0xf] %vm1128, %v1093
      %1142 = vst.msk [vmem:[#allocation3 + $0x34] sm:$0xf] %vm1128, %v1095
      %1143 = vst.msk [vmem:[#allocation3 + $0x38] sm:$0xf] %vm1128, %v1097
      %1144 = vst.msk [vmem:[#allocation3 + $0x3c] sm:$0xf] %vm1128, %v1099
      %1145 = vst.msk [vmem:[#allocation3 + $0x40] sm:$0xf] %vm1128, %v1101
      %1146 = vst.msk [vmem:[#allocation3 + $0x44] sm:$0xf] %vm1128, %v1103
      %1147 = vst.msk [vmem:[#allocation3 + $0x48] sm:$0xf] %vm1128, %v1105
      %1148 = vst.msk [vmem:[#allocation3 + $0x4c] sm:$0xf] %vm1128, %v1107
      %v1149 = vld [vmem:[#allocation2] sm:$0xe]
      %v1150 = vld [vmem:[#allocation2 + $0x4] sm:$0xf]
      %v1151 = vld [vmem:[#allocation2 + $0x8] sm:$0x1]
      %v1152 = vld [vmem:[#allocation2 + $0xc] sm:$0xe]
      %v1153 = vld [vmem:[#allocation2 + $0x10] sm:$0xf]
      %v1154 = vld [vmem:[#allocation2 + $0x14] sm:$0x1]
      %v1155 = vld [vmem:[#allocation2 + $0x18] sm:$0xe]
      %v1156 = vld [vmem:[#allocation2 + $0x1c] sm:$0xf]
      %v1157 = vld [vmem:[#allocation2 + $0x20] sm:$0x1]
      %v1158 = vld [vmem:[#allocation2 + $0x24] sm:$0xe]
      %v1159 = vld [vmem:[#allocation2 + $0x28] sm:$0xf]
      %v1160 = vld [vmem:[#allocation2 + $0x2c] sm:$0x1]
      %v1161 = vld [vmem:[#allocation2 + $0x30] sm:$0xe]
      %v1162 = vld [vmem:[#allocation2 + $0x34] sm:$0xf]
      %v1163 = vld [vmem:[#allocation2 + $0x38] sm:$0x1]
      %v1164 = vld [vmem:[#allocation2 + $0x3c] sm:$0xe]
      %v1165 = vld [vmem:[#allocation2 + $0x40] sm:$0xf]
      %v1166 = vld [vmem:[#allocation2 + $0x44] sm:$0x1]
      %v1167 = vld [vmem:[#allocation2 + $0x48] sm:$0xe]
      %v1168 = vld [vmem:[#allocation2 + $0x4c] sm:$0xf]
      %v1169 = vld [vmem:[#allocation2 + $0x50] sm:$0x1]
      %v1170 = vld [vmem:[#allocation2 + $0x54] sm:$0xe]
      %v1171 = vld [vmem:[#allocation2 + $0x58] sm:$0xf]
      %v1172 = vld [vmem:[#allocation2 + $0x5c] sm:$0x1]
      %v1173 = vld [vmem:[#allocation2 + $0x60] sm:$0xe]
      %v1174 = vld [vmem:[#allocation2 + $0x64] sm:$0xf]
      %v1175 = vld [vmem:[#allocation2 + $0x68] sm:$0x1]
      %v1176 = vld [vmem:[#allocation2 + $0x6c] sm:$0xe]
      %v1177 = vld [vmem:[#allocation2 + $0x70] sm:$0xf]
      %v1178 = vld [vmem:[#allocation2 + $0x74] sm:$0x1]
      %vm1209 = vcmask 1042432
      %vm1210 = vcmask 1046532
      %vm1211 = vmor %vm1209, %vm1210
      %v1212 = vrot.slane %v1149, 5
      %v1213 = vrot.slane %v1212, 4
      %v1214 = vrot.slane %v1150, 5
      %v1215 = vsel %vm1211, %v1213, %v1214
      %v1216 = vrot.slane %v1214, 4
      %v1217 = vrot.slane %v1151, 5
      %v1218 = vsel %vm1211, %v1216, %v1217
      %v1219 = vrot.slane %v1152, 5
      %v1220 = vrot.slane %v1219, 4
      %v1221 = vrot.slane %v1153, 5
      %v1222 = vsel %vm1211, %v1220, %v1221
      %v1223 = vrot.slane %v1221, 4
      %v1224 = vrot.slane %v1154, 5
      %v1225 = vsel %vm1211, %v1223, %v1224
      %v1226 = vrot.slane %v1155, 5
      %v1227 = vrot.slane %v1226, 4
      %v1228 = vrot.slane %v1156, 5
      %v1229 = vsel %vm1211, %v1227, %v1228
      %v1230 = vrot.slane %v1228, 4
      %v1231 = vrot.slane %v1157, 5
      %v1232 = vsel %vm1211, %v1230, %v1231
      %v1233 = vrot.slane %v1158, 5
      %v1234 = vrot.slane %v1233, 4
      %v1235 = vrot.slane %v1159, 5
      %v1236 = vsel %vm1211, %v1234, %v1235
      %v1237 = vrot.slane %v1235, 4
      %v1238 = vrot.slane %v1160, 5
      %v1239 = vsel %vm1211, %v1237, %v1238
      %v1240 = vrot.slane %v1161, 5
      %v1241 = vrot.slane %v1240, 4
      %v1242 = vrot.slane %v1162, 5
      %v1243 = vsel %vm1211, %v1241, %v1242
      %v1244 = vrot.slane %v1242, 4
      %v1245 = vrot.slane %v1163, 5
      %v1246 = vsel %vm1211, %v1244, %v1245
      %v1247 = vrot.slane %v1164, 5
      %v1248 = vrot.slane %v1247, 4
      %v1249 = vrot.slane %v1165, 5
      %v1250 = vsel %vm1211, %v1248, %v1249
      %v1251 = vrot.slane %v1249, 4
      %v1252 = vrot.slane %v1166, 5
      %v1253 = vsel %vm1211, %v1251, %v1252
      %v1254 = vrot.slane %v1167, 5
      %v1255 = vrot.slane %v1254, 4
      %v1256 = vrot.slane %v1168, 5
      %v1257 = vsel %vm1211, %v1255, %v1256
      %v1258 = vrot.slane %v1256, 4
      %v1259 = vrot.slane %v1169, 5
      %v1260 = vsel %vm1211, %v1258, %v1259
      %v1261 = vrot.slane %v1170, 5
      %v1262 = vrot.slane %v1261, 4
      %v1263 = vrot.slane %v1171, 5
      %v1264 = vsel %vm1211, %v1262, %v1263
      %v1265 = vrot.slane %v1263, 4
      %v1266 = vrot.slane %v1172, 5
      %v1267 = vsel %vm1211, %v1265, %v1266
      %v1268 = vrot.slane %v1173, 5
      %v1269 = vrot.slane %v1268, 4
      %v1270 = vrot.slane %v1174, 5
      %v1271 = vsel %vm1211, %v1269, %v1270
      %v1272 = vrot.slane %v1270, 4
      %v1273 = vrot.slane %v1175, 5
      %v1274 = vsel %vm1211, %v1272, %v1273
      %v1275 = vrot.slane %v1176, 5
      %v1276 = vrot.slane %v1275, 4
      %v1277 = vrot.slane %v1177, 5
      %v1278 = vsel %vm1211, %v1276, %v1277
      %v1279 = vrot.slane %v1277, 4
      %v1280 = vrot.slane %v1178, 5
      %v1281 = vsel %vm1211, %v1279, %v1280
      %1282 = vrot.lane.b32.xlu0 %v1215, 8
      %v1283 = vpop.permute.xlu0 %1282
      %1284 = vrot.lane.b32.xlu0 %v1218, 8
      %v1285 = vpop.permute.xlu0 %1284
      %1286 = vrot.lane.b32.xlu0 %v1222, 8
      %v1287 = vpop.permute.xlu0 %1286
      %1288 = vrot.lane.b32.xlu0 %v1225, 8
      %v1289 = vpop.permute.xlu0 %1288
      %1290 = vrot.lane.b32.xlu0 %v1229, 8
      %v1291 = vpop.permute.xlu0 %1290
      %1292 = vrot.lane.b32.xlu0 %v1232, 8
      %v1293 = vpop.permute.xlu0 %1292
      %1294 = vrot.lane.b32.xlu0 %v1236, 8
      %v1295 = vpop.permute.xlu0 %1294
      %1296 = vrot.lane.b32.xlu0 %v1239, 8
      %v1297 = vpop.permute.xlu0 %1296
      %1298 = vrot.lane.b32.xlu0 %v1243, 8
      %v1299 = vpop.permute.xlu0 %1298
      %1300 = vrot.lane.b32.xlu0 %v1246, 8
      %v1301 = vpop.permute.xlu0 %1300
      %1302 = vrot.lane.b32.xlu0 %v1250, 8
      %v1303 = vpop.permute.xlu0 %1302
      %1304 = vrot.lane.b32.xlu0 %v1253, 8
      %v1305 = vpop.permute.xlu0 %1304
      %1306 = vrot.lane.b32.xlu0 %v1257, 8
      %v1307 = vpop.permute.xlu0 %1306
      %1308 = vrot.lane.b32.xlu0 %v1260, 8
      %v1309 = vpop.permute.xlu0 %1308
      %1310 = vrot.lane.b32.xlu0 %v1264, 8
      %v1311 = vpop.permute.xlu0 %1310
      %1312 = vrot.lane.b32.xlu0 %v1267, 8
      %v1313 = vpop.permute.xlu0 %1312
      %1314 = vrot.lane.b32.xlu0 %v1271, 8
      %v1315 = vpop.permute.xlu0 %1314
      %1316 = vrot.lane.b32.xlu0 %v1274, 8
      %v1317 = vpop.permute.xlu0 %1316
      %1318 = vrot.lane.b32.xlu0 %v1278, 8
      %v1319 = vpop.permute.xlu0 %1318
      %1320 = vrot.lane.b32.xlu0 %v1281, 8
      %v1321 = vpop.permute.xlu0 %1320
      %vm1342 = vcmask 93248
      %1343 = vst.msk [vmem:[#allocation3] sm:$0xf] %vm1342, %v1283
      %1344 = vst.msk [vmem:[#allocation3 + $0x4] sm:$0xf] %vm1342, %v1285
      %1345 = vst.msk [vmem:[#allocation3 + $0x8] sm:$0xf] %vm1342, %v1287
      %1346 = vst.msk [vmem:[#allocation3 + $0xc] sm:$0xf] %vm1342, %v1289
      %1347 = vst.msk [vmem:[#allocation3 + $0x10] sm:$0xf] %vm1342, %v1291
      %1348 = vst.msk [vmem:[#allocation3 + $0x14] sm:$0xf] %vm1342, %v1293
      %1349 = vst.msk [vmem:[#allocation3 + $0x18] sm:$0xf] %vm1342, %v1295
      %1350 = vst.msk [vmem:[#allocation3 + $0x1c] sm:$0xf] %vm1342, %v1297
      %1351 = vst.msk [vmem:[#allocation3 + $0x20] sm:$0xf] %vm1342, %v1299
      %1352 = vst.msk [vmem:[#allocation3 + $0x24] sm:$0xf] %vm1342, %v1301
      %1353 = vst.msk [vmem:[#allocation3 + $0x28] sm:$0xf] %vm1342, %v1303
      %1354 = vst.msk [vmem:[#allocation3 + $0x2c] sm:$0xf] %vm1342, %v1305
      %1355 = vst.msk [vmem:[#allocation3 + $0x30] sm:$0xf] %vm1342, %v1307
      %1356 = vst.msk [vmem:[#allocation3 + $0x34] sm:$0xf] %vm1342, %v1309
      %1357 = vst.msk [vmem:[#allocation3 + $0x38] sm:$0xf] %vm1342, %v1311
      %1358 = vst.msk [vmem:[#allocation3 + $0x3c] sm:$0xf] %vm1342, %v1313
      %1359 = vst.msk [vmem:[#allocation3 + $0x40] sm:$0xf] %vm1342, %v1315
      %1360 = vst.msk [vmem:[#allocation3 + $0x44] sm:$0xf] %vm1342, %v1317
      %1361 = vst.msk [vmem:[#allocation3 + $0x48] sm:$0xf] %vm1342, %v1319
      %1362 = vst.msk [vmem:[#allocation3 + $0x4c] sm:$0xf] %vm1342, %v1321
      %v1363 = vld [vmem:[%s653] sm:$0xf]
      %v1364 = vld [vmem:[%s653 + $0x4] sm:$0xf]
      %v1365 = vld [vmem:[%s653 + $0xc] sm:$0xf]
      %v1366 = vld [vmem:[%s653 + $0x10] sm:$0xf]
      %v1367 = vld [vmem:[%s653 + $0x18] sm:$0xf]
      %v1368 = vld [vmem:[%s653 + $0x1c] sm:$0xf]
      %v1369 = vld [vmem:[%s653 + $0x24] sm:$0xf]
      %v1370 = vld [vmem:[%s653 + $0x28] sm:$0xf]
      %v1371 = vld [vmem:[%s653 + $0x30] sm:$0xf]
      %v1372 = vld [vmem:[%s653 + $0x34] sm:$0xf]
      %v1373 = vld [vmem:[%s653 + $0x3c] sm:$0xf]
      %v1374 = vld [vmem:[%s653 + $0x40] sm:$0xf]
      %v1375 = vld [vmem:[%s653 + $0x48] sm:$0xf]
      %v1376 = vld [vmem:[%s653 + $0x4c] sm:$0xf]
      %v1377 = vld [vmem:[%s653 + $0x54] sm:$0xf]
      %v1378 = vld [vmem:[%s653 + $0x58] sm:$0xf]
      %v1379 = vld [vmem:[%s653 + $0x60] sm:$0xf]
      %v1380 = vld [vmem:[%s653 + $0x64] sm:$0xf]
      %v1381 = vld [vmem:[%s653 + $0x6c] sm:$0xf]
      %v1382 = vld [vmem:[%s653 + $0x70] sm:$0xf]
      %1403 = vrot.lane.b32.xlu0 %v1363, 12
      %v1404 = vpop.permute.xlu0 %1403
      %1405 = vrot.lane.b32.xlu0 %v1364, 12
      %v1406 = vpop.permute.xlu0 %1405
      %1407 = vrot.lane.b32.xlu0 %v1365, 12
      %v1408 = vpop.permute.xlu0 %1407
      %1409 = vrot.lane.b32.xlu0 %v1366, 12
      %v1410 = vpop.permute.xlu0 %1409
      %1411 = vrot.lane.b32.xlu0 %v1367, 12
      %v1412 = vpop.permute.xlu0 %1411
      %1413 = vrot.lane.b32.xlu0 %v1368, 12
      %v1414 = vpop.permute.xlu0 %1413
      %1415 = vrot.lane.b32.xlu0 %v1369, 12
      %v1416 = vpop.permute.xlu0 %1415
      %1417 = vrot.lane.b32.xlu0 %v1370, 12
      %v1418 = vpop.permute.xlu0 %1417
      %1419 = vrot.lane.b32.xlu0 %v1371, 12
      %v1420 = vpop.permute.xlu0 %1419
      %1421 = vrot.lane.b32.xlu0 %v1372, 12
      %v1422 = vpop.permute.xlu0 %1421
      %1423 = vrot.lane.b32.xlu0 %v1373, 12
      %v1424 = vpop.permute.xlu0 %1423
      %1425 = vrot.lane.b32.xlu0 %v1374, 12
      %v1426 = vpop.permute.xlu0 %1425
      %1427 = vrot.lane.b32.xlu0 %v1375, 12
      %v1428 = vpop.permute.xlu0 %1427
      %1429 = vrot.lane.b32.xlu0 %v1376, 12
      %v1430 = vpop.permute.xlu0 %1429
      %1431 = vrot.lane.b32.xlu0 %v1377, 12
      %v1432 = vpop.permute.xlu0 %1431
      %1433 = vrot.lane.b32.xlu0 %v1378, 12
      %v1434 = vpop.permute.xlu0 %1433
      %1435 = vrot.lane.b32.xlu0 %v1379, 12
      %v1436 = vpop.permute.xlu0 %1435
      %1437 = vrot.lane.b32.xlu0 %v1380, 12
      %v1438 = vpop.permute.xlu0 %1437
      %1439 = vrot.lane.b32.xlu0 %v1381, 12
      %v1440 = vpop.permute.xlu0 %1439
      %1441 = vrot.lane.b32.xlu0 %v1382, 12
      %v1442 = vpop.permute.xlu0 %1441
      %vm1463 = vcmask 126048
      %1464 = vst.msk [vmem:[#allocation3] sm:$0xf] %vm1463, %v1404
      %1465 = vst.msk [vmem:[#allocation3 + $0x4] sm:$0xf] %vm1463, %v1406
      %1466 = vst.msk [vmem:[#allocation3 + $0x8] sm:$0xf] %vm1463, %v1408
      %1467 = vst.msk [vmem:[#allocation3 + $0xc] sm:$0xf] %vm1463, %v1410
      %1468 = vst.msk [vmem:[#allocation3 + $0x10] sm:$0xf] %vm1463, %v1412
      %1469 = vst.msk [vmem:[#allocation3 + $0x14] sm:$0xf] %vm1463, %v1414
      %1470 = vst.msk [vmem:[#allocation3 + $0x18] sm:$0xf] %vm1463, %v1416
      %1471 = vst.msk [vmem:[#allocation3 + $0x1c] sm:$0xf] %vm1463, %v1418
      %1472 = vst.msk [vmem:[#allocation3 + $0x20] sm:$0xf] %vm1463, %v1420
      %1473 = vst.msk [vmem:[#allocation3 + $0x24] sm:$0xf] %vm1463, %v1422
      %1474 = vst.msk [vmem:[#allocation3 + $0x28] sm:$0xf] %vm1463, %v1424
      %1475 = vst.msk [vmem:[#allocation3 + $0x2c] sm:$0xf] %vm1463, %v1426
      %1476 = vst.msk [vmem:[#allocation3 + $0x30] sm:$0xf] %vm1463, %v1428
      %1477 = vst.msk [vmem:[#allocation3 + $0x34] sm:$0xf] %vm1463, %v1430
      %1478 = vst.msk [vmem:[#allocation3 + $0x38] sm:$0xf] %vm1463, %v1432
      %1479 = vst.msk [vmem:[#allocation3 + $0x3c] sm:$0xf] %vm1463, %v1434
      %1480 = vst.msk [vmem:[#allocation3 + $0x40] sm:$0xf] %vm1463, %v1436
      %1481 = vst.msk [vmem:[#allocation3 + $0x44] sm:$0xf] %vm1463, %v1438
      %1482 = vst.msk [vmem:[#allocation3 + $0x48] sm:$0xf] %vm1463, %v1440
      %1483 = vst.msk [vmem:[#allocation3 + $0x4c] sm:$0xf] %vm1463, %v1442
      %v1484 = vld [vmem:[%s653] sm:$0xf]
      %v1485 = vld [vmem:[%s653 + $0x4] sm:$0xf]
      %v1486 = vld [vmem:[%s653 + $0x8] sm:$0x1]
      %v1487 = vld [vmem:[%s653 + $0xc] sm:$0xf]
      %v1488 = vld [vmem:[%s653 + $0x10] sm:$0xf]
      %v1489 = vld [vmem:[%s653 + $0x14] sm:$0x1]
      %v1490 = vld [vmem:[%s653 + $0x18] sm:$0xf]
      %v1491 = vld [vmem:[%s653 + $0x1c] sm:$0xf]
      %v1492 = vld [vmem:[%s653 + $0x20] sm:$0x1]
      %v1493 = vld [vmem:[%s653 + $0x24] sm:$0xf]
      %v1494 = vld [vmem:[%s653 + $0x28] sm:$0xf]
      %v1495 = vld [vmem:[%s653 + $0x2c] sm:$0x1]
      %v1496 = vld [vmem:[%s653 + $0x30] sm:$0xf]
      %v1497 = vld [vmem:[%s653 + $0x34] sm:$0xf]
      %v1498 = vld [vmem:[%s653 + $0x38] sm:$0x1]
      %v1499 = vld [vmem:[%s653 + $0x3c] sm:$0xf]
      %v1500 = vld [vmem:[%s653 + $0x40] sm:$0xf]
      %v1501 = vld [vmem:[%s653 + $0x44] sm:$0x1]
      %v1502 = vld [vmem:[%s653 + $0x48] sm:$0xf]
      %v1503 = vld [vmem:[%s653 + $0x4c] sm:$0xf]
      %v1504 = vld [vmem:[%s653 + $0x50] sm:$0x1]
      %v1505 = vld [vmem:[%s653 + $0x54] sm:$0xf]
      %v1506 = vld [vmem:[%s653 + $0x58] sm:$0xf]
      %v1507 = vld [vmem:[%s653 + $0x5c] sm:$0x1]
      %v1508 = vld [vmem:[%s653 + $0x60] sm:$0xf]
      %v1509 = vld [vmem:[%s653 + $0x64] sm:$0xf]
      %v1510 = vld [vmem:[%s653 + $0x68] sm:$0x1]
      %v1511 = vld [vmem:[%s653 + $0x6c] sm:$0xf]
      %v1512 = vld [vmem:[%s653 + $0x70] sm:$0xf]
      %v1513 = vld [vmem:[%s653 + $0x74] sm:$0x1]
      %v1515 = vshrl.u32 %v1484, 16
      %v1517 = vrot.slane %v1515, 4
      %v1518 = vshll.u32 %v1484, 16
      %v1520 = vrot.slane %v1518, 5
      %v1521 = vor.u32 %v1517, %v1520
      %v1522 = vrot.slane %v1521, 4
      %v1524 = vshll.u32 %v1485, 16
      %v1526 = vrot.slane %v1524, 5
      %v1527 = vsel %vm827, %v1522, %v1526
      %v1528 = vshrl.u32 %v1485, 16
      %v1530 = vrot.slane %v1528, 4
      %v1531 = vor.u32 %v1530, %v1526
      %v1532 = vrot.slane %v1531, 4
      %v1534 = vshll.u32 %v1486, 16
      %v1536 = vrot.slane %v1534, 5
      %v1537 = vsel %vm827, %v1532, %v1536
      %v1539 = vshrl.u32 %v1487, 16
      %v1541 = vrot.slane %v1539, 4
      %v1542 = vshll.u32 %v1487, 16
      %v1544 = vrot.slane %v1542, 5
      %v1545 = vor.u32 %v1541, %v1544
      %v1546 = vrot.slane %v1545, 4
      %v1548 = vshll.u32 %v1488, 16
      %v1550 = vrot.slane %v1548, 5
      %v1551 = vsel %vm827, %v1546, %v1550
      %v1552 = vshrl.u32 %v1488, 16
      %v1554 = vrot.slane %v1552, 4
      %v1555 = vor.u32 %v1554, %v1550
      %v1556 = vrot.slane %v1555, 4
      %v1558 = vshll.u32 %v1489, 16
      %v1560 = vrot.slane %v1558, 5
      %v1561 = vsel %vm827, %v1556, %v1560
      %v1563 = vshrl.u32 %v1490, 16
      %v1565 = vrot.slane %v1563, 4
      %v1566 = vshll.u32 %v1490, 16
      %v1568 = vrot.slane %v1566, 5
      %v1569 = vor.u32 %v1565, %v1568
      %v1570 = vrot.slane %v1569, 4
      %v1572 = vshll.u32 %v1491, 16
      %v1574 = vrot.slane %v1572, 5
      %v1575 = vsel %vm827, %v1570, %v1574
      %v1576 = vshrl.u32 %v1491, 16
      %v1578 = vrot.slane %v1576, 4
      %v1579 = vor.u32 %v1578, %v1574
      %v1580 = vrot.slane %v1579, 4
      %v1582 = vshll.u32 %v1492, 16
      %v1584 = vrot.slane %v1582, 5
      %v1585 = vsel %vm827, %v1580, %v1584
      %v1587 = vshrl.u32 %v1493, 16
      %v1589 = vrot.slane %v1587, 4
      %v1590 = vshll.u32 %v1493, 16
      %v1592 = vrot.slane %v1590, 5
      %v1593 = vor.u32 %v1589, %v1592
      %v1594 = vrot.slane %v1593, 4
      %v1596 = vshll.u32 %v1494, 16
      %v1598 = vrot.slane %v1596, 5
      %v1599 = vsel %vm827, %v1594, %v1598
      %v1600 = vshrl.u32 %v1494, 16
      %v1602 = vrot.slane %v1600, 4
      %v1603 = vor.u32 %v1602, %v1598
      %v1604 = vrot.slane %v1603, 4
      %v1606 = vshll.u32 %v1495, 16
      %v1608 = vrot.slane %v1606, 5
      %v1609 = vsel %vm827, %v1604, %v1608
      %v1611 = vshrl.u32 %v1496, 16
      %v1613 = vrot.slane %v1611, 4
      %v1614 = vshll.u32 %v1496, 16
      %v1616 = vrot.slane %v1614, 5
      %v1617 = vor.u32 %v1613, %v1616
      %v1618 = vrot.slane %v1617, 4
      %v1620 = vshll.u32 %v1497, 16
      %v1622 = vrot.slane %v1620, 5
      %v1623 = vsel %vm827, %v1618, %v1622
      %v1624 = vshrl.u32 %v1497, 16
      %v1626 = vrot.slane %v1624, 4
      %v1627 = vor.u32 %v1626, %v1622
      %v1628 = vrot.slane %v1627, 4
      %v1630 = vshll.u32 %v1498, 16
      %v1632 = vrot.slane %v1630, 5
      %v1633 = vsel %vm827, %v1628, %v1632
      %v1635 = vshrl.u32 %v1499, 16
      %v1637 = vrot.slane %v1635, 4
      %v1638 = vshll.u32 %v1499, 16
      %v1640 = vrot.slane %v1638, 5
      %v1641 = vor.u32 %v1637, %v1640
      %v1642 = vrot.slane %v1641, 4
      %v1644 = vshll.u32 %v1500, 16
      %v1646 = vrot.slane %v1644, 5
      %v1647 = vsel %vm827, %v1642, %v1646
      %v1648 = vshrl.u32 %v1500, 16
      %v1650 = vrot.slane %v1648, 4
      %v1651 = vor.u32 %v1650, %v1646
      %v1652 = vrot.slane %v1651, 4
      %v1654 = vshll.u32 %v1501, 16
      %v1656 = vrot.slane %v1654, 5
      %v1657 = vsel %vm827, %v1652, %v1656
      %v1659 = vshrl.u32 %v1502, 16
      %v1661 = vrot.slane %v1659, 4
      %v1662 = vshll.u32 %v1502, 16
      %v1664 = vrot.slane %v1662, 5
      %v1665 = vor.u32 %v1661, %v1664
      %v1666 = vrot.slane %v1665, 4
      %v1668 = vshll.u32 %v1503, 16
      %v1670 = vrot.slane %v1668, 5
      %v1671 = vsel %vm827, %v1666, %v1670
      %v1672 = vshrl.u32 %v1503, 16
      %v1674 = vrot.slane %v1672, 4
      %v1675 = vor.u32 %v1674, %v1670
      %v1676 = vrot.slane %v1675, 4
      %v1678 = vshll.u32 %v1504, 16
      %v1680 = vrot.slane %v1678, 5
      %v1681 = vsel %vm827, %v1676, %v1680
      %v1683 = vshrl.u32 %v1505, 16
      %v1685 = vrot.slane %v1683, 4
      %v1686 = vshll.u32 %v1505, 16
      %v1688 = vrot.slane %v1686, 5
      %v1689 = vor.u32 %v1685, %v1688
      %v1690 = vrot.slane %v1689, 4
      %v1692 = vshll.u32 %v1506, 16
      %v1694 = vrot.slane %v1692, 5
      %v1695 = vsel %vm827, %v1690, %v1694
      %v1696 = vshrl.u32 %v1506, 16
      %v1698 = vrot.slane %v1696, 4
      %v1699 = vor.u32 %v1698, %v1694
      %v1700 = vrot.slane %v1699, 4
      %v1702 = vshll.u32 %v1507, 16
      %v1704 = vrot.slane %v1702, 5
      %v1705 = vsel %vm827, %v1700, %v1704
      %v1707 = vshrl.u32 %v1508, 16
      %v1709 = vrot.slane %v1707, 4
      %v1710 = vshll.u32 %v1508, 16
      %v1712 = vrot.slane %v1710, 5
      %v1713 = vor.u32 %v1709, %v1712
      %v1714 = vrot.slane %v1713, 4
      %v1716 = vshll.u32 %v1509, 16
      %v1718 = vrot.slane %v1716, 5
      %v1719 = vsel %vm827, %v1714, %v1718
      %v1720 = vshrl.u32 %v1509, 16
      %v1722 = vrot.slane %v1720, 4
      %v1723 = vor.u32 %v1722, %v1718
      %v1724 = vrot.slane %v1723, 4
      %v1726 = vshll.u32 %v1510, 16
      %v1728 = vrot.slane %v1726, 5
      %v1729 = vsel %vm827, %v1724, %v1728
      %v1731 = vshrl.u32 %v1511, 16
      %v1733 = vrot.slane %v1731, 4
      %v1734 = vshll.u32 %v1511, 16
      %v1736 = vrot.slane %v1734, 5
      %v1737 = vor.u32 %v1733, %v1736
      %v1738 = vrot.slane %v1737, 4
      %v1740 = vshll.u32 %v1512, 16
      %v1742 = vrot.slane %v1740, 5
      %v1743 = vsel %vm827, %v1738, %v1742
      %v1744 = vshrl.u32 %v1512, 16
      %v1746 = vrot.slane %v1744, 4
      %v1747 = vor.u32 %v1746, %v1742
      %v1748 = vrot.slane %v1747, 4
      %v1750 = vshll.u32 %v1513, 16
      %v1752 = vrot.slane %v1750, 5
      %v1753 = vsel %vm827, %v1748, %v1752
      %1754 = vrot.lane.b32.xlu0 %v1527, 16
      %v1755 = vpop.permute.xlu0 %1754
      %1756 = vrot.lane.b32.xlu0 %v1537, 16
      %v1757 = vpop.permute.xlu0 %1756
      %1758 = vrot.lane.b32.xlu0 %v1551, 16
      %v1759 = vpop.permute.xlu0 %1758
      %1760 = vrot.lane.b32.xlu0 %v1561, 16
      %v1761 = vpop.permute.xlu0 %1760
      %1762 = vrot.lane.b32.xlu0 %v1575, 16
      %v1763 = vpop.permute.xlu0 %1762
      %1764 = vrot.lane.b32.xlu0 %v1585, 16
      %v1765 = vpop.permute.xlu0 %1764
      %1766 = vrot.lane.b32.xlu0 %v1599, 16
      %v1767 = vpop.permute.xlu0 %1766
      %1768 = vrot.lane.b32.xlu0 %v1609, 16
      %v1769 = vpop.permute.xlu0 %1768
      %1770 = vrot.lane.b32.xlu0 %v1623, 16
      %v1771 = vpop.permute.xlu0 %1770
      %1772 = vrot.lane.b32.xlu0 %v1633, 16
      %v1773 = vpop.permute.xlu0 %1772
      %1774 = vrot.lane.b32.xlu0 %v1647, 16
      %v1775 = vpop.permute.xlu0 %1774
      %1776 = vrot.lane.b32.xlu0 %v1657, 16
      %v1777 = vpop.permute.xlu0 %1776
      %1778 = vrot.lane.b32.xlu0 %v1671, 16
      %v1779 = vpop.permute.xlu0 %1778
      %1780 = vrot.lane.b32.xlu0 %v1681, 16
      %v1781 = vpop.permute.xlu0 %1780
      %1782 = vrot.lane.b32.xlu0 %v1695, 16
      %v1783 = vpop.permute.xlu0 %1782
      %1784 = vrot.lane.b32.xlu0 %v1705, 16
      %v1785 = vpop.permute.xlu0 %1784
      %1786 = vrot.lane.b32.xlu0 %v1719, 16
      %v1787 = vpop.permute.xlu0 %1786
      %1788 = vrot.lane.b32.xlu0 %v1729, 16
      %v1789 = vpop.permute.xlu0 %1788
      %1790 = vrot.lane.b32.xlu0 %v1743, 16
      %v1791 = vpop.permute.xlu0 %1790
      %1792 = vrot.lane.b32.xlu0 %v1753, 16
      %v1793 = vpop.permute.xlu0 %1792
      %vm1814 = vcmask 158848
      %1815 = vst.msk [vmem:[#allocation3] sm:$0xf] %vm1814, %v1755
      %1816 = vst.msk [vmem:[#allocation3 + $0x4] sm:$0xf] %vm1814, %v1757
      %1817 = vst.msk [vmem:[#allocation3 + $0x8] sm:$0xf] %vm1814, %v1759
      %1818 = vst.msk [vmem:[#allocation3 + $0xc] sm:$0xf] %vm1814, %v1761
      %1819 = vst.msk [vmem:[#allocation3 + $0x10] sm:$0xf] %vm1814, %v1763
      %1820 = vst.msk [vmem:[#allocation3 + $0x14] sm:$0xf] %vm1814, %v1765
      %1821 = vst.msk [vmem:[#allocation3 + $0x18] sm:$0xf] %vm1814, %v1767
      %1822 = vst.msk [vmem:[#allocation3 + $0x1c] sm:$0xf] %vm1814, %v1769
      %1823 = vst.msk [vmem:[#allocation3 + $0x20] sm:$0xf] %vm1814, %v1771
      %1824 = vst.msk [vmem:[#allocation3 + $0x24] sm:$0xf] %vm1814, %v1773
      %1825 = vst.msk [vmem:[#allocation3 + $0x28] sm:$0xf] %vm1814, %v1775
      %1826 = vst.msk [vmem:[#allocation3 + $0x2c] sm:$0xf] %vm1814, %v1777
      %1827 = vst.msk [vmem:[#allocation3 + $0x30] sm:$0xf] %vm1814, %v1779
      %1828 = vst.msk [vmem:[#allocation3 + $0x34] sm:$0xf] %vm1814, %v1781
      %1829 = vst.msk [vmem:[#allocation3 + $0x38] sm:$0xf] %vm1814, %v1783
      %1830 = vst.msk [vmem:[#allocation3 + $0x3c] sm:$0xf] %vm1814, %v1785
      %1831 = vst.msk [vmem:[#allocation3 + $0x40] sm:$0xf] %vm1814, %v1787
      %1832 = vst.msk [vmem:[#allocation3 + $0x44] sm:$0xf] %vm1814, %v1789
      %1833 = vst.msk [vmem:[#allocation3 + $0x48] sm:$0xf] %vm1814, %v1791
      %1834 = vst.msk [vmem:[#allocation3 + $0x4c] sm:$0xf] %vm1814, %v1793
      %v1835 = vld [vmem:[%s653] sm:$0xe]
      %v1836 = vld [vmem:[%s653 + $0x4] sm:$0xf]
      %v1837 = vld [vmem:[%s653 + $0x8] sm:$0x1]
      %v1838 = vld [vmem:[%s653 + $0xc] sm:$0xe]
      %v1839 = vld [vmem:[%s653 + $0x10] sm:$0xf]
      %v1840 = vld [vmem:[%s653 + $0x14] sm:$0x1]
      %v1841 = vld [vmem:[%s653 + $0x18] sm:$0xe]
      %v1842 = vld [vmem:[%s653 + $0x1c] sm:$0xf]
      %v1843 = vld [vmem:[%s653 + $0x20] sm:$0x1]
      %v1844 = vld [vmem:[%s653 + $0x24] sm:$0xe]
      %v1845 = vld [vmem:[%s653 + $0x28] sm:$0xf]
      %v1846 = vld [vmem:[%s653 + $0x2c] sm:$0x1]
      %v1847 = vld [vmem:[%s653 + $0x30] sm:$0xe]
      %v1848 = vld [vmem:[%s653 + $0x34] sm:$0xf]
      %v1849 = vld [vmem:[%s653 + $0x38] sm:$0x1]
      %v1850 = vld [vmem:[%s653 + $0x3c] sm:$0xe]
      %v1851 = vld [vmem:[%s653 + $0x40] sm:$0xf]
      %v1852 = vld [vmem:[%s653 + $0x44] sm:$0x1]
      %v1853 = vld [vmem:[%s653 + $0x48] sm:$0xe]
      %v1854 = vld [vmem:[%s653 + $0x4c] sm:$0xf]
      %v1855 = vld [vmem:[%s653 + $0x50] sm:$0x1]
      %v1856 = vld [vmem:[%s653 + $0x54] sm:$0xe]
      %v1857 = vld [vmem:[%s653 + $0x58] sm:$0xf]
      %v1858 = vld [vmem:[%s653 + $0x5c] sm:$0x1]
      %v1859 = vld [vmem:[%s653 + $0x60] sm:$0xe]
      %v1860 = vld [vmem:[%s653 + $0x64] sm:$0xf]
      %v1861 = vld [vmem:[%s653 + $0x68] sm:$0x1]
      %v1862 = vld [vmem:[%s653 + $0x6c] sm:$0xe]
      %v1863 = vld [vmem:[%s653 + $0x70] sm:$0xf]
      %v1864 = vld [vmem:[%s653 + $0x74] sm:$0x1]
      %v1895 = vrot.slane %v1835, 5
      %v1896 = vrot.slane %v1895, 4
      %v1897 = vrot.slane %v1836, 5
      %v1898 = vsel %vm1211, %v1896, %v1897
      %v1899 = vrot.slane %v1897, 4
      %v1900 = vrot.slane %v1837, 5
      %v1901 = vsel %vm1211, %v1899, %v1900
      %v1902 = vrot.slane %v1838, 5
      %v1903 = vrot.slane %v1902, 4
      %v1904 = vrot.slane %v1839, 5
      %v1905 = vsel %vm1211, %v1903, %v1904
      %v1906 = vrot.slane %v1904, 4
      %v1907 = vrot.slane %v1840, 5
      %v1908 = vsel %vm1211, %v1906, %v1907
      %v1909 = vrot.slane %v1841, 5
      %v1910 = vrot.slane %v1909, 4
      %v1911 = vrot.slane %v1842, 5
      %v1912 = vsel %vm1211, %v1910, %v1911
      %v1913 = vrot.slane %v1911, 4
      %v1914 = vrot.slane %v1843, 5
      %v1915 = vsel %vm1211, %v1913, %v1914
      %v1916 = vrot.slane %v1844, 5
      %v1917 = vrot.slane %v1916, 4
      %v1918 = vrot.slane %v1845, 5
      %v1919 = vsel %vm1211, %v1917, %v1918
      %v1920 = vrot.slane %v1918, 4
      %v1921 = vrot.slane %v1846, 5
      %v1922 = vsel %vm1211, %v1920, %v1921
      %v1923 = vrot.slane %v1847, 5
      %v1924 = vrot.slane %v1923, 4
      %v1925 = vrot.slane %v1848, 5
      %v1926 = vsel %vm1211, %v1924, %v1925
      %v1927 = vrot.slane %v1925, 4
      %v1928 = vrot.slane %v1849, 5
      %v1929 = vsel %vm1211, %v1927, %v1928
      %v1930 = vrot.slane %v1850, 5
      %v1931 = vrot.slane %v1930, 4
      %v1932 = vrot.slane %v1851, 5
      %v1933 = vsel %vm1211, %v1931, %v1932
      %v1934 = vrot.slane %v1932, 4
      %v1935 = vrot.slane %v1852, 5
      %v1936 = vsel %vm1211, %v1934, %v1935
      %v1937 = vrot.slane %v1853, 5
      %v1938 = vrot.slane %v1937, 4
      %v1939 = vrot.slane %v1854, 5
      %v1940 = vsel %vm1211, %v1938, %v1939
      %v1941 = vrot.slane %v1939, 4
      %v1942 = vrot.slane %v1855, 5
      %v1943 = vsel %vm1211, %v1941, %v1942
      %v1944 = vrot.slane %v1856, 5
      %v1945 = vrot.slane %v1944, 4
      %v1946 = vrot.slane %v1857, 5
      %v1947 = vsel %vm1211, %v1945, %v1946
      %v1948 = vrot.slane %v1946, 4
      %v1949 = vrot.slane %v1858, 5
      %v1950 = vsel %vm1211, %v1948, %v1949
      %v1951 = vrot.slane %v1859, 5
      %v1952 = vrot.slane %v1951, 4
      %v1953 = vrot.slane %v1860, 5
      %v1954 = vsel %vm1211, %v1952, %v1953
      %v1955 = vrot.slane %v1953, 4
      %v1956 = vrot.slane %v1861, 5
      %v1957 = vsel %vm1211, %v1955, %v1956
      %v1958 = vrot.slane %v1862, 5
      %v1959 = vrot.slane %v1958, 4
      %v1960 = vrot.slane %v1863, 5
      %v1961 = vsel %vm1211, %v1959, %v1960
      %v1962 = vrot.slane %v1960, 4
      %v1963 = vrot.slane %v1864, 5
      %v1964 = vsel %vm1211, %v1962, %v1963
      %1965 = vrot.lane.b32.xlu0 %v1898, 20
      %v1966 = vpop.permute.xlu0 %1965
      %1967 = vrot.lane.b32.xlu0 %v1901, 20
      %v1968 = vpop.permute.xlu0 %1967
      %1969 = vrot.lane.b32.xlu0 %v1905, 20
      %v1970 = vpop.permute.xlu0 %1969
      %1971 = vrot.lane.b32.xlu0 %v1908, 20
      %v1972 = vpop.permute.xlu0 %1971
      %1973 = vrot.lane.b32.xlu0 %v1912, 20
      %v1974 = vpop.permute.xlu0 %1973
      %1975 = vrot.lane.b32.xlu0 %v1915, 20
      %v1976 = vpop.permute.xlu0 %1975
      %1977 = vrot.lane.b32.xlu0 %v1919, 20
      %v1978 = vpop.permute.xlu0 %1977
      %1979 = vrot.lane.b32.xlu0 %v1922, 20
      %v1980 = vpop.permute.xlu0 %1979
      %1981 = vrot.lane.b32.xlu0 %v1926, 20
      %v1982 = vpop.permute.xlu0 %1981
      %1983 = vrot.lane.b32.xlu0 %v1929, 20
      %v1984 = vpop.permute.xlu0 %1983
      %1985 = vrot.lane.b32.xlu0 %v1933, 20
      %v1986 = vpop.permute.xlu0 %1985
      %1987 = vrot.lane.b32.xlu0 %v1936, 20
      %v1988 = vpop.permute.xlu0 %1987
      %1989 = vrot.lane.b32.xlu0 %v1940, 20
      %v1990 = vpop.permute.xlu0 %1989
      %1991 = vrot.lane.b32.xlu0 %v1943, 20
      %v1992 = vpop.permute.xlu0 %1991
      %1993 = vrot.lane.b32.xlu0 %v1947, 20
      %v1994 = vpop.permute.xlu0 %1993
      %1995 = vrot.lane.b32.xlu0 %v1950, 20
      %v1996 = vpop.permute.xlu0 %1995
      %1997 = vrot.lane.b32.xlu0 %v1954, 20
      %v1998 = vpop.permute.xlu0 %1997
      %1999 = vrot.lane.b32.xlu0 %v1957, 20
      %v2000 = vpop.permute.xlu0 %1999
      %2001 = vrot.lane.b32.xlu0 %v1961, 20
      %v2002 = vpop.permute.xlu0 %2001
      %2003 = vrot.lane.b32.xlu0 %v1964, 20
      %v2004 = vpop.permute.xlu0 %2003
      %vm2025 = vcmask 191648
      %2026 = vst.msk [vmem:[#allocation3] sm:$0xf] %vm2025, %v1966
      %2027 = vst.msk [vmem:[#allocation3 + $0x4] sm:$0xf] %vm2025, %v1968
      %2028 = vst.msk [vmem:[#allocation3 + $0x8] sm:$0xf] %vm2025, %v1970
      %2029 = vst.msk [vmem:[#allocation3 + $0xc] sm:$0xf] %vm2025, %v1972
      %2030 = vst.msk [vmem:[#allocation3 + $0x10] sm:$0xf] %vm2025, %v1974
      %2031 = vst.msk [vmem:[#allocation3 + $0x14] sm:$0xf] %vm2025, %v1976
      %2032 = vst.msk [vmem:[#allocation3 + $0x18] sm:$0xf] %vm2025, %v1978
      %2033 = vst.msk [vmem:[#allocation3 + $0x1c] sm:$0xf] %vm2025, %v1980
      %2034 = vst.msk [vmem:[#allocation3 + $0x20] sm:$0xf] %vm2025, %v1982
      %2035 = vst.msk [vmem:[#allocation3 + $0x24] sm:$0xf] %vm2025, %v1984
      %2036 = vst.msk [vmem:[#allocation3 + $0x28] sm:$0xf] %vm2025, %v1986
      %2037 = vst.msk [vmem:[#allocation3 + $0x2c] sm:$0xf] %vm2025, %v1988
      %2038 = vst.msk [vmem:[#allocation3 + $0x30] sm:$0xf] %vm2025, %v1990
      %2039 = vst.msk [vmem:[#allocation3 + $0x34] sm:$0xf] %vm2025, %v1992
      %2040 = vst.msk [vmem:[#allocation3 + $0x38] sm:$0xf] %vm2025, %v1994
      %2041 = vst.msk [vmem:[#allocation3 + $0x3c] sm:$0xf] %vm2025, %v1996
      %2042 = vst.msk [vmem:[#allocation3 + $0x40] sm:$0xf] %vm2025, %v1998
      %2043 = vst.msk [vmem:[#allocation3 + $0x44] sm:$0xf] %vm2025, %v2000
      %2044 = vst.msk [vmem:[#allocation3 + $0x48] sm:$0xf] %vm2025, %v2002
      %2045 = vst.msk [vmem:[#allocation3 + $0x4c] sm:$0xf] %vm2025, %v2004
      %v2046 = vld [vmem:[%s508] sm:$0xf]
      %v2047 = vld [vmem:[%s508 + $0x4] sm:$0xf]
      %v2048 = vld [vmem:[%s508 + $0xc] sm:$0xf]
      %v2049 = vld [vmem:[%s508 + $0x10] sm:$0xf]
      %v2050 = vld [vmem:[%s508 + $0x18] sm:$0xf]
      %v2051 = vld [vmem:[%s508 + $0x1c] sm:$0xf]
      %v2052 = vld [vmem:[%s508 + $0x24] sm:$0xf]
      %v2053 = vld [vmem:[%s508 + $0x28] sm:$0xf]
      %v2054 = vld [vmem:[%s508 + $0x30] sm:$0xf]
      %v2055 = vld [vmem:[%s508 + $0x34] sm:$0xf]
      %v2056 = vld [vmem:[%s508 + $0x3c] sm:$0xf]
      %v2057 = vld [vmem:[%s508 + $0x40] sm:$0xf]
      %v2058 = vld [vmem:[%s508 + $0x48] sm:$0xf]
      %v2059 = vld [vmem:[%s508 + $0x4c] sm:$0xf]
      %v2060 = vld [vmem:[%s508 + $0x54] sm:$0xf]
      %v2061 = vld [vmem:[%s508 + $0x58] sm:$0xf]
      %v2062 = vld [vmem:[%s508 + $0x60] sm:$0xf]
      %v2063 = vld [vmem:[%s508 + $0x64] sm:$0xf]
      %v2064 = vld [vmem:[%s508 + $0x6c] sm:$0xf]
      %v2065 = vld [vmem:[%s508 + $0x70] sm:$0xf]
      %2086 = vrot.lane.b32.xlu0 %v2046, 24
      %v2087 = vpop.permute.xlu0 %2086
      %2088 = vrot.lane.b32.xlu0 %v2047, 24
      %v2089 = vpop.permute.xlu0 %2088
      %2090 = vrot.lane.b32.xlu0 %v2048, 24
      %v2091 = vpop.permute.xlu0 %2090
      %2092 = vrot.lane.b32.xlu0 %v2049, 24
      %v2093 = vpop.permute.xlu0 %2092
      %2094 = vrot.lane.b32.xlu0 %v2050, 24
      %v2095 = vpop.permute.xlu0 %2094
      %2096 = vrot.lane.b32.xlu0 %v2051, 24
      %v2097 = vpop.permute.xlu0 %2096
      %2098 = vrot.lane.b32.xlu0 %v2052, 24
      %v2099 = vpop.permute.xlu0 %2098
      %2100 = vrot.lane.b32.xlu0 %v2053, 24
      %v2101 = vpop.permute.xlu0 %2100
      %2102 = vrot.lane.b32.xlu0 %v2054, 24
      %v2103 = vpop.permute.xlu0 %2102
      %2104 = vrot.lane.b32.xlu0 %v2055, 24
      %v2105 = vpop.permute.xlu0 %2104
      %2106 = vrot.lane.b32.xlu0 %v2056, 24
      %v2107 = vpop.permute.xlu0 %2106
      %2108 = vrot.lane.b32.xlu0 %v2057, 24
      %v2109 = vpop.permute.xlu0 %2108
      %2110 = vrot.lane.b32.xlu0 %v2058, 24
      %v2111 = vpop.permute.xlu0 %2110
      %2112 = vrot.lane.b32.xlu0 %v2059, 24
      %v2113 = vpop.permute.xlu0 %2112
      %2114 = vrot.lane.b32.xlu0 %v2060, 24
      %v2115 = vpop.permute.xlu0 %2114
      %2116 = vrot.lane.b32.xlu0 %v2061, 24
      %v2117 = vpop.permute.xlu0 %2116
      %2118 = vrot.lane.b32.xlu0 %v2062, 24
      %v2119 = vpop.permute.xlu0 %2118
      %2120 = vrot.lane.b32.xlu0 %v2063, 24
      %v2121 = vpop.permute.xlu0 %2120
      %2122 = vrot.lane.b32.xlu0 %v2064, 24
      %v2123 = vpop.permute.xlu0 %2122
      %2124 = vrot.lane.b32.xlu0 %v2065, 24
      %v2125 = vpop.permute.xlu0 %2124
      %vm2146 = vcmask 224448
      %2147 = vst.msk [vmem:[#allocation3] sm:$0xf] %vm2146, %v2087
      %2148 = vst.msk [vmem:[#allocation3 + $0x4] sm:$0xf] %vm2146, %v2089
      %2149 = vst.msk [vmem:[#allocation3 + $0x8] sm:$0xf] %vm2146, %v2091
      %2150 = vst.msk [vmem:[#allocation3 + $0xc] sm:$0xf] %vm2146, %v2093
      %2151 = vst.msk [vmem:[#allocation3 + $0x10] sm:$0xf] %vm2146, %v2095
      %2152 = vst.msk [vmem:[#allocation3 + $0x14] sm:$0xf] %vm2146, %v2097
      %2153 = vst.msk [vmem:[#allocation3 + $0x18] sm:$0xf] %vm2146, %v2099
      %2154 = vst.msk [vmem:[#allocation3 + $0x1c] sm:$0xf] %vm2146, %v2101
      %2155 = vst.msk [vmem:[#allocation3 + $0x20] sm:$0xf] %vm2146, %v2103
      %2156 = vst.msk [vmem:[#allocation3 + $0x24] sm:$0xf] %vm2146, %v2105
      %2157 = vst.msk [vmem:[#allocation3 + $0x28] sm:$0xf] %vm2146, %v2107
      %2158 = vst.msk [vmem:[#allocation3 + $0x2c] sm:$0xf] %vm2146, %v2109
      %2159 = vst.msk [vmem:[#allocation3 + $0x30] sm:$0xf] %vm2146, %v2111
      %2160 = vst.msk [vmem:[#allocation3 + $0x34] sm:$0xf] %vm2146, %v2113
      %2161 = vst.msk [vmem:[#allocation3 + $0x38] sm:$0xf] %vm2146, %v2115
      %2162 = vst.msk [vmem:[#allocation3 + $0x3c] sm:$0xf] %vm2146, %v2117
      %2163 = vst.msk [vmem:[#allocation3 + $0x40] sm:$0xf] %vm2146, %v2119
      %2164 = vst.msk [vmem:[#allocation3 + $0x44] sm:$0xf] %vm2146, %v2121
      %2165 = vst.msk [vmem:[#allocation3 + $0x48] sm:$0xf] %vm2146, %v2123
      %2166 = vst.msk [vmem:[#allocation3 + $0x4c] sm:$0xf] %vm2146, %v2125
      %v2167 = vld [vmem:[%s508] sm:$0xf]
      %v2168 = vld [vmem:[%s508 + $0x4] sm:$0xf]
      %v2169 = vld [vmem:[%s508 + $0x8] sm:$0x1]
      %v2170 = vld [vmem:[%s508 + $0xc] sm:$0xf]
      %v2171 = vld [vmem:[%s508 + $0x10] sm:$0xf]
      %v2172 = vld [vmem:[%s508 + $0x14] sm:$0x1]
      %v2173 = vld [vmem:[%s508 + $0x18] sm:$0xf]
      %v2174 = vld [vmem:[%s508 + $0x1c] sm:$0xf]
      %v2175 = vld [vmem:[%s508 + $0x20] sm:$0x1]
      %v2176 = vld [vmem:[%s508 + $0x24] sm:$0xf]
      %v2177 = vld [vmem:[%s508 + $0x28] sm:$0xf]
      %v2178 = vld [vmem:[%s508 + $0x2c] sm:$0x1]
      %v2179 = vld [vmem:[%s508 + $0x30] sm:$0xf]
      %v2180 = vld [vmem:[%s508 + $0x34] sm:$0xf]
      %v2181 = vld [vmem:[%s508 + $0x38] sm:$0x1]
      %v2182 = vld [vmem:[%s508 + $0x3c] sm:$0xf]
      %v2183 = vld [vmem:[%s508 + $0x40] sm:$0xf]
      %v2184 = vld [vmem:[%s508 + $0x44] sm:$0x1]
      %v2185 = vld [vmem:[%s508 + $0x48] sm:$0xf]
      %v2186 = vld [vmem:[%s508 + $0x4c] sm:$0xf]
      %v2187 = vld [vmem:[%s508 + $0x50] sm:$0x1]
      %v2188 = vld [vmem:[%s508 + $0x54] sm:$0xf]
      %v2189 = vld [vmem:[%s508 + $0x58] sm:$0xf]
      %v2190 = vld [vmem:[%s508 + $0x5c] sm:$0x1]
      %v2191 = vld [vmem:[%s508 + $0x60] sm:$0xf]
      %v2192 = vld [vmem:[%s508 + $0x64] sm:$0xf]
      %v2193 = vld [vmem:[%s508 + $0x68] sm:$0x1]
      %v2194 = vld [vmem:[%s508 + $0x6c] sm:$0xf]
      %v2195 = vld [vmem:[%s508 + $0x70] sm:$0xf]
      %v2196 = vld [vmem:[%s508 + $0x74] sm:$0x1]
      %v2198 = vshrl.u32 %v2167, 16
      %v2200 = vrot.slane %v2198, 4
      %v2201 = vshll.u32 %v2167, 16
      %v2203 = vrot.slane %v2201, 5
      %v2204 = vor.u32 %v2200, %v2203
      %v2205 = vrot.slane %v2204, 4
      %v2207 = vshll.u32 %v2168, 16
      %v2209 = vrot.slane %v2207, 5
      %v2210 = vsel %vm827, %v2205, %v2209
      %v2211 = vshrl.u32 %v2168, 16
      %v2213 = vrot.slane %v2211, 4
      %v2214 = vor.u32 %v2213, %v2209
      %v2215 = vrot.slane %v2214, 4
      %v2217 = vshll.u32 %v2169, 16
      %v2219 = vrot.slane %v2217, 5
      %v2220 = vsel %vm827, %v2215, %v2219
      %v2222 = vshrl.u32 %v2170, 16
      %v2224 = vrot.slane %v2222, 4
      %v2225 = vshll.u32 %v2170, 16
      %v2227 = vrot.slane %v2225, 5
      %v2228 = vor.u32 %v2224, %v2227
      %v2229 = vrot.slane %v2228, 4
      %v2231 = vshll.u32 %v2171, 16
      %v2233 = vrot.slane %v2231, 5
      %v2234 = vsel %vm827, %v2229, %v2233
      %v2235 = vshrl.u32 %v2171, 16
      %v2237 = vrot.slane %v2235, 4
      %v2238 = vor.u32 %v2237, %v2233
      %v2239 = vrot.slane %v2238, 4
      %v2241 = vshll.u32 %v2172, 16
      %v2243 = vrot.slane %v2241, 5
      %v2244 = vsel %vm827, %v2239, %v2243
      %v2246 = vshrl.u32 %v2173, 16
      %v2248 = vrot.slane %v2246, 4
      %v2249 = vshll.u32 %v2173, 16
      %v2251 = vrot.slane %v2249, 5
      %v2252 = vor.u32 %v2248, %v2251
      %v2253 = vrot.slane %v2252, 4
      %v2255 = vshll.u32 %v2174, 16
      %v2257 = vrot.slane %v2255, 5
      %v2258 = vsel %vm827, %v2253, %v2257
      %v2259 = vshrl.u32 %v2174, 16
      %v2261 = vrot.slane %v2259, 4
      %v2262 = vor.u32 %v2261, %v2257
      %v2263 = vrot.slane %v2262, 4
      %v2265 = vshll.u32 %v2175, 16
      %v2267 = vrot.slane %v2265, 5
      %v2268 = vsel %vm827, %v2263, %v2267
      %v2270 = vshrl.u32 %v2176, 16
      %v2272 = vrot.slane %v2270, 4
      %v2273 = vshll.u32 %v2176, 16
      %v2275 = vrot.slane %v2273, 5
      %v2276 = vor.u32 %v2272, %v2275
      %v2277 = vrot.slane %v2276, 4
      %v2279 = vshll.u32 %v2177, 16
      %v2281 = vrot.slane %v2279, 5
      %v2282 = vsel %vm827, %v2277, %v2281
      %v2283 = vshrl.u32 %v2177, 16
      %v2285 = vrot.slane %v2283, 4
      %v2286 = vor.u32 %v2285, %v2281
      %v2287 = vrot.slane %v2286, 4
      %v2289 = vshll.u32 %v2178, 16
      %v2291 = vrot.slane %v2289, 5
      %v2292 = vsel %vm827, %v2287, %v2291
      %v2294 = vshrl.u32 %v2179, 16
      %v2296 = vrot.slane %v2294, 4
      %v2297 = vshll.u32 %v2179, 16
      %v2299 = vrot.slane %v2297, 5
      %v2300 = vor.u32 %v2296, %v2299
      %v2301 = vrot.slane %v2300, 4
      %v2303 = vshll.u32 %v2180, 16
      %v2305 = vrot.slane %v2303, 5
      %v2306 = vsel %vm827, %v2301, %v2305
      %v2307 = vshrl.u32 %v2180, 16
      %v2309 = vrot.slane %v2307, 4
      %v2310 = vor.u32 %v2309, %v2305
      %v2311 = vrot.slane %v2310, 4
      %v2313 = vshll.u32 %v2181, 16
      %v2315 = vrot.slane %v2313, 5
      %v2316 = vsel %vm827, %v2311, %v2315
      %v2318 = vshrl.u32 %v2182, 16
      %v2320 = vrot.slane %v2318, 4
      %v2321 = vshll.u32 %v2182, 16
      %v2323 = vrot.slane %v2321, 5
      %v2324 = vor.u32 %v2320, %v2323
      %v2325 = vrot.slane %v2324, 4
      %v2327 = vshll.u32 %v2183, 16
      %v2329 = vrot.slane %v2327, 5
      %v2330 = vsel %vm827, %v2325, %v2329
      %v2331 = vshrl.u32 %v2183, 16
      %v2333 = vrot.slane %v2331, 4
      %v2334 = vor.u32 %v2333, %v2329
      %v2335 = vrot.slane %v2334, 4
      %v2337 = vshll.u32 %v2184, 16
      %v2339 = vrot.slane %v2337, 5
      %v2340 = vsel %vm827, %v2335, %v2339
      %v2342 = vshrl.u32 %v2185, 16
      %v2344 = vrot.slane %v2342, 4
      %v2345 = vshll.u32 %v2185, 16
      %v2347 = vrot.slane %v2345, 5
      %v2348 = vor.u32 %v2344, %v2347
      %v2349 = vrot.slane %v2348, 4
      %v2351 = vshll.u32 %v2186, 16
      %v2353 = vrot.slane %v2351, 5
      %v2354 = vsel %vm827, %v2349, %v2353
      %v2355 = vshrl.u32 %v2186, 16
      %v2357 = vrot.slane %v2355, 4
      %v2358 = vor.u32 %v2357, %v2353
      %v2359 = vrot.slane %v2358, 4
      %v2361 = vshll.u32 %v2187, 16
      %v2363 = vrot.slane %v2361, 5
      %v2364 = vsel %vm827, %v2359, %v2363
      %v2366 = vshrl.u32 %v2188, 16
      %v2368 = vrot.slane %v2366, 4
      %v2369 = vshll.u32 %v2188, 16
      %v2371 = vrot.slane %v2369, 5
      %v2372 = vor.u32 %v2368, %v2371
      %v2373 = vrot.slane %v2372, 4
      %v2375 = vshll.u32 %v2189, 16
      %v2377 = vrot.slane %v2375, 5
      %v2378 = vsel %vm827, %v2373, %v2377
      %v2379 = vshrl.u32 %v2189, 16
      %v2381 = vrot.slane %v2379, 4
      %v2382 = vor.u32 %v2381, %v2377
      %v2383 = vrot.slane %v2382, 4
      %v2385 = vshll.u32 %v2190, 16
      %v2387 = vrot.slane %v2385, 5
      %v2388 = vsel %vm827, %v2383, %v2387
      %v2390 = vshrl.u32 %v2191, 16
      %v2392 = vrot.slane %v2390, 4
      %v2393 = vshll.u32 %v2191, 16
      %v2395 = vrot.slane %v2393, 5
      %v2396 = vor.u32 %v2392, %v2395
      %v2397 = vrot.slane %v2396, 4
      %v2399 = vshll.u32 %v2192, 16
      %v2401 = vrot.slane %v2399, 5
      %v2402 = vsel %vm827, %v2397, %v2401
      %v2403 = vshrl.u32 %v2192, 16
      %v2405 = vrot.slane %v2403, 4
      %v2406 = vor.u32 %v2405, %v2401
      %v2407 = vrot.slane %v2406, 4
      %v2409 = vshll.u32 %v2193, 16
      %v2411 = vrot.slane %v2409, 5
      %v2412 = vsel %vm827, %v2407, %v2411
      %v2414 = vshrl.u32 %v2194, 16
      %v2416 = vrot.slane %v2414, 4
      %v2417 = vshll.u32 %v2194, 16
      %v2419 = vrot.slane %v2417, 5
      %v2420 = vor.u32 %v2416, %v2419
      %v2421 = vrot.slane %v2420, 4
      %v2423 = vshll.u32 %v2195, 16
      %v2425 = vrot.slane %v2423, 5
      %v2426 = vsel %vm827, %v2421, %v2425
      %v2427 = vshrl.u32 %v2195, 16
      %v2429 = vrot.slane %v2427, 4
      %v2430 = vor.u32 %v2429, %v2425
      %v2431 = vrot.slane %v2430, 4
      %v2433 = vshll.u32 %v2196, 16
      %v2435 = vrot.slane %v2433, 5
      %v2436 = vsel %vm827, %v2431, %v2435
      %2437 = vrot.lane.b32.xlu0 %v2210, 28
      %v2438 = vpop.permute.xlu0 %2437
      %2439 = vrot.lane.b32.xlu0 %v2220, 28
      %v2440 = vpop.permute.xlu0 %2439
      %2441 = vrot.lane.b32.xlu0 %v2234, 28
      %v2442 = vpop.permute.xlu0 %2441
      %2443 = vrot.lane.b32.xlu0 %v2244, 28
      %v2444 = vpop.permute.xlu0 %2443
      %2445 = vrot.lane.b32.xlu0 %v2258, 28
      %v2446 = vpop.permute.xlu0 %2445
      %2447 = vrot.lane.b32.xlu0 %v2268, 28
      %v2448 = vpop.permute.xlu0 %2447
      %2449 = vrot.lane.b32.xlu0 %v2282, 28
      %v2450 = vpop.permute.xlu0 %2449
      %2451 = vrot.lane.b32.xlu0 %v2292, 28
      %v2452 = vpop.permute.xlu0 %2451
      %2453 = vrot.lane.b32.xlu0 %v2306, 28
      %v2454 = vpop.permute.xlu0 %2453
      %2455 = vrot.lane.b32.xlu0 %v2316, 28
      %v2456 = vpop.permute.xlu0 %2455
      %2457 = vrot.lane.b32.xlu0 %v2330, 28
      %v2458 = vpop.permute.xlu0 %2457
      %2459 = vrot.lane.b32.xlu0 %v2340, 28
      %v2460 = vpop.permute.xlu0 %2459
      %2461 = vrot.lane.b32.xlu0 %v2354, 28
      %v2462 = vpop.permute.xlu0 %2461
      %2463 = vrot.lane.b32.xlu0 %v2364, 28
      %v2464 = vpop.permute.xlu0 %2463
      %2465 = vrot.lane.b32.xlu0 %v2378, 28
      %v2466 = vpop.permute.xlu0 %2465
      %2467 = vrot.lane.b32.xlu0 %v2388, 28
      %v2468 = vpop.permute.xlu0 %2467
      %2469 = vrot.lane.b32.xlu0 %v2402, 28
      %v2470 = vpop.permute.xlu0 %2469
      %2471 = vrot.lane.b32.xlu0 %v2412, 28
      %v2472 = vpop.permute.xlu0 %2471
      %2473 = vrot.lane.b32.xlu0 %v2426, 28
      %v2474 = vpop.permute.xlu0 %2473
      %2475 = vrot.lane.b32.xlu0 %v2436, 28
      %v2476 = vpop.permute.xlu0 %2475
      %vm2497 = vcmask 257248
      %2498 = vst.msk [vmem:[#allocation3] sm:$0xf] %vm2497, %v2438
      %2499 = vst.msk [vmem:[#allocation3 + $0x4] sm:$0xf] %vm2497, %v2440
      %2500 = vst.msk [vmem:[#allocation3 + $0x8] sm:$0xf] %vm2497, %v2442
      %2501 = vst.msk [vmem:[#allocation3 + $0xc] sm:$0xf] %vm2497, %v2444
      %2502 = vst.msk [vmem:[#allocation3 + $0x10] sm:$0xf] %vm2497, %v2446
      %2503 = vst.msk [vmem:[#allocation3 + $0x14] sm:$0xf] %vm2497, %v2448
      %2504 = vst.msk [vmem:[#allocation3 + $0x18] sm:$0xf] %vm2497, %v2450
      %2505 = vst.msk [vmem:[#allocation3 + $0x1c] sm:$0xf] %vm2497, %v2452
      %2506 = vst.msk [vmem:[#allocation3 + $0x20] sm:$0xf] %vm2497, %v2454
      %2507 = vst.msk [vmem:[#allocation3 + $0x24] sm:$0xf] %vm2497, %v2456
      %2508 = vst.msk [vmem:[#allocation3 + $0x28] sm:$0xf] %vm2497, %v2458
      %2509 = vst.msk [vmem:[#allocation3 + $0x2c] sm:$0xf] %vm2497, %v2460
      %2510 = vst.msk [vmem:[#allocation3 + $0x30] sm:$0xf] %vm2497, %v2462
      %2511 = vst.msk [vmem:[#allocation3 + $0x34] sm:$0xf] %vm2497, %v2464
      %2512 = vst.msk [vmem:[#allocation3 + $0x38] sm:$0xf] %vm2497, %v2466
      %2513 = vst.msk [vmem:[#allocation3 + $0x3c] sm:$0xf] %vm2497, %v2468
      %2514 = vst.msk [vmem:[#allocation3 + $0x40] sm:$0xf] %vm2497, %v2470
      %2515 = vst.msk [vmem:[#allocation3 + $0x44] sm:$0xf] %vm2497, %v2472
      %2516 = vst.msk [vmem:[#allocation3 + $0x48] sm:$0xf] %vm2497, %v2474
      %2517 = vst.msk [vmem:[#allocation3 + $0x4c] sm:$0xf] %vm2497, %v2476
      %v2518 = vld [vmem:[%s508] sm:$0xe]
      %v2519 = vld [vmem:[%s508 + $0x4] sm:$0xf]
      %v2520 = vld [vmem:[%s508 + $0x8] sm:$0x1]
      %v2521 = vld [vmem:[%s508 + $0xc] sm:$0xe]
      %v2522 = vld [vmem:[%s508 + $0x10] sm:$0xf]
      %v2523 = vld [vmem:[%s508 + $0x14] sm:$0x1]
      %v2524 = vld [vmem:[%s508 + $0x18] sm:$0xe]
      %v2525 = vld [vmem:[%s508 + $0x1c] sm:$0xf]
      %v2526 = vld [vmem:[%s508 + $0x20] sm:$0x1]
      %v2527 = vld [vmem:[%s508 + $0x24] sm:$0xe]
      %v2528 = vld [vmem:[%s508 + $0x28] sm:$0xf]
      %v2529 = vld [vmem:[%s508 + $0x2c] sm:$0x1]
      %v2530 = vld [vmem:[%s508 + $0x30] sm:$0xe]
      %v2531 = vld [vmem:[%s508 + $0x34] sm:$0xf]
      %v2532 = vld [vmem:[%s508 + $0x38] sm:$0x1]
      %v2533 = vld [vmem:[%s508 + $0x3c] sm:$0xe]
      %v2534 = vld [vmem:[%s508 + $0x40] sm:$0xf]
      %v2535 = vld [vmem:[%s508 + $0x44] sm:$0x1]
      %v2536 = vld [vmem:[%s508 + $0x48] sm:$0xe]
      %v2537 = vld [vmem:[%s508 + $0x4c] sm:$0xf]
      %v2538 = vld [vmem:[%s508 + $0x50] sm:$0x1]
      %v2539 = vld [vmem:[%s508 + $0x54] sm:$0xe]
      %v2540 = vld [vmem:[%s508 + $0x58] sm:$0xf]
      %v2541 = vld [vmem:[%s508 + $0x5c] sm:$0x1]
      %v2542 = vld [vmem:[%s508 + $0x60] sm:$0xe]
      %v2543 = vld [vmem:[%s508 + $0x64] sm:$0xf]
      %v2544 = vld [vmem:[%s508 + $0x68] sm:$0x1]
      %v2545 = vld [vmem:[%s508 + $0x6c] sm:$0xe]
      %v2546 = vld [vmem:[%s508 + $0x70] sm:$0xf]
      %v2547 = vld [vmem:[%s508 + $0x74] sm:$0x1]
      %v2578 = vrot.slane %v2518, 5
      %v2579 = vrot.slane %v2578, 4
      %v2580 = vrot.slane %v2519, 5
      %v2581 = vsel %vm1211, %v2579, %v2580
      %v2582 = vrot.slane %v2580, 4
      %v2583 = vrot.slane %v2520, 5
      %v2584 = vsel %vm1211, %v2582, %v2583
      %v2585 = vrot.slane %v2521, 5
      %v2586 = vrot.slane %v2585, 4
      %v2587 = vrot.slane %v2522, 5
      %v2588 = vsel %vm1211, %v2586, %v2587
      %v2589 = vrot.slane %v2587, 4
      %v2590 = vrot.slane %v2523, 5
      %v2591 = vsel %vm1211, %v2589, %v2590
      %v2592 = vrot.slane %v2524, 5
      %v2593 = vrot.slane %v2592, 4
      %v2594 = vrot.slane %v2525, 5
      %v2595 = vsel %vm1211, %v2593, %v2594
      %v2596 = vrot.slane %v2594, 4
      %v2597 = vrot.slane %v2526, 5
      %v2598 = vsel %vm1211, %v2596, %v2597
      %v2599 = vrot.slane %v2527, 5
      %v2600 = vrot.slane %v2599, 4
      %v2601 = vrot.slane %v2528, 5
      %v2602 = vsel %vm1211, %v2600, %v2601
      %v2603 = vrot.slane %v2601, 4
      %v2604 = vrot.slane %v2529, 5
      %v2605 = vsel %vm1211, %v2603, %v2604
      %v2606 = vrot.slane %v2530, 5
      %v2607 = vrot.slane %v2606, 4
      %v2608 = vrot.slane %v2531, 5
      %v2609 = vsel %vm1211, %v2607, %v2608
      %v2610 = vrot.slane %v2608, 4
      %v2611 = vrot.slane %v2532, 5
      %v2612 = vsel %vm1211, %v2610, %v2611
      %v2613 = vrot.slane %v2533, 5
      %v2614 = vrot.slane %v2613, 4
      %v2615 = vrot.slane %v2534, 5
      %v2616 = vsel %vm1211, %v2614, %v2615
      %v2617 = vrot.slane %v2615, 4
      %v2618 = vrot.slane %v2535, 5
      %v2619 = vsel %vm1211, %v2617, %v2618
      %v2620 = vrot.slane %v2536, 5
      %v2621 = vrot.slane %v2620, 4
      %v2622 = vrot.slane %v2537, 5
      %v2623 = vsel %vm1211, %v2621, %v2622
      %v2624 = vrot.slane %v2622, 4
      %v2625 = vrot.slane %v2538, 5
      %v2626 = vsel %vm1211, %v2624, %v2625
      %v2627 = vrot.slane %v2539, 5
      %v2628 = vrot.slane %v2627, 4
      %v2629 = vrot.slane %v2540, 5
      %v2630 = vsel %vm1211, %v2628, %v2629
      %v2631 = vrot.slane %v2629, 4
      %v2632 = vrot.slane %v2541, 5
      %v2633 = vsel %vm1211, %v2631, %v2632
      %v2634 = vrot.slane %v2542, 5
      %v2635 = vrot.slane %v2634, 4
      %v2636 = vrot.slane %v2543, 5
      %v2637 = vsel %vm1211, %v2635, %v2636
      %v2638 = vrot.slane %v2636, 4
      %v2639 = vrot.slane %v2544, 5
      %v2640 = vsel %vm1211, %v2638, %v2639
      %v2641 = vrot.slane %v2545, 5
      %v2642 = vrot.slane %v2641, 4
      %v2643 = vrot.slane %v2546, 5
      %v2644 = vsel %vm1211, %v2642, %v2643
      %v2645 = vrot.slane %v2643, 4
      %v2646 = vrot.slane %v2547, 5
      %v2647 = vsel %vm1211, %v2645, %v2646
      %2648 = vrot.lane.b32.xlu0 %v2581, 32
      %v2649 = vpop.permute.xlu0 %2648
      %2650 = vrot.lane.b32.xlu0 %v2584, 32
      %v2651 = vpop.permute.xlu0 %2650
      %2652 = vrot.lane.b32.xlu0 %v2588, 32
      %v2653 = vpop.permute.xlu0 %2652
      %2654 = vrot.lane.b32.xlu0 %v2591, 32
      %v2655 = vpop.permute.xlu0 %2654
      %2656 = vrot.lane.b32.xlu0 %v2595, 32
      %v2657 = vpop.permute.xlu0 %2656
      %2658 = vrot.lane.b32.xlu0 %v2598, 32
      %v2659 = vpop.permute.xlu0 %2658
      %2660 = vrot.lane.b32.xlu0 %v2602, 32
      %v2661 = vpop.permute.xlu0 %2660
      %2662 = vrot.lane.b32.xlu0 %v2605, 32
      %v2663 = vpop.permute.xlu0 %2662
      %2664 = vrot.lane.b32.xlu0 %v2609, 32
      %v2665 = vpop.permute.xlu0 %2664
      %2666 = vrot.lane.b32.xlu0 %v2612, 32
      %v2667 = vpop.permute.xlu0 %2666
      %2668 = vrot.lane.b32.xlu0 %v2616, 32
      %v2669 = vpop.permute.xlu0 %2668
      %2670 = vrot.lane.b32.xlu0 %v2619, 32
      %v2671 = vpop.permute.xlu0 %2670
      %2672 = vrot.lane.b32.xlu0 %v2623, 32
      %v2673 = vpop.permute.xlu0 %2672
      %2674 = vrot.lane.b32.xlu0 %v2626, 32
      %v2675 = vpop.permute.xlu0 %2674
      %2676 = vrot.lane.b32.xlu0 %v2630, 32
      %v2677 = vpop.permute.xlu0 %2676
      %2678 = vrot.lane.b32.xlu0 %v2633, 32
      %v2679 = vpop.permute.xlu0 %2678
      %2680 = vrot.lane.b32.xlu0 %v2637, 32
      %v2681 = vpop.permute.xlu0 %2680
      %2682 = vrot.lane.b32.xlu0 %v2640, 32
      %v2683 = vpop.permute.xlu0 %2682
      %2684 = vrot.lane.b32.xlu0 %v2644, 32
      %v2685 = vpop.permute.xlu0 %2684
      %2686 = vrot.lane.b32.xlu0 %v2647, 32
      %v2687 = vpop.permute.xlu0 %2686
      %vm2708 = vcmask 290048
      %2709 = vst.msk [vmem:[#allocation3] sm:$0xf] %vm2708, %v2649
      %2710 = vst.msk [vmem:[#allocation3 + $0x4] sm:$0xf] %vm2708, %v2651
      %2711 = vst.msk [vmem:[#allocation3 + $0x8] sm:$0xf] %vm2708, %v2653
      %2712 = vst.msk [vmem:[#allocation3 + $0xc] sm:$0xf] %vm2708, %v2655
      %2713 = vst.msk [vmem:[#allocation3 + $0x10] sm:$0xf] %vm2708, %v2657
      %2714 = vst.msk [vmem:[#allocation3 + $0x14] sm:$0xf] %vm2708, %v2659
      %2715 = vst.msk [vmem:[#allocation3 + $0x18] sm:$0xf] %vm2708, %v2661
      %2716 = vst.msk [vmem:[#allocation3 + $0x1c] sm:$0xf] %vm2708, %v2663
      %2717 = vst.msk [vmem:[#allocation3 + $0x20] sm:$0xf] %vm2708, %v2665
      %2718 = vst.msk [vmem:[#allocation3 + $0x24] sm:$0xf] %vm2708, %v2667
      %2719 = vst.msk [vmem:[#allocation3 + $0x28] sm:$0xf] %vm2708, %v2669
      %2720 = vst.msk [vmem:[#allocation3 + $0x2c] sm:$0xf] %vm2708, %v2671
      %2721 = vst.msk [vmem:[#allocation3 + $0x30] sm:$0xf] %vm2708, %v2673
      %2722 = vst.msk [vmem:[#allocation3 + $0x34] sm:$0xf] %vm2708, %v2675
      %2723 = vst.msk [vmem:[#allocation3 + $0x38] sm:$0xf] %vm2708, %v2677
      %2724 = vst.msk [vmem:[#allocation3 + $0x3c] sm:$0xf] %vm2708, %v2679
      %2725 = vst.msk [vmem:[#allocation3 + $0x40] sm:$0xf] %vm2708, %v2681
      %2726 = vst.msk [vmem:[#allocation3 + $0x44] sm:$0xf] %vm2708, %v2683
      %2727 = vst.msk [vmem:[#allocation3 + $0x48] sm:$0xf] %vm2708, %v2685
      %2728 = vst.msk [vmem:[#allocation3 + $0x4c] sm:$0xf] %vm2708, %v2687
      %v2729 = vld [vmem:[#allocation3] sm:$0xf]
      %v2730 = vld [vmem:[#allocation3 + $0x4] sm:$0xf]
      %v2731 = vld [vmem:[#allocation3 + $0x8] sm:$0xf]
      %v2732 = vld [vmem:[#allocation3 + $0xc] sm:$0xf]
      %v2733 = vld [vmem:[#allocation3 + $0x10] sm:$0xf]
      %v2734 = vld [vmem:[#allocation3 + $0x14] sm:$0xf]
      %v2735 = vld [vmem:[#allocation3 + $0x18] sm:$0xf]
      %v2736 = vld [vmem:[#allocation3 + $0x1c] sm:$0xf]
      %v2737 = vld [vmem:[#allocation3 + $0x20] sm:$0xf]
      %v2738 = vld [vmem:[#allocation3 + $0x24] sm:$0xf]
      %v2739 = vld [vmem:[#allocation3 + $0x28] sm:$0xf]
      %v2740 = vld [vmem:[#allocation3 + $0x2c] sm:$0xf]
      %v2741 = vld [vmem:[#allocation3 + $0x30] sm:$0xf]
      %v2742 = vld [vmem:[#allocation3 + $0x34] sm:$0xf]
      %v2743 = vld [vmem:[#allocation3 + $0x38] sm:$0xf]
      %v2744 = vld [vmem:[#allocation3 + $0x3c] sm:$0xf]
      %v2745 = vld [vmem:[#allocation3 + $0x40] sm:$0xf]
      %v2746 = vld [vmem:[#allocation3 + $0x44] sm:$0xf]
      %v2747 = vld [vmem:[#allocation3 + $0x48] sm:$0xf]
      %v2748 = vld [vmem:[#allocation3 + $0x4c] sm:$0xf]
      %v2749 = vld [vmem:[%s1] sm:$0xf]
      %v2750 = vld [vmem:[%s1 + $0x4] sm:$0xf]
      %v2751 = vld [vmem:[%s1 + $0x8] sm:$0xf]
      %v2752 = vld [vmem:[%s1 + $0xc] sm:$0xf]
      %v2753 = vld [vmem:[%s1 + $0x10] sm:$0x3]
      %v2754 = vld [vmem:[%s2] sm:$0x1]
      %v2756 = vlaneseq
      %v2757 = vshrl.u32 %v2756, 7
      %v2758 = vsub.s32 0, %v2757
      %v2759 = vrot.slane %v2754, %v2758
      %v2781 = vunpack.c.l.b16 %v2729
      %v2782 = vunpack.c.l.b16 %v2730
      %v2783 = vunpack.c.l.b16 %v2731
      %v2784 = vunpack.c.l.b16 %v2732
      %v2785 = vunpack.c.l.b16 %v2733
      %v2786 = vunpack.c.l.b16 %v2734
      %v2787 = vunpack.c.l.b16 %v2735
      %v2788 = vunpack.c.l.b16 %v2736
      %v2789 = vunpack.c.l.b16 %v2737
      %v2790 = vunpack.c.l.b16 %v2738
      %v2791 = vunpack.c.l.b16 %v2739
      %v2792 = vunpack.c.l.b16 %v2740
      %v2793 = vunpack.c.l.b16 %v2741
      %v2794 = vunpack.c.l.b16 %v2742
      %v2795 = vunpack.c.l.b16 %v2743
      %v2796 = vunpack.c.l.b16 %v2744
      %v2797 = vunpack.c.l.b16 %v2745
      %v2798 = vunpack.c.l.b16 %v2746
      %v2799 = vunpack.c.l.b16 %v2747
      %v2800 = vunpack.c.l.b16 %v2748
      %v2801 = vpack.c.b16 %v2782, %v2781
      %v2802 = vpack.c.b16 %v2784, %v2783
      %v2803 = vpack.c.b16 %v2786, %v2785
      %v2804 = vpack.c.b16 %v2788, %v2787
      %v2805 = vpack.c.b16 %v2790, %v2789
      %v2806 = vpack.c.b16 %v2792, %v2791
      %v2807 = vpack.c.b16 %v2794, %v2793
      %v2808 = vpack.c.b16 %v2796, %v2795
      %v2809 = vpack.c.b16 %v2798, %v2797
      %v2810 = vpack.c.b16 %v2800, %v2799
      %v2816 = vunpack.c.l.b16 %v2749
      %v2817 = vunpack.c.l.b16 %v2750
      %v2818 = vunpack.c.l.b16 %v2751
      %v2819 = vunpack.c.l.b16 %v2752
      %v2820 = vunpack.c.l.b16 %v2753
      %v2821 = vpack.c.b16 %v2817, %v2816
      %v2822 = vpack.c.b16 %v2819, %v2818
      %v2823 = vpack.c.b16 %v2820, %v2820
      %vm2826 = vcmask 293888
      %v2828 = vsel %vm2826, %v2801, 0
      %v2831 = vsel %vm2826, %v2802, 0
      %v2834 = vsel %vm2826, %v2803, 0
      %v2837 = vsel %vm2826, %v2804, 0
      %v2840 = vsel %vm2826, %v2805, 0
      %v2843 = vsel %vm2826, %v2806, 0
      %v2846 = vsel %vm2826, %v2807, 0
      %v2849 = vsel %vm2826, %v2808, 0
      %v2852 = vsel %vm2826, %v2809, 0
      %v2855 = vsel %vm2826, %v2810, 0
      %vm2857 = vcmask 1041408
      %v2859 = vsel %vm2857, %v2823, 0
      %2861 = vmatprep.subr.bf16.mxu0 0
      %2862 = vmatpush1.bf16.msra.mxu0 0
      %2863 = vmatprep.subr.bf16.mxu0 0
      %2864 = vmatpush1.bf16.msra.mxu0 0
      %2865 = vmatprep.subr.bf16.mxu0 0
      %2866 = vmatpush1.bf16.msra.mxu0 0
      %2867 = vmatprep.subr.bf16.mxu0 0
      %2868 = vmatpush1.bf16.msra.mxu0 0
      %2869 = vmatprep.subr.bf16.mxu0 0
      %2870 = vmatpush1.bf16.msra.mxu0 0
      %2871 = vmatprep.subr.bf16.mxu0 0
      %2872 = vmatpush1.bf16.msra.mxu0 %v2859
      %2873 = vmatprep.subr.bf16.mxu0 0
      %2874 = vmatpush1.bf16.msra.mxu0 %v2822
      %2875 = vmatprep.subr.bf16.mxu0 0
      %2876 = vmatpush1.bf16.msra.mxu0 %v2821
      %2877 = vmatprep.subr.bf16.mxu0 0
      %2878 = vmatpush2.bf16.msra.mxu0 0
      %2879 = vmatprep.subr.bf16.mxu0 0
      %2880 = vmatpush2.bf16.msra.mxu0 0
      %2881 = vmatprep.subr.bf16.mxu0 0
      %2882 = vmatpush2.bf16.msra.mxu0 0
      %2883 = vmatprep.subr.bf16.mxu0 0
      %2884 = vmatpush2.bf16.msra.mxu0 0
      %2885 = vmatprep.subr.bf16.mxu0 0
      %2886 = vmatpush2.bf16.msra.mxu0 0
      %2887 = vmatprep.subr.bf16.mxu0 0
      %2888 = vmatpush2.bf16.msra.mxu0 0
      %2889 = vmatprep.subr.bf16.mxu0 0
      %2890 = vmatpush2.bf16.msra.mxu0 0
      %2891 = vmatprep.subr.bf16.mxu0 0
      %2892 = vmatpush2.bf16.msra.mxu0 0
      %2893 = vmatprep.mubr.bf16.mxu0 0
      %2894 = vmatmul.mubr.bf16.gmra.mxu0 %v2828
      %v2895 = vpop.f32.mrf.mxu0
      %v2896 = vadd.f32 %v2759, %v2895
      %v2897 = vpop.f32.mrf.mxu0
      %v2898 = vpop.f32.mrf.mxu0
      %v2899 = vadd.f32 %v2759, %v2898
      %v2900 = vpop.f32.mrf.mxu0
      %2901 = vmatprep.mubr.bf16.mxu0 0
      %2902 = vmatmul.mubr.bf16.gmra.mxu0 %v2831
      %v2903 = vpop.f32.mrf.mxu0
      %v2904 = vadd.f32 %v2759, %v2903
      %v2905 = vpop.f32.mrf.mxu0
      %v2906 = vpop.f32.mrf.mxu0
      %v2907 = vadd.f32 %v2759, %v2906
      %v2908 = vpop.f32.mrf.mxu0
      %2909 = vmatprep.mubr.bf16.mxu0 0
      %2910 = vmatmul.mubr.bf16.gmra.mxu0 %v2834
      %v2911 = vpop.f32.mrf.mxu0
      %v2912 = vadd.f32 %v2759, %v2911
      %v2913 = vpop.f32.mrf.mxu0
      %v2914 = vpop.f32.mrf.mxu0
      %v2915 = vadd.f32 %v2759, %v2914
      %v2916 = vpop.f32.mrf.mxu0
      %2917 = vmatprep.mubr.bf16.mxu0 0
      %2918 = vmatmul.mubr.bf16.gmra.mxu0 %v2837
      %v2919 = vpop.f32.mrf.mxu0
      %v2920 = vadd.f32 %v2759, %v2919
      %v2921 = vpop.f32.mrf.mxu0
      %v2922 = vpop.f32.mrf.mxu0
      %v2923 = vadd.f32 %v2759, %v2922
      %v2924 = vpop.f32.mrf.mxu0
      %2925 = vmatprep.mubr.bf16.mxu0 0
      %2926 = vmatmul.mubr.bf16.gmra.mxu0 %v2840
      %v2927 = vpop.f32.mrf.mxu0
      %v2928 = vadd.f32 %v2759, %v2927
      %v2929 = vpop.f32.mrf.mxu0
      %v2930 = vpop.f32.mrf.mxu0
      %v2931 = vadd.f32 %v2759, %v2930
      %v2932 = vpop.f32.mrf.mxu0
      %2933 = vmatprep.mubr.bf16.mxu0 0
      %2934 = vmatmul.mubr.bf16.gmra.mxu0 %v2843
      %v2935 = vpop.f32.mrf.mxu0
      %v2936 = vadd.f32 %v2759, %v2935
      %v2937 = vpop.f32.mrf.mxu0
      %v2938 = vpop.f32.mrf.mxu0
      %v2939 = vadd.f32 %v2759, %v2938
      %v2940 = vpop.f32.mrf.mxu0
      %2941 = vmatprep.mubr.bf16.mxu0 0
      %2942 = vmatmul.mubr.bf16.gmra.mxu0 %v2846
      %v2943 = vpop.f32.mrf.mxu0
      %v2944 = vadd.f32 %v2759, %v2943
      %v2945 = vpop.f32.mrf.mxu0
      %v2946 = vpop.f32.mrf.mxu0
      %v2947 = vadd.f32 %v2759, %v2946
      %v2948 = vpop.f32.mrf.mxu0
      %2949 = vmatprep.mubr.bf16.mxu0 0
      %2950 = vmatmul.mubr.bf16.gmra.mxu0 %v2849
      %v2951 = vpop.f32.mrf.mxu0
      %v2952 = vadd.f32 %v2759, %v2951
      %v2953 = vpop.f32.mrf.mxu0
      %v2954 = vpop.f32.mrf.mxu0
      %v2955 = vadd.f32 %v2759, %v2954
      %v2956 = vpop.f32.mrf.mxu0
      %2957 = vmatprep.mubr.bf16.mxu0 0
      %2958 = vmatmul.mubr.bf16.gmra.mxu0 %v2852
      %v2959 = vpop.f32.mrf.mxu0
      %v2960 = vadd.f32 %v2759, %v2959
      %v2961 = vpop.f32.mrf.mxu0
      %v2962 = vpop.f32.mrf.mxu0
      %v2963 = vadd.f32 %v2759, %v2962
      %v2964 = vpop.f32.mrf.mxu0
      %2965 = vmatprep.mubr.bf16.mxu0 0
      %2966 = vmatmul.mubr.bf16.gmra.mxu0 %v2855
      %v2967 = vpop.f32.mrf.mxu0
      %v2968 = vadd.f32 %v2759, %v2967
      %v2969 = vpop.f32.mrf.mxu0
      %v2970 = vpop.f32.mrf.mxu0
      %v2971 = vadd.f32 %v2759, %v2970
      %v2972 = vpop.f32.mrf.mxu0
      %2973 = vdwg.mxu0
      %v2974 = vmax.f32 %v2896, 0.0
      %v2975 = vmax.f32 %v2899, 0.0
      %v2976 = vmax.f32 %v2904, 0.0
      %v2977 = vmax.f32 %v2907, 0.0
      %v2978 = vmax.f32 %v2912, 0.0
      %v2979 = vmax.f32 %v2915, 0.0
      %v2980 = vmax.f32 %v2920, 0.0
      %v2981 = vmax.f32 %v2923, 0.0
      %v2982 = vmax.f32 %v2928, 0.0
      %v2983 = vmax.f32 %v2931, 0.0
      %v2984 = vmax.f32 %v2936, 0.0
      %v2985 = vmax.f32 %v2939, 0.0
      %v2986 = vmax.f32 %v2944, 0.0
      %v2987 = vmax.f32 %v2947, 0.0
      %v2988 = vmax.f32 %v2952, 0.0
      %v2989 = vmax.f32 %v2955, 0.0
      %v2990 = vmax.f32 %v2960, 0.0
      %v2991 = vmax.f32 %v2963, 0.0
      %v2992 = vmax.f32 %v2968, 0.0
      %v2993 = vmax.f32 %v2971, 0.0
      %s2994 = ssub.s32 %s249, 1
      %v2995 = vstv %s2994
      %v2996 = vadd.s32 %v2995, 1
      %v2997 = vadd.s32 %v2995, 2
      %v2998 = vadd.s32 %v2995, 3
      %v2999 = vadd.s32 %v2995, 4
      %v3000 = vadd.s32 %v2995, 5
      %v3001 = vadd.s32 %v2995, 6
      %v3002 = vadd.s32 %v2995, 7
      %v3003 = vadd.s32 %v2995, 8
      %v3004 = vadd.s32 %v2995, 9
      %vm3005 = vcmp.ge.s32.totalorder %v2995, 0
      %vm3006 = vcmp.ge.s32.totalorder %v2996, 0
      %vm3007 = vcmp.ge.s32.totalorder %v2997, 0
      %vm3008 = vcmp.ge.s32.totalorder %v2998, 0
      %vm3009 = vcmp.ge.s32.totalorder %v2999, 0
      %vm3010 = vcmp.ge.s32.totalorder %v3000, 0
      %vm3011 = vcmp.ge.s32.totalorder %v3001, 0
      %vm3012 = vcmp.ge.s32.totalorder %v3002, 0
      %vm3013 = vcmp.ge.s32.totalorder %v3003, 0
      %vm3014 = vcmp.ge.s32.totalorder %v3004, 0
      %vm3015 = vcmp.lt.s32.totalorder %v2995, 16
      %vm3016 = vcmp.lt.s32.totalorder %v2996, 16
      %vm3017 = vcmp.lt.s32.totalorder %v2997, 16
      %vm3018 = vcmp.lt.s32.totalorder %v2998, 16
      %vm3019 = vcmp.lt.s32.totalorder %v2999, 16
      %vm3020 = vcmp.lt.s32.totalorder %v3000, 16
      %vm3021 = vcmp.lt.s32.totalorder %v3001, 16
      %vm3022 = vcmp.lt.s32.totalorder %v3002, 16
      %vm3023 = vcmp.lt.s32.totalorder %v3003, 16
      %vm3024 = vcmp.lt.s32.totalorder %v3004, 16
      %vm3025 = vmand %vm3005, %vm3015
      %vm3026 = vmand %vm3006, %vm3016
      %vm3027 = vmand %vm3007, %vm3017
      %vm3028 = vmand %vm3008, %vm3018
      %vm3029 = vmand %vm3009, %vm3019
      %vm3030 = vmand %vm3010, %vm3020
      %vm3031 = vmand %vm3011, %vm3021
      %vm3032 = vmand %vm3012, %vm3022
      %vm3033 = vmand %vm3013, %vm3023
      %vm3034 = vmand %vm3014, %vm3024
      %v3035 = vsel %vm3025, 1, 0
      %v3036 = vsel %vm3026, 1, 0
      %v3037 = vsel %vm3027, 1, 0
      %v3038 = vsel %vm3028, 1, 0
      %v3039 = vsel %vm3029, 1, 0
      %v3040 = vsel %vm3030, 1, 0
      %v3041 = vsel %vm3031, 1, 0
      %v3042 = vsel %vm3032, 1, 0
      %v3043 = vsel %vm3033, 1, 0
      %v3044 = vsel %vm3034, 1, 0
      %vm3045 = vcmp.eq.s32.totalorder %v3035, 1
      %vm3046 = vcmp.eq.s32.totalorder %v3036, 1
      %vm3047 = vcmp.eq.s32.totalorder %v3037, 1
      %vm3048 = vcmp.eq.s32.totalorder %v3038, 1
      %vm3049 = vcmp.eq.s32.totalorder %v3039, 1
      %vm3050 = vcmp.eq.s32.totalorder %v3040, 1
      %vm3051 = vcmp.eq.s32.totalorder %v3041, 1
      %vm3052 = vcmp.eq.s32.totalorder %v3042, 1
      %vm3053 = vcmp.eq.s32.totalorder %v3043, 1
      %vm3054 = vcmp.eq.s32.totalorder %v3044, 1
      %v3055 = vsel %vm3045, %v2974, 0.0
      %v3056 = vsel %vm3045, %v2975, 0.0
      %v3057 = vsel %vm3046, %v2976, 0.0
      %v3058 = vsel %vm3046, %v2977, 0.0
      %v3059 = vsel %vm3047, %v2978, 0.0
      %v3060 = vsel %vm3047, %v2979, 0.0
      %v3061 = vsel %vm3048, %v2980, 0.0
      %v3062 = vsel %vm3048, %v2981, 0.0
      %v3063 = vsel %vm3049, %v2982, 0.0
      %v3064 = vsel %vm3049, %v2983, 0.0
      %v3065 = vsel %vm3050, %v2984, 0.0
      %v3066 = vsel %vm3050, %v2985, 0.0
      %v3067 = vsel %vm3051, %v2986, 0.0
      %v3068 = vsel %vm3051, %v2987, 0.0
      %v3069 = vsel %vm3052, %v2988, 0.0
      %v3070 = vsel %vm3052, %v2989, 0.0
      %v3071 = vsel %vm3053, %v2990, 0.0
      %v3072 = vsel %vm3053, %v2991, 0.0
      %v3073 = vsel %vm3054, %v2992, 0.0
      %v3074 = vsel %vm3054, %v2993, 0.0
      %vm3075 = vcmask 57344
      %vm3076 = vmand %vm3075, %vm251
      %v3077 = vld [vmem:[#allocation4] sm:$0x1]
      %v3078 = vsel %vm3076, 0, %v3077
      %3079 = vst [vmem:[#allocation4] sm:$0x1] %v3078
      %v3080 = vld [vmem:[#allocation4 + $0xc] sm:$0x1]
      %v3081 = vsel %vm3076, 0, %v3080
      %3082 = vst [vmem:[#allocation4 + $0xc] sm:$0x1] %v3081
      %v3083 = vld [vmem:[#allocation4 + $0x18] sm:$0x1]
      %v3084 = vsel %vm3076, 0, %v3083
      %3085 = vst [vmem:[#allocation4 + $0x18] sm:$0x1] %v3084
      %v3086 = vld [vmem:[#allocation4 + $0x24] sm:$0x1]
      %v3087 = vsel %vm3076, 0, %v3086
      %3088 = vst [vmem:[#allocation4 + $0x24] sm:$0x1] %v3087
      %v3089 = vld [vmem:[#allocation4 + $0x30] sm:$0x1]
      %v3090 = vsel %vm3076, 0, %v3089
      %3091 = vst [vmem:[#allocation4 + $0x30] sm:$0x1] %v3090
      %v3092 = vld [vmem:[#allocation4 + $0x3c] sm:$0x1]
      %v3093 = vsel %vm3076, 0, %v3092
      %3094 = vst [vmem:[#allocation4 + $0x3c] sm:$0x1] %v3093
      %v3095 = vld [vmem:[#allocation4 + $0x48] sm:$0x1]
      %v3096 = vsel %vm3076, 0, %v3095
      %3097 = vst [vmem:[#allocation4 + $0x48] sm:$0x1] %v3096
      %v3098 = vld [vmem:[#allocation4 + $0x54] sm:$0x1]
      %v3099 = vsel %vm3076, 0, %v3098
      %3100 = vst [vmem:[#allocation4 + $0x54] sm:$0x1] %v3099
      %v3101 = vld [vmem:[#allocation4 + $0x60] sm:$0x1]
      %v3102 = vsel %vm3076, 0, %v3101
      %3103 = vst [vmem:[#allocation4 + $0x60] sm:$0x1] %v3102
      %v3104 = vld [vmem:[#allocation4 + $0x6c] sm:$0x1]
      %v3105 = vsel %vm3076, 0, %v3104
      %3106 = vst [vmem:[#allocation4 + $0x6c] sm:$0x1] %v3105
      %vm3107 = vmand %vm3075, %vm289
      %v3108 = vld [vmem:[#allocation4 + $0x8] sm:$0x1]
      %v3109 = vsel %vm3107, 0, %v3108
      %3110 = vst [vmem:[#allocation4 + $0x8] sm:$0x1] %v3109
      %v3111 = vld [vmem:[#allocation4 + $0x14] sm:$0x1]
      %v3112 = vsel %vm3107, 0, %v3111
      %3113 = vst [vmem:[#allocation4 + $0x14] sm:$0x1] %v3112
      %v3114 = vld [vmem:[#allocation4 + $0x20] sm:$0x1]
      %v3115 = vsel %vm3107, 0, %v3114
      %3116 = vst [vmem:[#allocation4 + $0x20] sm:$0x1] %v3115
      %v3117 = vld [vmem:[#allocation4 + $0x2c] sm:$0x1]
      %v3118 = vsel %vm3107, 0, %v3117
      %3119 = vst [vmem:[#allocation4 + $0x2c] sm:$0x1] %v3118
      %v3120 = vld [vmem:[#allocation4 + $0x38] sm:$0x1]
      %v3121 = vsel %vm3107, 0, %v3120
      %3122 = vst [vmem:[#allocation4 + $0x38] sm:$0x1] %v3121
      %v3123 = vld [vmem:[#allocation4 + $0x44] sm:$0x1]
      %v3124 = vsel %vm3107, 0, %v3123
      %3125 = vst [vmem:[#allocation4 + $0x44] sm:$0x1] %v3124
      %v3126 = vld [vmem:[#allocation4 + $0x50] sm:$0x1]
      %v3127 = vsel %vm3107, 0, %v3126
      %3128 = vst [vmem:[#allocation4 + $0x50] sm:$0x1] %v3127
      %v3129 = vld [vmem:[#allocation4 + $0x5c] sm:$0x1]
      %v3130 = vsel %vm3107, 0, %v3129
      %3131 = vst [vmem:[#allocation4 + $0x5c] sm:$0x1] %v3130
      %v3132 = vld [vmem:[#allocation4 + $0x68] sm:$0x1]
      %v3133 = vsel %vm3107, 0, %v3132
      %3134 = vst [vmem:[#allocation4 + $0x68] sm:$0x1] %v3133
      %v3135 = vld [vmem:[#allocation4 + $0x74] sm:$0x1]
      %v3136 = vsel %vm3107, 0, %v3135
      %3137 = vst [vmem:[#allocation4 + $0x74] sm:$0x1] %v3136
      %v3138 = vpack.c.bf16 %v3056, %v3055
      %v3139 = vpack.c.bf16 %v3058, %v3057
      %v3140 = vpack.c.bf16 %v3060, %v3059
      %v3141 = vpack.c.bf16 %v3062, %v3061
      %v3142 = vpack.c.bf16 %v3064, %v3063
      %v3143 = vpack.c.bf16 %v3066, %v3065
      %v3144 = vpack.c.bf16 %v3068, %v3067
      %v3145 = vpack.c.bf16 %v3070, %v3069
      %v3146 = vpack.c.bf16 %v3072, %v3071
      %v3147 = vpack.c.bf16 %v3074, %v3073
      %v3158 = vunpack.c.l.b16 %v3138
      %v3159 = vunpack.c.h.b16 %v3138
      %v3160 = vunpack.c.l.b16 %v3139
      %v3161 = vunpack.c.h.b16 %v3139
      %v3162 = vunpack.c.l.b16 %v3140
      %v3163 = vunpack.c.h.b16 %v3140
      %v3164 = vunpack.c.l.b16 %v3141
      %v3165 = vunpack.c.h.b16 %v3141
      %v3166 = vunpack.c.l.b16 %v3142
      %v3167 = vunpack.c.h.b16 %v3142
      %v3168 = vunpack.c.l.b16 %v3143
      %v3169 = vunpack.c.h.b16 %v3143
      %v3170 = vunpack.c.l.b16 %v3144
      %v3171 = vunpack.c.h.b16 %v3144
      %v3172 = vunpack.c.l.b16 %v3145
      %v3173 = vunpack.c.h.b16 %v3145
      %v3174 = vunpack.c.l.b16 %v3146
      %v3175 = vunpack.c.h.b16 %v3146
      %v3176 = vunpack.c.l.b16 %v3147
      %v3177 = vunpack.c.h.b16 %v3147
      %v3178 = vpack.c.b16 %v3158, %v3158
      %v3179 = vpack.c.b16 %v3159, %v3159
      %v3180 = vpack.c.b16 %v3160, %v3160
      %v3181 = vpack.c.b16 %v3161, %v3161
      %v3182 = vpack.c.b16 %v3162, %v3162
      %v3183 = vpack.c.b16 %v3163, %v3163
      %v3184 = vpack.c.b16 %v3164, %v3164
      %v3185 = vpack.c.b16 %v3165, %v3165
      %v3186 = vpack.c.b16 %v3166, %v3166
      %v3187 = vpack.c.b16 %v3167, %v3167
      %v3188 = vpack.c.b16 %v3168, %v3168
      %v3189 = vpack.c.b16 %v3169, %v3169
      %v3190 = vpack.c.b16 %v3170, %v3170
      %v3191 = vpack.c.b16 %v3171, %v3171
      %v3192 = vpack.c.b16 %v3172, %v3172
      %v3193 = vpack.c.b16 %v3173, %v3173
      %v3194 = vpack.c.b16 %v3174, %v3174
      %v3195 = vpack.c.b16 %v3175, %v3175
      %v3196 = vpack.c.b16 %v3176, %v3176
      %v3197 = vpack.c.b16 %v3177, %v3177
      %v3199 = vshrl.u32 %v3178, 16
      %v3201 = vrot.slane %v3199, 7
      %v3202 = vshll.u32 %v3178, 16
      %v3204 = vor.u32 %v3201, %v3202
      %v3205 = vrot.slane %v3201, 4
      %v3207 = vshrl.u32 %v3179, 16
      %v3209 = vrot.slane %v3207, 7
      %v3210 = vshll.u32 %v3179, 16
      %v3212 = vor.u32 %v3209, %v3210
      %v3213 = vsel %vm347, %v3205, %v3212
      %v3214 = vrot.slane %v3209, 4
      %v3216 = vshrl.u32 %v3180, 16
      %v3218 = vrot.slane %v3216, 7
      %v3219 = vshll.u32 %v3180, 16
      %v3221 = vor.u32 %v3218, %v3219
      %v3222 = vrot.slane %v3218, 4
      %v3224 = vshrl.u32 %v3181, 16
      %v3226 = vrot.slane %v3224, 7
      %v3227 = vshll.u32 %v3181, 16
      %v3229 = vor.u32 %v3226, %v3227
      %v3230 = vsel %vm347, %v3222, %v3229
      %v3231 = vrot.slane %v3226, 4
      %v3233 = vshrl.u32 %v3182, 16
      %v3235 = vrot.slane %v3233, 7
      %v3236 = vshll.u32 %v3182, 16
      %v3238 = vor.u32 %v3235, %v3236
      %v3239 = vrot.slane %v3235, 4
      %v3241 = vshrl.u32 %v3183, 16
      %v3243 = vrot.slane %v3241, 7
      %v3244 = vshll.u32 %v3183, 16
      %v3246 = vor.u32 %v3243, %v3244
      %v3247 = vsel %vm347, %v3239, %v3246
      %v3248 = vrot.slane %v3243, 4
      %v3250 = vshrl.u32 %v3184, 16
      %v3252 = vrot.slane %v3250, 7
      %v3253 = vshll.u32 %v3184, 16
      %v3255 = vor.u32 %v3252, %v3253
      %v3256 = vrot.slane %v3252, 4
      %v3258 = vshrl.u32 %v3185, 16
      %v3260 = vrot.slane %v3258, 7
      %v3261 = vshll.u32 %v3185, 16
      %v3263 = vor.u32 %v3260, %v3261
      %v3264 = vsel %vm347, %v3256, %v3263
      %v3265 = vrot.slane %v3260, 4
      %v3267 = vshrl.u32 %v3186, 16
      %v3269 = vrot.slane %v3267, 7
      %v3270 = vshll.u32 %v3186, 16
      %v3272 = vor.u32 %v3269, %v3270
      %v3273 = vrot.slane %v3269, 4
      %v3275 = vshrl.u32 %v3187, 16
      %v3277 = vrot.slane %v3275, 7
      %v3278 = vshll.u32 %v3187, 16
      %v3280 = vor.u32 %v3277, %v3278
      %v3281 = vsel %vm347, %v3273, %v3280
      %v3282 = vrot.slane %v3277, 4
      %v3284 = vshrl.u32 %v3188, 16
      %v3286 = vrot.slane %v3284, 7
      %v3287 = vshll.u32 %v3188, 16
      %v3289 = vor.u32 %v3286, %v3287
      %v3290 = vrot.slane %v3286, 4
      %v3292 = vshrl.u32 %v3189, 16
      %v3294 = vrot.slane %v3292, 7
      %v3295 = vshll.u32 %v3189, 16
      %v3297 = vor.u32 %v3294, %v3295
      %v3298 = vsel %vm347, %v3290, %v3297
      %v3299 = vrot.slane %v3294, 4
      %v3301 = vshrl.u32 %v3190, 16
      %v3303 = vrot.slane %v3301, 7
      %v3304 = vshll.u32 %v3190, 16
      %v3306 = vor.u32 %v3303, %v3304
      %v3307 = vrot.slane %v3303, 4
      %v3309 = vshrl.u32 %v3191, 16
      %v3311 = vrot.slane %v3309, 7
      %v3312 = vshll.u32 %v3191, 16
      %v3314 = vor.u32 %v3311, %v3312
      %v3315 = vsel %vm347, %v3307, %v3314
      %v3316 = vrot.slane %v3311, 4
      %v3318 = vshrl.u32 %v3192, 16
      %v3320 = vrot.slane %v3318, 7
      %v3321 = vshll.u32 %v3192, 16
      %v3323 = vor.u32 %v3320, %v3321
      %v3324 = vrot.slane %v3320, 4
      %v3326 = vshrl.u32 %v3193, 16
      %v3328 = vrot.slane %v3326, 7
      %v3329 = vshll.u32 %v3193, 16
      %v3331 = vor.u32 %v3328, %v3329
      %v3332 = vsel %vm347, %v3324, %v3331
      %v3333 = vrot.slane %v3328, 4
      %v3335 = vshrl.u32 %v3194, 16
      %v3337 = vrot.slane %v3335, 7
      %v3338 = vshll.u32 %v3194, 16
      %v3340 = vor.u32 %v3337, %v3338
      %v3341 = vrot.slane %v3337, 4
      %v3343 = vshrl.u32 %v3195, 16
      %v3345 = vrot.slane %v3343, 7
      %v3346 = vshll.u32 %v3195, 16
      %v3348 = vor.u32 %v3345, %v3346
      %v3349 = vsel %vm347, %v3341, %v3348
      %v3350 = vrot.slane %v3345, 4
      %v3352 = vshrl.u32 %v3196, 16
      %v3354 = vrot.slane %v3352, 7
      %v3355 = vshll.u32 %v3196, 16
      %v3357 = vor.u32 %v3354, %v3355
      %v3358 = vrot.slane %v3354, 4
      %v3360 = vshrl.u32 %v3197, 16
      %v3362 = vrot.slane %v3360, 7
      %v3363 = vshll.u32 %v3197, 16
      %v3365 = vor.u32 %v3362, %v3363
      %v3366 = vsel %vm347, %v3358, %v3365
      %v3367 = vrot.slane %v3362, 4
      %vm3398 = vcmask 60416
      %vm3399 = vmand %vm3398, %vm289
      %v3400 = vld [vmem:[#allocation4] sm:$0xf]
      %v3401 = vsel %vm3399, %v3204, %v3400
      %3402 = vst [vmem:[#allocation4] sm:$0xf] %v3401
      %vm3403 = vcmask 60416
      %3404 = vst.msk [vmem:[#allocation4 + $0x4] sm:$0xf] %vm3403, %v3213
      %v3405 = vld [vmem:[#allocation4 + $0x8] sm:$0x1]
      %v3406 = vsel %vm3076, %v3214, %v3405
      %3407 = vst [vmem:[#allocation4 + $0x8] sm:$0x1] %v3406
      %v3408 = vld [vmem:[#allocation4 + $0xc] sm:$0xf]
      %v3409 = vsel %vm3399, %v3221, %v3408
      %3410 = vst [vmem:[#allocation4 + $0xc] sm:$0xf] %v3409
      %3411 = vst.msk [vmem:[#allocation4 + $0x10] sm:$0xf] %vm3403, %v3230
      %v3412 = vld [vmem:[#allocation4 + $0x14] sm:$0x1]
      %v3413 = vsel %vm3076, %v3231, %v3412
      %3414 = vst [vmem:[#allocation4 + $0x14] sm:$0x1] %v3413
      %v3415 = vld [vmem:[#allocation4 + $0x18] sm:$0xf]
      %v3416 = vsel %vm3399, %v3238, %v3415
      %3417 = vst [vmem:[#allocation4 + $0x18] sm:$0xf] %v3416
      %3418 = vst.msk [vmem:[#allocation4 + $0x1c] sm:$0xf] %vm3403, %v3247
      %v3419 = vld [vmem:[#allocation4 + $0x20] sm:$0x1]
      %v3420 = vsel %vm3076, %v3248, %v3419
      %3421 = vst [vmem:[#allocation4 + $0x20] sm:$0x1] %v3420
      %v3422 = vld [vmem:[#allocation4 + $0x24] sm:$0xf]
      %v3423 = vsel %vm3399, %v3255, %v3422
      %3424 = vst [vmem:[#allocation4 + $0x24] sm:$0xf] %v3423
      %3425 = vst.msk [vmem:[#allocation4 + $0x28] sm:$0xf] %vm3403, %v3264
      %v3426 = vld [vmem:[#allocation4 + $0x2c] sm:$0x1]
      %v3427 = vsel %vm3076, %v3265, %v3426
      %3428 = vst [vmem:[#allocation4 + $0x2c] sm:$0x1] %v3427
      %v3429 = vld [vmem:[#allocation4 + $0x30] sm:$0xf]
      %v3430 = vsel %vm3399, %v3272, %v3429
      %3431 = vst [vmem:[#allocation4 + $0x30] sm:$0xf] %v3430
      %3432 = vst.msk [vmem:[#allocation4 + $0x34] sm:$0xf] %vm3403, %v3281
      %v3433 = vld [vmem:[#allocation4 + $0x38] sm:$0x1]
      %v3434 = vsel %vm3076, %v3282, %v3433
      %3435 = vst [vmem:[#allocation4 + $0x38] sm:$0x1] %v3434
      %v3436 = vld [vmem:[#allocation4 + $0x3c] sm:$0xf]
      %v3437 = vsel %vm3399, %v3289, %v3436
      %3438 = vst [vmem:[#allocation4 + $0x3c] sm:$0xf] %v3437
      %3439 = vst.msk [vmem:[#allocation4 + $0x40] sm:$0xf] %vm3403, %v3298
      %v3440 = vld [vmem:[#allocation4 + $0x44] sm:$0x1]
      %v3441 = vsel %vm3076, %v3299, %v3440
      %3442 = vst [vmem:[#allocation4 + $0x44] sm:$0x1] %v3441
      %v3443 = vld [vmem:[#allocation4 + $0x48] sm:$0xf]
      %v3444 = vsel %vm3399, %v3306, %v3443
      %3445 = vst [vmem:[#allocation4 + $0x48] sm:$0xf] %v3444
      %3446 = vst.msk [vmem:[#allocation4 + $0x4c] sm:$0xf] %vm3403, %v3315
      %v3447 = vld [vmem:[#allocation4 + $0x50] sm:$0x1]
      %v3448 = vsel %vm3076, %v3316, %v3447
      %3449 = vst [vmem:[#allocation4 + $0x50] sm:$0x1] %v3448
      %v3450 = vld [vmem:[#allocation4 + $0x54] sm:$0xf]
      %v3451 = vsel %vm3399, %v3323, %v3450
      %3452 = vst [vmem:[#allocation4 + $0x54] sm:$0xf] %v3451
      %3453 = vst.msk [vmem:[#allocation4 + $0x58] sm:$0xf] %vm3403, %v3332
      %v3454 = vld [vmem:[#allocation4 + $0x5c] sm:$0x1]
      %v3455 = vsel %vm3076, %v3333, %v3454
      %3456 = vst [vmem:[#allocation4 + $0x5c] sm:$0x1] %v3455
      %v3457 = vld [vmem:[#allocation4 + $0x60] sm:$0xf]
      %v3458 = vsel %vm3399, %v3340, %v3457
      %3459 = vst [vmem:[#allocation4 + $0x60] sm:$0xf] %v3458
      %3460 = vst.msk [vmem:[#allocation4 + $0x64] sm:$0xf] %vm3403, %v3349
      %v3461 = vld [vmem:[#allocation4 + $0x68] sm:$0x1]
      %v3462 = vsel %vm3076, %v3350, %v3461
      %3463 = vst [vmem:[#allocation4 + $0x68] sm:$0x1] %v3462
      %v3464 = vld [vmem:[#allocation4 + $0x6c] sm:$0xf]
      %v3465 = vsel %vm3399, %v3357, %v3464
      %3466 = vst [vmem:[#allocation4 + $0x6c] sm:$0xf] %v3465
      %3467 = vst.msk [vmem:[#allocation4 + $0x70] sm:$0xf] %vm3403, %v3366
      %v3468 = vld [vmem:[#allocation4 + $0x74] sm:$0x1]
      %v3469 = vsel %vm3076, %v3367, %v3468
      %3470 = vst [vmem:[#allocation4 + $0x74] sm:$0x1] %v3469
      %v3471 = vld [vmem:[#allocation4] sm:$0xf]
      %v3472 = vld [vmem:[#allocation4 + $0x4] sm:$0xf]
      %v3473 = vld [vmem:[#allocation4 + $0xc] sm:$0xf]
      %v3474 = vld [vmem:[#allocation4 + $0x10] sm:$0xf]
      %v3475 = vld [vmem:[#allocation4 + $0x18] sm:$0xf]
      %v3476 = vld [vmem:[#allocation4 + $0x1c] sm:$0xf]
      %v3477 = vld [vmem:[#allocation4 + $0x24] sm:$0xf]
      %v3478 = vld [vmem:[#allocation4 + $0x28] sm:$0xf]
      %v3479 = vld [vmem:[#allocation4 + $0x30] sm:$0xf]
      %v3480 = vld [vmem:[#allocation4 + $0x34] sm:$0xf]
      %v3481 = vld [vmem:[#allocation4 + $0x3c] sm:$0xf]
      %v3482 = vld [vmem:[#allocation4 + $0x40] sm:$0xf]
      %v3483 = vld [vmem:[#allocation4 + $0x48] sm:$0xf]
      %v3484 = vld [vmem:[#allocation4 + $0x4c] sm:$0xf]
      %v3485 = vld [vmem:[#allocation4 + $0x54] sm:$0xf]
      %v3486 = vld [vmem:[#allocation4 + $0x58] sm:$0xf]
      %3487 = vst.msk [vmem:[#allocation5] sm:$0xf] %vm3403, %v3471
      %3488 = vst.msk [vmem:[#allocation5 + $0x4] sm:$0xf] %vm3403, %v3472
      %3489 = vst.msk [vmem:[#allocation5 + $0x8] sm:$0xf] %vm3403, %v3473
      %3490 = vst.msk [vmem:[#allocation5 + $0xc] sm:$0xf] %vm3403, %v3474
      %3491 = vst.msk [vmem:[#allocation5 + $0x10] sm:$0xf] %vm3403, %v3475
      %3492 = vst.msk [vmem:[#allocation5 + $0x14] sm:$0xf] %vm3403, %v3476
      %3493 = vst.msk [vmem:[#allocation5 + $0x18] sm:$0xf] %vm3403, %v3477
      %3494 = vst.msk [vmem:[#allocation5 + $0x1c] sm:$0xf] %vm3403, %v3478
      %3495 = vst.msk [vmem:[#allocation5 + $0x20] sm:$0xf] %vm3403, %v3479
      %3496 = vst.msk [vmem:[#allocation5 + $0x24] sm:$0xf] %vm3403, %v3480
      %3497 = vst.msk [vmem:[#allocation5 + $0x28] sm:$0xf] %vm3403, %v3481
      %3498 = vst.msk [vmem:[#allocation5 + $0x2c] sm:$0xf] %vm3403, %v3482
      %3499 = vst.msk [vmem:[#allocation5 + $0x30] sm:$0xf] %vm3403, %v3483
      %3500 = vst.msk [vmem:[#allocation5 + $0x34] sm:$0xf] %vm3403, %v3484
      %3501 = vst.msk [vmem:[#allocation5 + $0x38] sm:$0xf] %vm3403, %v3485
      %3502 = vst.msk [vmem:[#allocation5 + $0x3c] sm:$0xf] %vm3403, %v3486
      %v3503 = vld [vmem:[#allocation4] sm:$0xf]
      %v3504 = vld [vmem:[#allocation4 + $0x4] sm:$0xf]
      %v3505 = vld [vmem:[#allocation4 + $0x8] sm:$0x1]
      %v3506 = vld [vmem:[#allocation4 + $0xc] sm:$0xf]
      %v3507 = vld [vmem:[#allocation4 + $0x10] sm:$0xf]
      %v3508 = vld [vmem:[#allocation4 + $0x14] sm:$0x1]
      %v3509 = vld [vmem:[#allocation4 + $0x18] sm:$0xf]
      %v3510 = vld [vmem:[#allocation4 + $0x1c] sm:$0xf]
      %v3511 = vld [vmem:[#allocation4 + $0x20] sm:$0x1]
      %v3512 = vld [vmem:[#allocation4 + $0x24] sm:$0xf]
      %v3513 = vld [vmem:[#allocation4 + $0x28] sm:$0xf]
      %v3514 = vld [vmem:[#allocation4 + $0x2c] sm:$0x1]
      %v3515 = vld [vmem:[#allocation4 + $0x30] sm:$0xf]
      %v3516 = vld [vmem:[#allocation4 + $0x34] sm:$0xf]
      %v3517 = vld [vmem:[#allocation4 + $0x38] sm:$0x1]
      %v3518 = vld [vmem:[#allocation4 + $0x3c] sm:$0xf]
      %v3519 = vld [vmem:[#allocation4 + $0x40] sm:$0xf]
      %v3520 = vld [vmem:[#allocation4 + $0x44] sm:$0x1]
      %v3521 = vld [vmem:[#allocation4 + $0x48] sm:$0xf]
      %v3522 = vld [vmem:[#allocation4 + $0x4c] sm:$0xf]
      %v3523 = vld [vmem:[#allocation4 + $0x50] sm:$0x1]
      %v3524 = vld [vmem:[#allocation4 + $0x54] sm:$0xf]
      %v3525 = vld [vmem:[#allocation4 + $0x58] sm:$0xf]
      %v3526 = vld [vmem:[#allocation4 + $0x5c] sm:$0x1]
      %v3528 = vshrl.u32 %v3503, 16
      %v3530 = vrot.slane %v3528, 4
      %v3531 = vshll.u32 %v3503, 16
      %v3533 = vrot.slane %v3531, 5
      %v3534 = vor.u32 %v3530, %v3533
      %v3535 = vrot.slane %v3534, 4
      %v3537 = vshll.u32 %v3504, 16
      %v3539 = vrot.slane %v3537, 5
      %v3540 = vsel %vm827, %v3535, %v3539
      %v3541 = vshrl.u32 %v3504, 16
      %v3543 = vrot.slane %v3541, 4
      %v3544 = vor.u32 %v3543, %v3539
      %v3545 = vrot.slane %v3544, 4
      %v3547 = vshll.u32 %v3505, 16
      %v3549 = vrot.slane %v3547, 5
      %v3550 = vsel %vm827, %v3545, %v3549
      %v3552 = vshrl.u32 %v3506, 16
      %v3554 = vrot.slane %v3552, 4
      %v3555 = vshll.u32 %v3506, 16
      %v3557 = vrot.slane %v3555, 5
      %v3558 = vor.u32 %v3554, %v3557
      %v3559 = vrot.slane %v3558, 4
      %v3561 = vshll.u32 %v3507, 16
      %v3563 = vrot.slane %v3561, 5
      %v3564 = vsel %vm827, %v3559, %v3563
      %v3565 = vshrl.u32 %v3507, 16
      %v3567 = vrot.slane %v3565, 4
      %v3568 = vor.u32 %v3567, %v3563
      %v3569 = vrot.slane %v3568, 4
      %v3571 = vshll.u32 %v3508, 16
      %v3573 = vrot.slane %v3571, 5
      %v3574 = vsel %vm827, %v3569, %v3573
      %v3576 = vshrl.u32 %v3509, 16
      %v3578 = vrot.slane %v3576, 4
      %v3579 = vshll.u32 %v3509, 16
      %v3581 = vrot.slane %v3579, 5
      %v3582 = vor.u32 %v3578, %v3581
      %v3583 = vrot.slane %v3582, 4
      %v3585 = vshll.u32 %v3510, 16
      %v3587 = vrot.slane %v3585, 5
      %v3588 = vsel %vm827, %v3583, %v3587
      %v3589 = vshrl.u32 %v3510, 16
      %v3591 = vrot.slane %v3589, 4
      %v3592 = vor.u32 %v3591, %v3587
      %v3593 = vrot.slane %v3592, 4
      %v3595 = vshll.u32 %v3511, 16
      %v3597 = vrot.slane %v3595, 5
      %v3598 = vsel %vm827, %v3593, %v3597
      %v3600 = vshrl.u32 %v3512, 16
      %v3602 = vrot.slane %v3600, 4
      %v3603 = vshll.u32 %v3512, 16
      %v3605 = vrot.slane %v3603, 5
      %v3606 = vor.u32 %v3602, %v3605
      %v3607 = vrot.slane %v3606, 4
      %v3609 = vshll.u32 %v3513, 16
      %v3611 = vrot.slane %v3609, 5
      %v3612 = vsel %vm827, %v3607, %v3611
      %v3613 = vshrl.u32 %v3513, 16
      %v3615 = vrot.slane %v3613, 4
      %v3616 = vor.u32 %v3615, %v3611
      %v3617 = vrot.slane %v3616, 4
      %v3619 = vshll.u32 %v3514, 16
      %v3621 = vrot.slane %v3619, 5
      %v3622 = vsel %vm827, %v3617, %v3621
      %v3624 = vshrl.u32 %v3515, 16
      %v3626 = vrot.slane %v3624, 4
      %v3627 = vshll.u32 %v3515, 16
      %v3629 = vrot.slane %v3627, 5
      %v3630 = vor.u32 %v3626, %v3629
      %v3631 = vrot.slane %v3630, 4
      %v3633 = vshll.u32 %v3516, 16
      %v3635 = vrot.slane %v3633, 5
      %v3636 = vsel %vm827, %v3631, %v3635
      %v3637 = vshrl.u32 %v3516, 16
      %v3639 = vrot.slane %v3637, 4
      %v3640 = vor.u32 %v3639, %v3635
      %v3641 = vrot.slane %v3640, 4
      %v3643 = vshll.u32 %v3517, 16
      %v3645 = vrot.slane %v3643, 5
      %v3646 = vsel %vm827, %v3641, %v3645
      %v3648 = vshrl.u32 %v3518, 16
      %v3650 = vrot.slane %v3648, 4
      %v3651 = vshll.u32 %v3518, 16
      %v3653 = vrot.slane %v3651, 5
      %v3654 = vor.u32 %v3650, %v3653
      %v3655 = vrot.slane %v3654, 4
      %v3657 = vshll.u32 %v3519, 16
      %v3659 = vrot.slane %v3657, 5
      %v3660 = vsel %vm827, %v3655, %v3659
      %v3661 = vshrl.u32 %v3519, 16
      %v3663 = vrot.slane %v3661, 4
      %v3664 = vor.u32 %v3663, %v3659
      %v3665 = vrot.slane %v3664, 4
      %v3667 = vshll.u32 %v3520, 16
      %v3669 = vrot.slane %v3667, 5
      %v3670 = vsel %vm827, %v3665, %v3669
      %v3672 = vshrl.u32 %v3521, 16
      %v3674 = vrot.slane %v3672, 4
      %v3675 = vshll.u32 %v3521, 16
      %v3677 = vrot.slane %v3675, 5
      %v3678 = vor.u32 %v3674, %v3677
      %v3679 = vrot.slane %v3678, 4
      %v3681 = vshll.u32 %v3522, 16
      %v3683 = vrot.slane %v3681, 5
      %v3684 = vsel %vm827, %v3679, %v3683
      %v3685 = vshrl.u32 %v3522, 16
      %v3687 = vrot.slane %v3685, 4
      %v3688 = vor.u32 %v3687, %v3683
      %v3689 = vrot.slane %v3688, 4
      %v3691 = vshll.u32 %v3523, 16
      %v3693 = vrot.slane %v3691, 5
      %v3694 = vsel %vm827, %v3689, %v3693
      %v3696 = vshrl.u32 %v3524, 16
      %v3698 = vrot.slane %v3696, 4
      %v3699 = vshll.u32 %v3524, 16
      %v3701 = vrot.slane %v3699, 5
      %v3702 = vor.u32 %v3698, %v3701
      %v3703 = vrot.slane %v3702, 4
      %v3705 = vshll.u32 %v3525, 16
      %v3707 = vrot.slane %v3705, 5
      %v3708 = vsel %vm827, %v3703, %v3707
      %v3709 = vshrl.u32 %v3525, 16
      %v3711 = vrot.slane %v3709, 4
      %v3712 = vor.u32 %v3711, %v3707
      %v3713 = vrot.slane %v3712, 4
      %v3715 = vshll.u32 %v3526, 16
      %v3717 = vrot.slane %v3715, 5
      %v3718 = vsel %vm827, %v3713, %v3717
      %3719 = vrot.lane.b32.xlu0 %v3540, 8
      %v3720 = vpop.permute.xlu0 %3719
      %3721 = vrot.lane.b32.xlu0 %v3550, 8
      %v3722 = vpop.permute.xlu0 %3721
      %3723 = vrot.lane.b32.xlu0 %v3564, 8
      %v3724 = vpop.permute.xlu0 %3723
      %3725 = vrot.lane.b32.xlu0 %v3574, 8
      %v3726 = vpop.permute.xlu0 %3725
      %3727 = vrot.lane.b32.xlu0 %v3588, 8
      %v3728 = vpop.permute.xlu0 %3727
      %3729 = vrot.lane.b32.xlu0 %v3598, 8
      %v3730 = vpop.permute.xlu0 %3729
      %3731 = vrot.lane.b32.xlu0 %v3612, 8
      %v3732 = vpop.permute.xlu0 %3731
      %3733 = vrot.lane.b32.xlu0 %v3622, 8
      %v3734 = vpop.permute.xlu0 %3733
      %3735 = vrot.lane.b32.xlu0 %v3636, 8
      %v3736 = vpop.permute.xlu0 %3735
      %3737 = vrot.lane.b32.xlu0 %v3646, 8
      %v3738 = vpop.permute.xlu0 %3737
      %3739 = vrot.lane.b32.xlu0 %v3660, 8
      %v3740 = vpop.permute.xlu0 %3739
      %3741 = vrot.lane.b32.xlu0 %v3670, 8
      %v3742 = vpop.permute.xlu0 %3741
      %3743 = vrot.lane.b32.xlu0 %v3684, 8
      %v3744 = vpop.permute.xlu0 %3743
      %3745 = vrot.lane.b32.xlu0 %v3694, 8
      %v3746 = vpop.permute.xlu0 %3745
      %3747 = vrot.lane.b32.xlu0 %v3708, 8
      %v3748 = vpop.permute.xlu0 %3747
      %3749 = vrot.lane.b32.xlu0 %v3718, 8
      %v3750 = vpop.permute.xlu0 %3749
      %vm3767 = vcmask 126016
      %3768 = vst.msk [vmem:[#allocation5] sm:$0xf] %vm3767, %v3720
      %3769 = vst.msk [vmem:[#allocation5 + $0x4] sm:$0xf] %vm3767, %v3722
      %3770 = vst.msk [vmem:[#allocation5 + $0x8] sm:$0xf] %vm3767, %v3724
      %3771 = vst.msk [vmem:[#allocation5 + $0xc] sm:$0xf] %vm3767, %v3726
      %3772 = vst.msk [vmem:[#allocation5 + $0x10] sm:$0xf] %vm3767, %v3728
      %3773 = vst.msk [vmem:[#allocation5 + $0x14] sm:$0xf] %vm3767, %v3730
      %3774 = vst.msk [vmem:[#allocation5 + $0x18] sm:$0xf] %vm3767, %v3732
      %3775 = vst.msk [vmem:[#allocation5 + $0x1c] sm:$0xf] %vm3767, %v3734
      %3776 = vst.msk [vmem:[#allocation5 + $0x20] sm:$0xf] %vm3767, %v3736
      %3777 = vst.msk [vmem:[#allocation5 + $0x24] sm:$0xf] %vm3767, %v3738
      %3778 = vst.msk [vmem:[#allocation5 + $0x28] sm:$0xf] %vm3767, %v3740
      %3779 = vst.msk [vmem:[#allocation5 + $0x2c] sm:$0xf] %vm3767, %v3742
      %3780 = vst.msk [vmem:[#allocation5 + $0x30] sm:$0xf] %vm3767, %v3744
      %3781 = vst.msk [vmem:[#allocation5 + $0x34] sm:$0xf] %vm3767, %v3746
      %3782 = vst.msk [vmem:[#allocation5 + $0x38] sm:$0xf] %vm3767, %v3748
      %3783 = vst.msk [vmem:[#allocation5 + $0x3c] sm:$0xf] %vm3767, %v3750
      %v3784 = vld [vmem:[#allocation4] sm:$0xe]
      %v3785 = vld [vmem:[#allocation4 + $0x4] sm:$0xf]
      %v3786 = vld [vmem:[#allocation4 + $0x8] sm:$0x1]
      %v3787 = vld [vmem:[#allocation4 + $0xc] sm:$0xe]
      %v3788 = vld [vmem:[#allocation4 + $0x10] sm:$0xf]
      %v3789 = vld [vmem:[#allocation4 + $0x14] sm:$0x1]
      %v3790 = vld [vmem:[#allocation4 + $0x18] sm:$0xe]
      %v3791 = vld [vmem:[#allocation4 + $0x1c] sm:$0xf]
      %v3792 = vld [vmem:[#allocation4 + $0x20] sm:$0x1]
      %v3793 = vld [vmem:[#allocation4 + $0x24] sm:$0xe]
      %v3794 = vld [vmem:[#allocation4 + $0x28] sm:$0xf]
      %v3795 = vld [vmem:[#allocation4 + $0x2c] sm:$0x1]
      %v3796 = vld [vmem:[#allocation4 + $0x30] sm:$0xe]
      %v3797 = vld [vmem:[#allocation4 + $0x34] sm:$0xf]
      %v3798 = vld [vmem:[#allocation4 + $0x38] sm:$0x1]
      %v3799 = vld [vmem:[#allocation4 + $0x3c] sm:$0xe]
      %v3800 = vld [vmem:[#allocation4 + $0x40] sm:$0xf]
      %v3801 = vld [vmem:[#allocation4 + $0x44] sm:$0x1]
      %v3802 = vld [vmem:[#allocation4 + $0x48] sm:$0xe]
      %v3803 = vld [vmem:[#allocation4 + $0x4c] sm:$0xf]
      %v3804 = vld [vmem:[#allocation4 + $0x50] sm:$0x1]
      %v3805 = vld [vmem:[#allocation4 + $0x54] sm:$0xe]
      %v3806 = vld [vmem:[#allocation4 + $0x58] sm:$0xf]
      %v3807 = vld [vmem:[#allocation4 + $0x5c] sm:$0x1]
      %v3832 = vrot.slane %v3784, 5
      %v3833 = vrot.slane %v3832, 4
      %v3834 = vrot.slane %v3785, 5
      %v3835 = vsel %vm1211, %v3833, %v3834
      %v3836 = vrot.slane %v3834, 4
      %v3837 = vrot.slane %v3786, 5
      %v3838 = vsel %vm1211, %v3836, %v3837
      %v3839 = vrot.slane %v3787, 5
      %v3840 = vrot.slane %v3839, 4
      %v3841 = vrot.slane %v3788, 5
      %v3842 = vsel %vm1211, %v3840, %v3841
      %v3843 = vrot.slane %v3841, 4
      %v3844 = vrot.slane %v3789, 5
      %v3845 = vsel %vm1211, %v3843, %v3844
      %v3846 = vrot.slane %v3790, 5
      %v3847 = vrot.slane %v3846, 4
      %v3848 = vrot.slane %v3791, 5
      %v3849 = vsel %vm1211, %v3847, %v3848
      %v3850 = vrot.slane %v3848, 4
      %v3851 = vrot.slane %v3792, 5
      %v3852 = vsel %vm1211, %v3850, %v3851
      %v3853 = vrot.slane %v3793, 5
      %v3854 = vrot.slane %v3853, 4
      %v3855 = vrot.slane %v3794, 5
      %v3856 = vsel %vm1211, %v3854, %v3855
      %v3857 = vrot.slane %v3855, 4
      %v3858 = vrot.slane %v3795, 5
      %v3859 = vsel %vm1211, %v3857, %v3858
      %v3860 = vrot.slane %v3796, 5
      %v3861 = vrot.slane %v3860, 4
      %v3862 = vrot.slane %v3797, 5
      %v3863 = vsel %vm1211, %v3861, %v3862
      %v3864 = vrot.slane %v3862, 4
      %v3865 = vrot.slane %v3798, 5
      %v3866 = vsel %vm1211, %v3864, %v3865
      %v3867 = vrot.slane %v3799, 5
      %v3868 = vrot.slane %v3867, 4
      %v3869 = vrot.slane %v3800, 5
      %v3870 = vsel %vm1211, %v3868, %v3869
      %v3871 = vrot.slane %v3869, 4
      %v3872 = vrot.slane %v3801, 5
      %v3873 = vsel %vm1211, %v3871, %v3872
      %v3874 = vrot.slane %v3802, 5
      %v3875 = vrot.slane %v3874, 4
      %v3876 = vrot.slane %v3803, 5
      %v3877 = vsel %vm1211, %v3875, %v3876
      %v3878 = vrot.slane %v3876, 4
      %v3879 = vrot.slane %v3804, 5
      %v3880 = vsel %vm1211, %v3878, %v3879
      %v3881 = vrot.slane %v3805, 5
      %v3882 = vrot.slane %v3881, 4
      %v3883 = vrot.slane %v3806, 5
      %v3884 = vsel %vm1211, %v3882, %v3883
      %v3885 = vrot.slane %v3883, 4
      %v3886 = vrot.slane %v3807, 5
      %v3887 = vsel %vm1211, %v3885, %v3886
      %3888 = vrot.lane.b32.xlu0 %v3835, 16
      %v3889 = vpop.permute.xlu0 %3888
      %3890 = vrot.lane.b32.xlu0 %v3838, 16
      %v3891 = vpop.permute.xlu0 %3890
      %3892 = vrot.lane.b32.xlu0 %v3842, 16
      %v3893 = vpop.permute.xlu0 %3892
      %3894 = vrot.lane.b32.xlu0 %v3845, 16
      %v3895 = vpop.permute.xlu0 %3894
      %3896 = vrot.lane.b32.xlu0 %v3849, 16
      %v3897 = vpop.permute.xlu0 %3896
      %3898 = vrot.lane.b32.xlu0 %v3852, 16
      %v3899 = vpop.permute.xlu0 %3898
      %3900 = vrot.lane.b32.xlu0 %v3856, 16
      %v3901 = vpop.permute.xlu0 %3900
      %3902 = vrot.lane.b32.xlu0 %v3859, 16
      %v3903 = vpop.permute.xlu0 %3902
      %3904 = vrot.lane.b32.xlu0 %v3863, 16
      %v3905 = vpop.permute.xlu0 %3904
      %3906 = vrot.lane.b32.xlu0 %v3866, 16
      %v3907 = vpop.permute.xlu0 %3906
      %3908 = vrot.lane.b32.xlu0 %v3870, 16
      %v3909 = vpop.permute.xlu0 %3908
      %3910 = vrot.lane.b32.xlu0 %v3873, 16
      %v3911 = vpop.permute.xlu0 %3910
      %3912 = vrot.lane.b32.xlu0 %v3877, 16
      %v3913 = vpop.permute.xlu0 %3912
      %3914 = vrot.lane.b32.xlu0 %v3880, 16
      %v3915 = vpop.permute.xlu0 %3914
      %3916 = vrot.lane.b32.xlu0 %v3884, 16
      %v3917 = vpop.permute.xlu0 %3916
      %3918 = vrot.lane.b32.xlu0 %v3887, 16
      %v3919 = vpop.permute.xlu0 %3918
      %vm3936 = vcmask 191616
      %3937 = vst.msk [vmem:[#allocation5] sm:$0xf] %vm3936, %v3889
      %3938 = vst.msk [vmem:[#allocation5 + $0x4] sm:$0xf] %vm3936, %v3891
      %3939 = vst.msk [vmem:[#allocation5 + $0x8] sm:$0xf] %vm3936, %v3893
      %3940 = vst.msk [vmem:[#allocation5 + $0xc] sm:$0xf] %vm3936, %v3895
      %3941 = vst.msk [vmem:[#allocation5 + $0x10] sm:$0xf] %vm3936, %v3897
      %3942 = vst.msk [vmem:[#allocation5 + $0x14] sm:$0xf] %vm3936, %v3899
      %3943 = vst.msk [vmem:[#allocation5 + $0x18] sm:$0xf] %vm3936, %v3901
      %3944 = vst.msk [vmem:[#allocation5 + $0x1c] sm:$0xf] %vm3936, %v3903
      %3945 = vst.msk [vmem:[#allocation5 + $0x20] sm:$0xf] %vm3936, %v3905
      %3946 = vst.msk [vmem:[#allocation5 + $0x24] sm:$0xf] %vm3936, %v3907
      %3947 = vst.msk [vmem:[#allocation5 + $0x28] sm:$0xf] %vm3936, %v3909
      %3948 = vst.msk [vmem:[#allocation5 + $0x2c] sm:$0xf] %vm3936, %v3911
      %3949 = vst.msk [vmem:[#allocation5 + $0x30] sm:$0xf] %vm3936, %v3913
      %3950 = vst.msk [vmem:[#allocation5 + $0x34] sm:$0xf] %vm3936, %v3915
      %3951 = vst.msk [vmem:[#allocation5 + $0x38] sm:$0xf] %vm3936, %v3917
      %3952 = vst.msk [vmem:[#allocation5 + $0x3c] sm:$0xf] %vm3936, %v3919
      %s3953 = scalar_lea.vmem [#allocation4], 12
      %v3954 = vld [vmem:[%s3953] sm:$0xf]
      %v3955 = vld [vmem:[%s3953 + $0x4] sm:$0xf]
      %v3956 = vld [vmem:[%s3953 + $0xc] sm:$0xf]
      %v3957 = vld [vmem:[%s3953 + $0x10] sm:$0xf]
      %v3958 = vld [vmem:[%s3953 + $0x18] sm:$0xf]
      %v3959 = vld [vmem:[%s3953 + $0x1c] sm:$0xf]
      %v3960 = vld [vmem:[%s3953 + $0x24] sm:$0xf]
      %v3961 = vld [vmem:[%s3953 + $0x28] sm:$0xf]
      %v3962 = vld [vmem:[%s3953 + $0x30] sm:$0xf]
      %v3963 = vld [vmem:[%s3953 + $0x34] sm:$0xf]
      %v3964 = vld [vmem:[%s3953 + $0x3c] sm:$0xf]
      %v3965 = vld [vmem:[%s3953 + $0x40] sm:$0xf]
      %v3966 = vld [vmem:[%s3953 + $0x48] sm:$0xf]
      %v3967 = vld [vmem:[%s3953 + $0x4c] sm:$0xf]
      %v3968 = vld [vmem:[%s3953 + $0x54] sm:$0xf]
      %v3969 = vld [vmem:[%s3953 + $0x58] sm:$0xf]
      %3986 = vrot.lane.b32.xlu0 %v3954, 24
      %v3987 = vpop.permute.xlu0 %3986
      %3988 = vrot.lane.b32.xlu0 %v3955, 24
      %v3989 = vpop.permute.xlu0 %3988
      %3990 = vrot.lane.b32.xlu0 %v3956, 24
      %v3991 = vpop.permute.xlu0 %3990
      %3992 = vrot.lane.b32.xlu0 %v3957, 24
      %v3993 = vpop.permute.xlu0 %3992
      %3994 = vrot.lane.b32.xlu0 %v3958, 24
      %v3995 = vpop.permute.xlu0 %3994
      %3996 = vrot.lane.b32.xlu0 %v3959, 24
      %v3997 = vpop.permute.xlu0 %3996
      %3998 = vrot.lane.b32.xlu0 %v3960, 24
      %v3999 = vpop.permute.xlu0 %3998
      %4000 = vrot.lane.b32.xlu0 %v3961, 24
      %v4001 = vpop.permute.xlu0 %4000
      %4002 = vrot.lane.b32.xlu0 %v3962, 24
      %v4003 = vpop.permute.xlu0 %4002
      %4004 = vrot.lane.b32.xlu0 %v3963, 24
      %v4005 = vpop.permute.xlu0 %4004
      %4006 = vrot.lane.b32.xlu0 %v3964, 24
      %v4007 = vpop.permute.xlu0 %4006
      %4008 = vrot.lane.b32.xlu0 %v3965, 24
      %v4009 = vpop.permute.xlu0 %4008
      %4010 = vrot.lane.b32.xlu0 %v3966, 24
      %v4011 = vpop.permute.xlu0 %4010
      %4012 = vrot.lane.b32.xlu0 %v3967, 24
      %v4013 = vpop.permute.xlu0 %4012
      %4014 = vrot.lane.b32.xlu0 %v3968, 24
      %v4015 = vpop.permute.xlu0 %4014
      %4016 = vrot.lane.b32.xlu0 %v3969, 24
      %v4017 = vpop.permute.xlu0 %4016
      %vm4034 = vcmask 257216
      %4035 = vst.msk [vmem:[#allocation5] sm:$0xf] %vm4034, %v3987
      %4036 = vst.msk [vmem:[#allocation5 + $0x4] sm:$0xf] %vm4034, %v3989
      %4037 = vst.msk [vmem:[#allocation5 + $0x8] sm:$0xf] %vm4034, %v3991
      %4038 = vst.msk [vmem:[#allocation5 + $0xc] sm:$0xf] %vm4034, %v3993
      %4039 = vst.msk [vmem:[#allocation5 + $0x10] sm:$0xf] %vm4034, %v3995
      %4040 = vst.msk [vmem:[#allocation5 + $0x14] sm:$0xf] %vm4034, %v3997
      %4041 = vst.msk [vmem:[#allocation5 + $0x18] sm:$0xf] %vm4034, %v3999
      %4042 = vst.msk [vmem:[#allocation5 + $0x1c] sm:$0xf] %vm4034, %v4001
      %4043 = vst.msk [vmem:[#allocation5 + $0x20] sm:$0xf] %vm4034, %v4003
      %4044 = vst.msk [vmem:[#allocation5 + $0x24] sm:$0xf] %vm4034, %v4005
      %4045 = vst.msk [vmem:[#allocation5 + $0x28] sm:$0xf] %vm4034, %v4007
      %4046 = vst.msk [vmem:[#allocation5 + $0x2c] sm:$0xf] %vm4034, %v4009
      %4047 = vst.msk [vmem:[#allocation5 + $0x30] sm:$0xf] %vm4034, %v4011
      %4048 = vst.msk [vmem:[#allocation5 + $0x34] sm:$0xf] %vm4034, %v4013
      %4049 = vst.msk [vmem:[#allocation5 + $0x38] sm:$0xf] %vm4034, %v4015
      %4050 = vst.msk [vmem:[#allocation5 + $0x3c] sm:$0xf] %vm4034, %v4017
      %v4051 = vld [vmem:[%s3953] sm:$0xf]
      %v4052 = vld [vmem:[%s3953 + $0x4] sm:$0xf]
      %v4053 = vld [vmem:[%s3953 + $0x8] sm:$0x1]
      %v4054 = vld [vmem:[%s3953 + $0xc] sm:$0xf]
      %v4055 = vld [vmem:[%s3953 + $0x10] sm:$0xf]
      %v4056 = vld [vmem:[%s3953 + $0x14] sm:$0x1]
      %v4057 = vld [vmem:[%s3953 + $0x18] sm:$0xf]
      %v4058 = vld [vmem:[%s3953 + $0x1c] sm:$0xf]
      %v4059 = vld [vmem:[%s3953 + $0x20] sm:$0x1]
      %v4060 = vld [vmem:[%s3953 + $0x24] sm:$0xf]
      %v4061 = vld [vmem:[%s3953 + $0x28] sm:$0xf]
      %v4062 = vld [vmem:[%s3953 + $0x2c] sm:$0x1]
      %v4063 = vld [vmem:[%s3953 + $0x30] sm:$0xf]
      %v4064 = vld [vmem:[%s3953 + $0x34] sm:$0xf]
      %v4065 = vld [vmem:[%s3953 + $0x38] sm:$0x1]
      %v4066 = vld [vmem:[%s3953 + $0x3c] sm:$0xf]
      %v4067 = vld [vmem:[%s3953 + $0x40] sm:$0xf]
      %v4068 = vld [vmem:[%s3953 + $0x44] sm:$0x1]
      %v4069 = vld [vmem:[%s3953 + $0x48] sm:$0xf]
      %v4070 = vld [vmem:[%s3953 + $0x4c] sm:$0xf]
      %v4071 = vld [vmem:[%s3953 + $0x50] sm:$0x1]
      %v4072 = vld [vmem:[%s3953 + $0x54] sm:$0xf]
      %v4073 = vld [vmem:[%s3953 + $0x58] sm:$0xf]
      %v4074 = vld [vmem:[%s3953 + $0x5c] sm:$0x1]
      %v4076 = vshrl.u32 %v4051, 16
      %v4078 = vrot.slane %v4076, 4
      %v4079 = vshll.u32 %v4051, 16
      %v4081 = vrot.slane %v4079, 5
      %v4082 = vor.u32 %v4078, %v4081
      %v4083 = vrot.slane %v4082, 4
      %v4085 = vshll.u32 %v4052, 16
      %v4087 = vrot.slane %v4085, 5
      %v4088 = vsel %vm827, %v4083, %v4087
      %v4089 = vshrl.u32 %v4052, 16
      %v4091 = vrot.slane %v4089, 4
      %v4092 = vor.u32 %v4091, %v4087
      %v4093 = vrot.slane %v4092, 4
      %v4095 = vshll.u32 %v4053, 16
      %v4097 = vrot.slane %v4095, 5
      %v4098 = vsel %vm827, %v4093, %v4097
      %v4100 = vshrl.u32 %v4054, 16
      %v4102 = vrot.slane %v4100, 4
      %v4103 = vshll.u32 %v4054, 16
      %v4105 = vrot.slane %v4103, 5
      %v4106 = vor.u32 %v4102, %v4105
      %v4107 = vrot.slane %v4106, 4
      %v4109 = vshll.u32 %v4055, 16
      %v4111 = vrot.slane %v4109, 5
      %v4112 = vsel %vm827, %v4107, %v4111
      %v4113 = vshrl.u32 %v4055, 16
      %v4115 = vrot.slane %v4113, 4
      %v4116 = vor.u32 %v4115, %v4111
      %v4117 = vrot.slane %v4116, 4
      %v4119 = vshll.u32 %v4056, 16
      %v4121 = vrot.slane %v4119, 5
      %v4122 = vsel %vm827, %v4117, %v4121
      %v4124 = vshrl.u32 %v4057, 16
      %v4126 = vrot.slane %v4124, 4
      %v4127 = vshll.u32 %v4057, 16
      %v4129 = vrot.slane %v4127, 5
      %v4130 = vor.u32 %v4126, %v4129
      %v4131 = vrot.slane %v4130, 4
      %v4133 = vshll.u32 %v4058, 16
      %v4135 = vrot.slane %v4133, 5
      %v4136 = vsel %vm827, %v4131, %v4135
      %v4137 = vshrl.u32 %v4058, 16
      %v4139 = vrot.slane %v4137, 4
      %v4140 = vor.u32 %v4139, %v4135
      %v4141 = vrot.slane %v4140, 4
      %v4143 = vshll.u32 %v4059, 16
      %v4145 = vrot.slane %v4143, 5
      %v4146 = vsel %vm827, %v4141, %v4145
      %v4148 = vshrl.u32 %v4060, 16
      %v4150 = vrot.slane %v4148, 4
      %v4151 = vshll.u32 %v4060, 16
      %v4153 = vrot.slane %v4151, 5
      %v4154 = vor.u32 %v4150, %v4153
      %v4155 = vrot.slane %v4154, 4
      %v4157 = vshll.u32 %v4061, 16
      %v4159 = vrot.slane %v4157, 5
      %v4160 = vsel %vm827, %v4155, %v4159
      %v4161 = vshrl.u32 %v4061, 16
      %v4163 = vrot.slane %v4161, 4
      %v4164 = vor.u32 %v4163, %v4159
      %v4165 = vrot.slane %v4164, 4
      %v4167 = vshll.u32 %v4062, 16
      %v4169 = vrot.slane %v4167, 5
      %v4170 = vsel %vm827, %v4165, %v4169
      %v4172 = vshrl.u32 %v4063, 16
      %v4174 = vrot.slane %v4172, 4
      %v4175 = vshll.u32 %v4063, 16
      %v4177 = vrot.slane %v4175, 5
      %v4178 = vor.u32 %v4174, %v4177
      %v4179 = vrot.slane %v4178, 4
      %v4181 = vshll.u32 %v4064, 16
      %v4183 = vrot.slane %v4181, 5
      %v4184 = vsel %vm827, %v4179, %v4183
      %v4185 = vshrl.u32 %v4064, 16
      %v4187 = vrot.slane %v4185, 4
      %v4188 = vor.u32 %v4187, %v4183
      %v4189 = vrot.slane %v4188, 4
      %v4191 = vshll.u32 %v4065, 16
      %v4193 = vrot.slane %v4191, 5
      %v4194 = vsel %vm827, %v4189, %v4193
      %v4196 = vshrl.u32 %v4066, 16
      %v4198 = vrot.slane %v4196, 4
      %v4199 = vshll.u32 %v4066, 16
      %v4201 = vrot.slane %v4199, 5
      %v4202 = vor.u32 %v4198, %v4201
      %v4203 = vrot.slane %v4202, 4
      %v4205 = vshll.u32 %v4067, 16
      %v4207 = vrot.slane %v4205, 5
      %v4208 = vsel %vm827, %v4203, %v4207
      %v4209 = vshrl.u32 %v4067, 16
      %v4211 = vrot.slane %v4209, 4
      %v4212 = vor.u32 %v4211, %v4207
      %v4213 = vrot.slane %v4212, 4
      %v4215 = vshll.u32 %v4068, 16
      %v4217 = vrot.slane %v4215, 5
      %v4218 = vsel %vm827, %v4213, %v4217
      %v4220 = vshrl.u32 %v4069, 16
      %v4222 = vrot.slane %v4220, 4
      %v4223 = vshll.u32 %v4069, 16
      %v4225 = vrot.slane %v4223, 5
      %v4226 = vor.u32 %v4222, %v4225
      %v4227 = vrot.slane %v4226, 4
      %v4229 = vshll.u32 %v4070, 16
      %v4231 = vrot.slane %v4229, 5
      %v4232 = vsel %vm827, %v4227, %v4231
      %v4233 = vshrl.u32 %v4070, 16
      %v4235 = vrot.slane %v4233, 4
      %v4236 = vor.u32 %v4235, %v4231
      %v4237 = vrot.slane %v4236, 4
      %v4239 = vshll.u32 %v4071, 16
      %v4241 = vrot.slane %v4239, 5
      %v4242 = vsel %vm827, %v4237, %v4241
      %v4244 = vshrl.u32 %v4072, 16
      %v4246 = vrot.slane %v4244, 4
      %v4247 = vshll.u32 %v4072, 16
      %v4249 = vrot.slane %v4247, 5
      %v4250 = vor.u32 %v4246, %v4249
      %v4251 = vrot.slane %v4250, 4
      %v4253 = vshll.u32 %v4073, 16
      %v4255 = vrot.slane %v4253, 5
      %v4256 = vsel %vm827, %v4251, %v4255
      %v4257 = vshrl.u32 %v4073, 16
      %v4259 = vrot.slane %v4257, 4
      %v4260 = vor.u32 %v4259, %v4255
      %v4261 = vrot.slane %v4260, 4
      %v4263 = vshll.u32 %v4074, 16
      %v4265 = vrot.slane %v4263, 5
      %v4266 = vsel %vm827, %v4261, %v4265
      %4267 = vrot.lane.b32.xlu0 %v4088, 32
      %v4268 = vpop.permute.xlu0 %4267
      %4269 = vrot.lane.b32.xlu0 %v4098, 32
      %v4270 = vpop.permute.xlu0 %4269
      %4271 = vrot.lane.b32.xlu0 %v4112, 32
      %v4272 = vpop.permute.xlu0 %4271
      %4273 = vrot.lane.b32.xlu0 %v4122, 32
      %v4274 = vpop.permute.xlu0 %4273
      %4275 = vrot.lane.b32.xlu0 %v4136, 32
      %v4276 = vpop.permute.xlu0 %4275
      %4277 = vrot.lane.b32.xlu0 %v4146, 32
      %v4278 = vpop.permute.xlu0 %4277
      %4279 = vrot.lane.b32.xlu0 %v4160, 32
      %v4280 = vpop.permute.xlu0 %4279
      %4281 = vrot.lane.b32.xlu0 %v4170, 32
      %v4282 = vpop.permute.xlu0 %4281
      %4283 = vrot.lane.b32.xlu0 %v4184, 32
      %v4284 = vpop.permute.xlu0 %4283
      %4285 = vrot.lane.b32.xlu0 %v4194, 32
      %v4286 = vpop.permute.xlu0 %4285
      %4287 = vrot.lane.b32.xlu0 %v4208, 32
      %v4288 = vpop.permute.xlu0 %4287
      %4289 = vrot.lane.b32.xlu0 %v4218, 32
      %v4290 = vpop.permute.xlu0 %4289
      %4291 = vrot.lane.b32.xlu0 %v4232, 32
      %v4292 = vpop.permute.xlu0 %4291
      %4293 = vrot.lane.b32.xlu0 %v4242, 32
      %v4294 = vpop.permute.xlu0 %4293
      %4295 = vrot.lane.b32.xlu0 %v4256, 32
      %v4296 = vpop.permute.xlu0 %4295
      %4297 = vrot.lane.b32.xlu0 %v4266, 32
      %v4298 = vpop.permute.xlu0 %4297
      %vm4315 = vcmask 322816
      %4316 = vst.msk [vmem:[#allocation5] sm:$0xf] %vm4315, %v4268
      %4317 = vst.msk [vmem:[#allocation5 + $0x4] sm:$0xf] %vm4315, %v4270
      %4318 = vst.msk [vmem:[#allocation5 + $0x8] sm:$0xf] %vm4315, %v4272
      %4319 = vst.msk [vmem:[#allocation5 + $0xc] sm:$0xf] %vm4315, %v4274
      %4320 = vst.msk [vmem:[#allocation5 + $0x10] sm:$0xf] %vm4315, %v4276
      %4321 = vst.msk [vmem:[#allocation5 + $0x14] sm:$0xf] %vm4315, %v4278
      %4322 = vst.msk [vmem:[#allocation5 + $0x18] sm:$0xf] %vm4315, %v4280
      %4323 = vst.msk [vmem:[#allocation5 + $0x1c] sm:$0xf] %vm4315, %v4282
      %4324 = vst.msk [vmem:[#allocation5 + $0x20] sm:$0xf] %vm4315, %v4284
      %4325 = vst.msk [vmem:[#allocation5 + $0x24] sm:$0xf] %vm4315, %v4286
      %4326 = vst.msk [vmem:[#allocation5 + $0x28] sm:$0xf] %vm4315, %v4288
      %4327 = vst.msk [vmem:[#allocation5 + $0x2c] sm:$0xf] %vm4315, %v4290
      %4328 = vst.msk [vmem:[#allocation5 + $0x30] sm:$0xf] %vm4315, %v4292
      %4329 = vst.msk [vmem:[#allocation5 + $0x34] sm:$0xf] %vm4315, %v4294
      %4330 = vst.msk [vmem:[#allocation5 + $0x38] sm:$0xf] %vm4315, %v4296
      %4331 = vst.msk [vmem:[#allocation5 + $0x3c] sm:$0xf] %vm4315, %v4298
      %v4332 = vld [vmem:[%s3953] sm:$0xe]
      %v4333 = vld [vmem:[%s3953 + $0x4] sm:$0xf]
      %v4334 = vld [vmem:[%s3953 + $0x8] sm:$0x1]
      %v4335 = vld [vmem:[%s3953 + $0xc] sm:$0xe]
      %v4336 = vld [vmem:[%s3953 + $0x10] sm:$0xf]
      %v4337 = vld [vmem:[%s3953 + $0x14] sm:$0x1]
      %v4338 = vld [vmem:[%s3953 + $0x18] sm:$0xe]
      %v4339 = vld [vmem:[%s3953 + $0x1c] sm:$0xf]
      %v4340 = vld [vmem:[%s3953 + $0x20] sm:$0x1]
      %v4341 = vld [vmem:[%s3953 + $0x24] sm:$0xe]
      %v4342 = vld [vmem:[%s3953 + $0x28] sm:$0xf]
      %v4343 = vld [vmem:[%s3953 + $0x2c] sm:$0x1]
      %v4344 = vld [vmem:[%s3953 + $0x30] sm:$0xe]
      %v4345 = vld [vmem:[%s3953 + $0x34] sm:$0xf]
      %v4346 = vld [vmem:[%s3953 + $0x38] sm:$0x1]
      %v4347 = vld [vmem:[%s3953 + $0x3c] sm:$0xe]
      %v4348 = vld [vmem:[%s3953 + $0x40] sm:$0xf]
      %v4349 = vld [vmem:[%s3953 + $0x44] sm:$0x1]
      %v4350 = vld [vmem:[%s3953 + $0x48] sm:$0xe]
      %v4351 = vld [vmem:[%s3953 + $0x4c] sm:$0xf]
      %v4352 = vld [vmem:[%s3953 + $0x50] sm:$0x1]
      %v4353 = vld [vmem:[%s3953 + $0x54] sm:$0xe]
      %v4354 = vld [vmem:[%s3953 + $0x58] sm:$0xf]
      %v4355 = vld [vmem:[%s3953 + $0x5c] sm:$0x1]
      %v4380 = vrot.slane %v4332, 5
      %v4381 = vrot.slane %v4380, 4
      %v4382 = vrot.slane %v4333, 5
      %v4383 = vsel %vm1211, %v4381, %v4382
      %v4384 = vrot.slane %v4382, 4
      %v4385 = vrot.slane %v4334, 5
      %v4386 = vsel %vm1211, %v4384, %v4385
      %v4387 = vrot.slane %v4335, 5
      %v4388 = vrot.slane %v4387, 4
      %v4389 = vrot.slane %v4336, 5
      %v4390 = vsel %vm1211, %v4388, %v4389
      %v4391 = vrot.slane %v4389, 4
      %v4392 = vrot.slane %v4337, 5
      %v4393 = vsel %vm1211, %v4391, %v4392
      %v4394 = vrot.slane %v4338, 5
      %v4395 = vrot.slane %v4394, 4
      %v4396 = vrot.slane %v4339, 5
      %v4397 = vsel %vm1211, %v4395, %v4396
      %v4398 = vrot.slane %v4396, 4
      %v4399 = vrot.slane %v4340, 5
      %v4400 = vsel %vm1211, %v4398, %v4399
      %v4401 = vrot.slane %v4341, 5
      %v4402 = vrot.slane %v4401, 4
      %v4403 = vrot.slane %v4342, 5
      %v4404 = vsel %vm1211, %v4402, %v4403
      %v4405 = vrot.slane %v4403, 4
      %v4406 = vrot.slane %v4343, 5
      %v4407 = vsel %vm1211, %v4405, %v4406
      %v4408 = vrot.slane %v4344, 5
      %v4409 = vrot.slane %v4408, 4
      %v4410 = vrot.slane %v4345, 5
      %v4411 = vsel %vm1211, %v4409, %v4410
      %v4412 = vrot.slane %v4410, 4
      %v4413 = vrot.slane %v4346, 5
      %v4414 = vsel %vm1211, %v4412, %v4413
      %v4415 = vrot.slane %v4347, 5
      %v4416 = vrot.slane %v4415, 4
      %v4417 = vrot.slane %v4348, 5
      %v4418 = vsel %vm1211, %v4416, %v4417
      %v4419 = vrot.slane %v4417, 4
      %v4420 = vrot.slane %v4349, 5
      %v4421 = vsel %vm1211, %v4419, %v4420
      %v4422 = vrot.slane %v4350, 5
      %v4423 = vrot.slane %v4422, 4
      %v4424 = vrot.slane %v4351, 5
      %v4425 = vsel %vm1211, %v4423, %v4424
      %v4426 = vrot.slane %v4424, 4
      %v4427 = vrot.slane %v4352, 5
      %v4428 = vsel %vm1211, %v4426, %v4427
      %v4429 = vrot.slane %v4353, 5
      %v4430 = vrot.slane %v4429, 4
      %v4431 = vrot.slane %v4354, 5
      %v4432 = vsel %vm1211, %v4430, %v4431
      %v4433 = vrot.slane %v4431, 4
      %v4434 = vrot.slane %v4355, 5
      %v4435 = vsel %vm1211, %v4433, %v4434
      %4436 = vrot.lane.b32.xlu0 %v4383, 40
      %v4437 = vpop.permute.xlu0 %4436
      %4438 = vrot.lane.b32.xlu0 %v4386, 40
      %v4439 = vpop.permute.xlu0 %4438
      %4440 = vrot.lane.b32.xlu0 %v4390, 40
      %v4441 = vpop.permute.xlu0 %4440
      %4442 = vrot.lane.b32.xlu0 %v4393, 40
      %v4443 = vpop.permute.xlu0 %4442
      %4444 = vrot.lane.b32.xlu0 %v4397, 40
      %v4445 = vpop.permute.xlu0 %4444
      %4446 = vrot.lane.b32.xlu0 %v4400, 40
      %v4447 = vpop.permute.xlu0 %4446
      %4448 = vrot.lane.b32.xlu0 %v4404, 40
      %v4449 = vpop.permute.xlu0 %4448
      %4450 = vrot.lane.b32.xlu0 %v4407, 40
      %v4451 = vpop.permute.xlu0 %4450
      %4452 = vrot.lane.b32.xlu0 %v4411, 40
      %v4453 = vpop.permute.xlu0 %4452
      %4454 = vrot.lane.b32.xlu0 %v4414, 40
      %v4455 = vpop.permute.xlu0 %4454
      %4456 = vrot.lane.b32.xlu0 %v4418, 40
      %v4457 = vpop.permute.xlu0 %4456
      %4458 = vrot.lane.b32.xlu0 %v4421, 40
      %v4459 = vpop.permute.xlu0 %4458
      %4460 = vrot.lane.b32.xlu0 %v4425, 40
      %v4461 = vpop.permute.xlu0 %4460
      %4462 = vrot.lane.b32.xlu0 %v4428, 40
      %v4463 = vpop.permute.xlu0 %4462
      %4464 = vrot.lane.b32.xlu0 %v4432, 40
      %v4465 = vpop.permute.xlu0 %4464
      %4466 = vrot.lane.b32.xlu0 %v4435, 40
      %v4467 = vpop.permute.xlu0 %4466
      %vm4484 = vcmask 388416
      %4485 = vst.msk [vmem:[#allocation5] sm:$0xf] %vm4484, %v4437
      %4486 = vst.msk [vmem:[#allocation5 + $0x4] sm:$0xf] %vm4484, %v4439
      %4487 = vst.msk [vmem:[#allocation5 + $0x8] sm:$0xf] %vm4484, %v4441
      %4488 = vst.msk [vmem:[#allocation5 + $0xc] sm:$0xf] %vm4484, %v4443
      %4489 = vst.msk [vmem:[#allocation5 + $0x10] sm:$0xf] %vm4484, %v4445
      %4490 = vst.msk [vmem:[#allocation5 + $0x14] sm:$0xf] %vm4484, %v4447
      %4491 = vst.msk [vmem:[#allocation5 + $0x18] sm:$0xf] %vm4484, %v4449
      %4492 = vst.msk [vmem:[#allocation5 + $0x1c] sm:$0xf] %vm4484, %v4451
      %4493 = vst.msk [vmem:[#allocation5 + $0x20] sm:$0xf] %vm4484, %v4453
      %4494 = vst.msk [vmem:[#allocation5 + $0x24] sm:$0xf] %vm4484, %v4455
      %4495 = vst.msk [vmem:[#allocation5 + $0x28] sm:$0xf] %vm4484, %v4457
      %4496 = vst.msk [vmem:[#allocation5 + $0x2c] sm:$0xf] %vm4484, %v4459
      %4497 = vst.msk [vmem:[#allocation5 + $0x30] sm:$0xf] %vm4484, %v4461
      %4498 = vst.msk [vmem:[#allocation5 + $0x34] sm:$0xf] %vm4484, %v4463
      %4499 = vst.msk [vmem:[#allocation5 + $0x38] sm:$0xf] %vm4484, %v4465
      %4500 = vst.msk [vmem:[#allocation5 + $0x3c] sm:$0xf] %vm4484, %v4467
      %s4501 = scalar_lea.vmem [#allocation4], 24
      %v4502 = vld [vmem:[%s4501] sm:$0xf]
      %v4503 = vld [vmem:[%s4501 + $0x4] sm:$0xf]
      %v4504 = vld [vmem:[%s4501 + $0xc] sm:$0xf]
      %v4505 = vld [vmem:[%s4501 + $0x10] sm:$0xf]
      %v4506 = vld [vmem:[%s4501 + $0x18] sm:$0xf]
      %v4507 = vld [vmem:[%s4501 + $0x1c] sm:$0xf]
      %v4508 = vld [vmem:[%s4501 + $0x24] sm:$0xf]
      %v4509 = vld [vmem:[%s4501 + $0x28] sm:$0xf]
      %v4510 = vld [vmem:[%s4501 + $0x30] sm:$0xf]
      %v4511 = vld [vmem:[%s4501 + $0x34] sm:$0xf]
      %v4512 = vld [vmem:[%s4501 + $0x3c] sm:$0xf]
      %v4513 = vld [vmem:[%s4501 + $0x40] sm:$0xf]
      %v4514 = vld [vmem:[%s4501 + $0x48] sm:$0xf]
      %v4515 = vld [vmem:[%s4501 + $0x4c] sm:$0xf]
      %v4516 = vld [vmem:[%s4501 + $0x54] sm:$0xf]
      %v4517 = vld [vmem:[%s4501 + $0x58] sm:$0xf]
      %4534 = vrot.lane.b32.xlu0 %v4502, 48
      %v4535 = vpop.permute.xlu0 %4534
      %4536 = vrot.lane.b32.xlu0 %v4503, 48
      %v4537 = vpop.permute.xlu0 %4536
      %4538 = vrot.lane.b32.xlu0 %v4504, 48
      %v4539 = vpop.permute.xlu0 %4538
      %4540 = vrot.lane.b32.xlu0 %v4505, 48
      %v4541 = vpop.permute.xlu0 %4540
      %4542 = vrot.lane.b32.xlu0 %v4506, 48
      %v4543 = vpop.permute.xlu0 %4542
      %4544 = vrot.lane.b32.xlu0 %v4507, 48
      %v4545 = vpop.permute.xlu0 %4544
      %4546 = vrot.lane.b32.xlu0 %v4508, 48
      %v4547 = vpop.permute.xlu0 %4546
      %4548 = vrot.lane.b32.xlu0 %v4509, 48
      %v4549 = vpop.permute.xlu0 %4548
      %4550 = vrot.lane.b32.xlu0 %v4510, 48
      %v4551 = vpop.permute.xlu0 %4550
      %4552 = vrot.lane.b32.xlu0 %v4511, 48
      %v4553 = vpop.permute.xlu0 %4552
      %4554 = vrot.lane.b32.xlu0 %v4512, 48
      %v4555 = vpop.permute.xlu0 %4554
      %4556 = vrot.lane.b32.xlu0 %v4513, 48
      %v4557 = vpop.permute.xlu0 %4556
      %4558 = vrot.lane.b32.xlu0 %v4514, 48
      %v4559 = vpop.permute.xlu0 %4558
      %4560 = vrot.lane.b32.xlu0 %v4515, 48
      %v4561 = vpop.permute.xlu0 %4560
      %4562 = vrot.lane.b32.xlu0 %v4516, 48
      %v4563 = vpop.permute.xlu0 %4562
      %4564 = vrot.lane.b32.xlu0 %v4517, 48
      %v4565 = vpop.permute.xlu0 %4564
      %vm4582 = vcmask 454016
      %4583 = vst.msk [vmem:[#allocation5] sm:$0xf] %vm4582, %v4535
      %4584 = vst.msk [vmem:[#allocation5 + $0x4] sm:$0xf] %vm4582, %v4537
      %4585 = vst.msk [vmem:[#allocation5 + $0x8] sm:$0xf] %vm4582, %v4539
      %4586 = vst.msk [vmem:[#allocation5 + $0xc] sm:$0xf] %vm4582, %v4541
      %4587 = vst.msk [vmem:[#allocation5 + $0x10] sm:$0xf] %vm4582, %v4543
      %4588 = vst.msk [vmem:[#allocation5 + $0x14] sm:$0xf] %vm4582, %v4545
      %4589 = vst.msk [vmem:[#allocation5 + $0x18] sm:$0xf] %vm4582, %v4547
      %4590 = vst.msk [vmem:[#allocation5 + $0x1c] sm:$0xf] %vm4582, %v4549
      %4591 = vst.msk [vmem:[#allocation5 + $0x20] sm:$0xf] %vm4582, %v4551
      %4592 = vst.msk [vmem:[#allocation5 + $0x24] sm:$0xf] %vm4582, %v4553
      %4593 = vst.msk [vmem:[#allocation5 + $0x28] sm:$0xf] %vm4582, %v4555
      %4594 = vst.msk [vmem:[#allocation5 + $0x2c] sm:$0xf] %vm4582, %v4557
      %4595 = vst.msk [vmem:[#allocation5 + $0x30] sm:$0xf] %vm4582, %v4559
      %4596 = vst.msk [vmem:[#allocation5 + $0x34] sm:$0xf] %vm4582, %v4561
      %4597 = vst.msk [vmem:[#allocation5 + $0x38] sm:$0xf] %vm4582, %v4563
      %4598 = vst.msk [vmem:[#allocation5 + $0x3c] sm:$0xf] %vm4582, %v4565
      %v4599 = vld [vmem:[%s4501] sm:$0xf]
      %v4600 = vld [vmem:[%s4501 + $0x4] sm:$0xf]
      %v4601 = vld [vmem:[%s4501 + $0x8] sm:$0x1]
      %v4602 = vld [vmem:[%s4501 + $0xc] sm:$0xf]
      %v4603 = vld [vmem:[%s4501 + $0x10] sm:$0xf]
      %v4604 = vld [vmem:[%s4501 + $0x14] sm:$0x1]
      %v4605 = vld [vmem:[%s4501 + $0x18] sm:$0xf]
      %v4606 = vld [vmem:[%s4501 + $0x1c] sm:$0xf]
      %v4607 = vld [vmem:[%s4501 + $0x20] sm:$0x1]
      %v4608 = vld [vmem:[%s4501 + $0x24] sm:$0xf]
      %v4609 = vld [vmem:[%s4501 + $0x28] sm:$0xf]
      %v4610 = vld [vmem:[%s4501 + $0x2c] sm:$0x1]
      %v4611 = vld [vmem:[%s4501 + $0x30] sm:$0xf]
      %v4612 = vld [vmem:[%s4501 + $0x34] sm:$0xf]
      %v4613 = vld [vmem:[%s4501 + $0x38] sm:$0x1]
      %v4614 = vld [vmem:[%s4501 + $0x3c] sm:$0xf]
      %v4615 = vld [vmem:[%s4501 + $0x40] sm:$0xf]
      %v4616 = vld [vmem:[%s4501 + $0x44] sm:$0x1]
      %v4617 = vld [vmem:[%s4501 + $0x48] sm:$0xf]
      %v4618 = vld [vmem:[%s4501 + $0x4c] sm:$0xf]
      %v4619 = vld [vmem:[%s4501 + $0x50] sm:$0x1]
      %v4620 = vld [vmem:[%s4501 + $0x54] sm:$0xf]
      %v4621 = vld [vmem:[%s4501 + $0x58] sm:$0xf]
      %v4622 = vld [vmem:[%s4501 + $0x5c] sm:$0x1]
      %v4624 = vshrl.u32 %v4599, 16
      %v4626 = vrot.slane %v4624, 4
      %v4627 = vshll.u32 %v4599, 16
      %v4629 = vrot.slane %v4627, 5
      %v4630 = vor.u32 %v4626, %v4629
      %v4631 = vrot.slane %v4630, 4
      %v4633 = vshll.u32 %v4600, 16
      %v4635 = vrot.slane %v4633, 5
      %v4636 = vsel %vm827, %v4631, %v4635
      %v4637 = vshrl.u32 %v4600, 16
      %v4639 = vrot.slane %v4637, 4
      %v4640 = vor.u32 %v4639, %v4635
      %v4641 = vrot.slane %v4640, 4
      %v4643 = vshll.u32 %v4601, 16
      %v4645 = vrot.slane %v4643, 5
      %v4646 = vsel %vm827, %v4641, %v4645
      %v4648 = vshrl.u32 %v4602, 16
      %v4650 = vrot.slane %v4648, 4
      %v4651 = vshll.u32 %v4602, 16
      %v4653 = vrot.slane %v4651, 5
      %v4654 = vor.u32 %v4650, %v4653
      %v4655 = vrot.slane %v4654, 4
      %v4657 = vshll.u32 %v4603, 16
      %v4659 = vrot.slane %v4657, 5
      %v4660 = vsel %vm827, %v4655, %v4659
      %v4661 = vshrl.u32 %v4603, 16
      %v4663 = vrot.slane %v4661, 4
      %v4664 = vor.u32 %v4663, %v4659
      %v4665 = vrot.slane %v4664, 4
      %v4667 = vshll.u32 %v4604, 16
      %v4669 = vrot.slane %v4667, 5
      %v4670 = vsel %vm827, %v4665, %v4669
      %v4672 = vshrl.u32 %v4605, 16
      %v4674 = vrot.slane %v4672, 4
      %v4675 = vshll.u32 %v4605, 16
      %v4677 = vrot.slane %v4675, 5
      %v4678 = vor.u32 %v4674, %v4677
      %v4679 = vrot.slane %v4678, 4
      %v4681 = vshll.u32 %v4606, 16
      %v4683 = vrot.slane %v4681, 5
      %v4684 = vsel %vm827, %v4679, %v4683
      %v4685 = vshrl.u32 %v4606, 16
      %v4687 = vrot.slane %v4685, 4
      %v4688 = vor.u32 %v4687, %v4683
      %v4689 = vrot.slane %v4688, 4
      %v4691 = vshll.u32 %v4607, 16
      %v4693 = vrot.slane %v4691, 5
      %v4694 = vsel %vm827, %v4689, %v4693
      %v4696 = vshrl.u32 %v4608, 16
      %v4698 = vrot.slane %v4696, 4
      %v4699 = vshll.u32 %v4608, 16
      %v4701 = vrot.slane %v4699, 5
      %v4702 = vor.u32 %v4698, %v4701
      %v4703 = vrot.slane %v4702, 4
      %v4705 = vshll.u32 %v4609, 16
      %v4707 = vrot.slane %v4705, 5
      %v4708 = vsel %vm827, %v4703, %v4707
      %v4709 = vshrl.u32 %v4609, 16
      %v4711 = vrot.slane %v4709, 4
      %v4712 = vor.u32 %v4711, %v4707
      %v4713 = vrot.slane %v4712, 4
      %v4715 = vshll.u32 %v4610, 16
      %v4717 = vrot.slane %v4715, 5
      %v4718 = vsel %vm827, %v4713, %v4717
      %v4720 = vshrl.u32 %v4611, 16
      %v4722 = vrot.slane %v4720, 4
      %v4723 = vshll.u32 %v4611, 16
      %v4725 = vrot.slane %v4723, 5
      %v4726 = vor.u32 %v4722, %v4725
      %v4727 = vrot.slane %v4726, 4
      %v4729 = vshll.u32 %v4612, 16
      %v4731 = vrot.slane %v4729, 5
      %v4732 = vsel %vm827, %v4727, %v4731
      %v4733 = vshrl.u32 %v4612, 16
      %v4735 = vrot.slane %v4733, 4
      %v4736 = vor.u32 %v4735, %v4731
      %v4737 = vrot.slane %v4736, 4
      %v4739 = vshll.u32 %v4613, 16
      %v4741 = vrot.slane %v4739, 5
      %v4742 = vsel %vm827, %v4737, %v4741
      %v4744 = vshrl.u32 %v4614, 16
      %v4746 = vrot.slane %v4744, 4
      %v4747 = vshll.u32 %v4614, 16
      %v4749 = vrot.slane %v4747, 5
      %v4750 = vor.u32 %v4746, %v4749
      %v4751 = vrot.slane %v4750, 4
      %v4753 = vshll.u32 %v4615, 16
      %v4755 = vrot.slane %v4753, 5
      %v4756 = vsel %vm827, %v4751, %v4755
      %v4757 = vshrl.u32 %v4615, 16
      %v4759 = vrot.slane %v4757, 4
      %v4760 = vor.u32 %v4759, %v4755
      %v4761 = vrot.slane %v4760, 4
      %v4763 = vshll.u32 %v4616, 16
      %v4765 = vrot.slane %v4763, 5
      %v4766 = vsel %vm827, %v4761, %v4765
      %v4768 = vshrl.u32 %v4617, 16
      %v4770 = vrot.slane %v4768, 4
      %v4771 = vshll.u32 %v4617, 16
      %v4773 = vrot.slane %v4771, 5
      %v4774 = vor.u32 %v4770, %v4773
      %v4775 = vrot.slane %v4774, 4
      %v4777 = vshll.u32 %v4618, 16
      %v4779 = vrot.slane %v4777, 5
      %v4780 = vsel %vm827, %v4775, %v4779
      %v4781 = vshrl.u32 %v4618, 16
      %v4783 = vrot.slane %v4781, 4
      %v4784 = vor.u32 %v4783, %v4779
      %v4785 = vrot.slane %v4784, 4
      %v4787 = vshll.u32 %v4619, 16
      %v4789 = vrot.slane %v4787, 5
      %v4790 = vsel %vm827, %v4785, %v4789
      %v4792 = vshrl.u32 %v4620, 16
      %v4794 = vrot.slane %v4792, 4
      %v4795 = vshll.u32 %v4620, 16
      %v4797 = vrot.slane %v4795, 5
      %v4798 = vor.u32 %v4794, %v4797
      %v4799 = vrot.slane %v4798, 4
      %v4801 = vshll.u32 %v4621, 16
      %v4803 = vrot.slane %v4801, 5
      %v4804 = vsel %vm827, %v4799, %v4803
      %v4805 = vshrl.u32 %v4621, 16
      %v4807 = vrot.slane %v4805, 4
      %v4808 = vor.u32 %v4807, %v4803
      %v4809 = vrot.slane %v4808, 4
      %v4811 = vshll.u32 %v4622, 16
      %v4813 = vrot.slane %v4811, 5
      %v4814 = vsel %vm827, %v4809, %v4813
      %4815 = vrot.lane.b32.xlu0 %v4636, 56
      %v4816 = vpop.permute.xlu0 %4815
      %4817 = vrot.lane.b32.xlu0 %v4646, 56
      %v4818 = vpop.permute.xlu0 %4817
      %4819 = vrot.lane.b32.xlu0 %v4660, 56
      %v4820 = vpop.permute.xlu0 %4819
      %4821 = vrot.lane.b32.xlu0 %v4670, 56
      %v4822 = vpop.permute.xlu0 %4821
      %4823 = vrot.lane.b32.xlu0 %v4684, 56
      %v4824 = vpop.permute.xlu0 %4823
      %4825 = vrot.lane.b32.xlu0 %v4694, 56
      %v4826 = vpop.permute.xlu0 %4825
      %4827 = vrot.lane.b32.xlu0 %v4708, 56
      %v4828 = vpop.permute.xlu0 %4827
      %4829 = vrot.lane.b32.xlu0 %v4718, 56
      %v4830 = vpop.permute.xlu0 %4829
      %4831 = vrot.lane.b32.xlu0 %v4732, 56
      %v4832 = vpop.permute.xlu0 %4831
      %4833 = vrot.lane.b32.xlu0 %v4742, 56
      %v4834 = vpop.permute.xlu0 %4833
      %4835 = vrot.lane.b32.xlu0 %v4756, 56
      %v4836 = vpop.permute.xlu0 %4835
      %4837 = vrot.lane.b32.xlu0 %v4766, 56
      %v4838 = vpop.permute.xlu0 %4837
      %4839 = vrot.lane.b32.xlu0 %v4780, 56
      %v4840 = vpop.permute.xlu0 %4839
      %4841 = vrot.lane.b32.xlu0 %v4790, 56
      %v4842 = vpop.permute.xlu0 %4841
      %4843 = vrot.lane.b32.xlu0 %v4804, 56
      %v4844 = vpop.permute.xlu0 %4843
      %4845 = vrot.lane.b32.xlu0 %v4814, 56
      %v4846 = vpop.permute.xlu0 %4845
      %vm4863 = vcmask 519616
      %4864 = vst.msk [vmem:[#allocation5] sm:$0xf] %vm4863, %v4816
      %4865 = vst.msk [vmem:[#allocation5 + $0x4] sm:$0xf] %vm4863, %v4818
      %4866 = vst.msk [vmem:[#allocation5 + $0x8] sm:$0xf] %vm4863, %v4820
      %4867 = vst.msk [vmem:[#allocation5 + $0xc] sm:$0xf] %vm4863, %v4822
      %4868 = vst.msk [vmem:[#allocation5 + $0x10] sm:$0xf] %vm4863, %v4824
      %4869 = vst.msk [vmem:[#allocation5 + $0x14] sm:$0xf] %vm4863, %v4826
      %4870 = vst.msk [vmem:[#allocation5 + $0x18] sm:$0xf] %vm4863, %v4828
      %4871 = vst.msk [vmem:[#allocation5 + $0x1c] sm:$0xf] %vm4863, %v4830
      %4872 = vst.msk [vmem:[#allocation5 + $0x20] sm:$0xf] %vm4863, %v4832
      %4873 = vst.msk [vmem:[#allocation5 + $0x24] sm:$0xf] %vm4863, %v4834
      %4874 = vst.msk [vmem:[#allocation5 + $0x28] sm:$0xf] %vm4863, %v4836
      %4875 = vst.msk [vmem:[#allocation5 + $0x2c] sm:$0xf] %vm4863, %v4838
      %4876 = vst.msk [vmem:[#allocation5 + $0x30] sm:$0xf] %vm4863, %v4840
      %4877 = vst.msk [vmem:[#allocation5 + $0x34] sm:$0xf] %vm4863, %v4842
      %4878 = vst.msk [vmem:[#allocation5 + $0x38] sm:$0xf] %vm4863, %v4844
      %4879 = vst.msk [vmem:[#allocation5 + $0x3c] sm:$0xf] %vm4863, %v4846
      %v4880 = vld [vmem:[%s4501] sm:$0xe]
      %v4881 = vld [vmem:[%s4501 + $0x4] sm:$0xf]
      %v4882 = vld [vmem:[%s4501 + $0x8] sm:$0x1]
      %v4883 = vld [vmem:[%s4501 + $0xc] sm:$0xe]
      %v4884 = vld [vmem:[%s4501 + $0x10] sm:$0xf]
      %v4885 = vld [vmem:[%s4501 + $0x14] sm:$0x1]
      %v4886 = vld [vmem:[%s4501 + $0x18] sm:$0xe]
      %v4887 = vld [vmem:[%s4501 + $0x1c] sm:$0xf]
      %v4888 = vld [vmem:[%s4501 + $0x20] sm:$0x1]
      %v4889 = vld [vmem:[%s4501 + $0x24] sm:$0xe]
      %v4890 = vld [vmem:[%s4501 + $0x28] sm:$0xf]
      %v4891 = vld [vmem:[%s4501 + $0x2c] sm:$0x1]
      %v4892 = vld [vmem:[%s4501 + $0x30] sm:$0xe]
      %v4893 = vld [vmem:[%s4501 + $0x34] sm:$0xf]
      %v4894 = vld [vmem:[%s4501 + $0x38] sm:$0x1]
      %v4895 = vld [vmem:[%s4501 + $0x3c] sm:$0xe]
      %v4896 = vld [vmem:[%s4501 + $0x40] sm:$0xf]
      %v4897 = vld [vmem:[%s4501 + $0x44] sm:$0x1]
      %v4898 = vld [vmem:[%s4501 + $0x48] sm:$0xe]
      %v4899 = vld [vmem:[%s4501 + $0x4c] sm:$0xf]
      %v4900 = vld [vmem:[%s4501 + $0x50] sm:$0x1]
      %v4901 = vld [vmem:[%s4501 + $0x54] sm:$0xe]
      %v4902 = vld [vmem:[%s4501 + $0x58] sm:$0xf]
      %v4903 = vld [vmem:[%s4501 + $0x5c] sm:$0x1]
      %v4928 = vrot.slane %v4880, 5
      %v4929 = vrot.slane %v4928, 4
      %v4930 = vrot.slane %v4881, 5
      %v4931 = vsel %vm1211, %v4929, %v4930
      %v4932 = vrot.slane %v4930, 4
      %v4933 = vrot.slane %v4882, 5
      %v4934 = vsel %vm1211, %v4932, %v4933
      %v4935 = vrot.slane %v4883, 5
      %v4936 = vrot.slane %v4935, 4
      %v4937 = vrot.slane %v4884, 5
      %v4938 = vsel %vm1211, %v4936, %v4937
      %v4939 = vrot.slane %v4937, 4
      %v4940 = vrot.slane %v4885, 5
      %v4941 = vsel %vm1211, %v4939, %v4940
      %v4942 = vrot.slane %v4886, 5
      %v4943 = vrot.slane %v4942, 4
      %v4944 = vrot.slane %v4887, 5
      %v4945 = vsel %vm1211, %v4943, %v4944
      %v4946 = vrot.slane %v4944, 4
      %v4947 = vrot.slane %v4888, 5
      %v4948 = vsel %vm1211, %v4946, %v4947
      %v4949 = vrot.slane %v4889, 5
      %v4950 = vrot.slane %v4949, 4
      %v4951 = vrot.slane %v4890, 5
      %v4952 = vsel %vm1211, %v4950, %v4951
      %v4953 = vrot.slane %v4951, 4
      %v4954 = vrot.slane %v4891, 5
      %v4955 = vsel %vm1211, %v4953, %v4954
      %v4956 = vrot.slane %v4892, 5
      %v4957 = vrot.slane %v4956, 4
      %v4958 = vrot.slane %v4893, 5
      %v4959 = vsel %vm1211, %v4957, %v4958
      %v4960 = vrot.slane %v4958, 4
      %v4961 = vrot.slane %v4894, 5
      %v4962 = vsel %vm1211, %v4960, %v4961
      %v4963 = vrot.slane %v4895, 5
      %v4964 = vrot.slane %v4963, 4
      %v4965 = vrot.slane %v4896, 5
      %v4966 = vsel %vm1211, %v4964, %v4965
      %v4967 = vrot.slane %v4965, 4
      %v4968 = vrot.slane %v4897, 5
      %v4969 = vsel %vm1211, %v4967, %v4968
      %v4970 = vrot.slane %v4898, 5
      %v4971 = vrot.slane %v4970, 4
      %v4972 = vrot.slane %v4899, 5
      %v4973 = vsel %vm1211, %v4971, %v4972
      %v4974 = vrot.slane %v4972, 4
      %v4975 = vrot.slane %v4900, 5
      %v4976 = vsel %vm1211, %v4974, %v4975
      %v4977 = vrot.slane %v4901, 5
      %v4978 = vrot.slane %v4977, 4
      %v4979 = vrot.slane %v4902, 5
      %v4980 = vsel %vm1211, %v4978, %v4979
      %v4981 = vrot.slane %v4979, 4
      %v4982 = vrot.slane %v4903, 5
      %v4983 = vsel %vm1211, %v4981, %v4982
      %4984 = vrot.lane.b32.xlu0 %v4931, 64
      %v4985 = vpop.permute.xlu0 %4984
      %4986 = vrot.lane.b32.xlu0 %v4934, 64
      %v4987 = vpop.permute.xlu0 %4986
      %4988 = vrot.lane.b32.xlu0 %v4938, 64
      %v4989 = vpop.permute.xlu0 %4988
      %4990 = vrot.lane.b32.xlu0 %v4941, 64
      %v4991 = vpop.permute.xlu0 %4990
      %4992 = vrot.lane.b32.xlu0 %v4945, 64
      %v4993 = vpop.permute.xlu0 %4992
      %4994 = vrot.lane.b32.xlu0 %v4948, 64
      %v4995 = vpop.permute.xlu0 %4994
      %4996 = vrot.lane.b32.xlu0 %v4952, 64
      %v4997 = vpop.permute.xlu0 %4996
      %4998 = vrot.lane.b32.xlu0 %v4955, 64
      %v4999 = vpop.permute.xlu0 %4998
      %5000 = vrot.lane.b32.xlu0 %v4959, 64
      %v5001 = vpop.permute.xlu0 %5000
      %5002 = vrot.lane.b32.xlu0 %v4962, 64
      %v5003 = vpop.permute.xlu0 %5002
      %5004 = vrot.lane.b32.xlu0 %v4966, 64
      %v5005 = vpop.permute.xlu0 %5004
      %5006 = vrot.lane.b32.xlu0 %v4969, 64
      %v5007 = vpop.permute.xlu0 %5006
      %5008 = vrot.lane.b32.xlu0 %v4973, 64
      %v5009 = vpop.permute.xlu0 %5008
      %5010 = vrot.lane.b32.xlu0 %v4976, 64
      %v5011 = vpop.permute.xlu0 %5010
      %5012 = vrot.lane.b32.xlu0 %v4980, 64
      %v5013 = vpop.permute.xlu0 %5012
      %5014 = vrot.lane.b32.xlu0 %v4983, 64
      %v5015 = vpop.permute.xlu0 %5014
      %vm5032 = vcmask 585216
      %5033 = vst.msk [vmem:[#allocation5] sm:$0xf] %vm5032, %v4985
      %5034 = vst.msk [vmem:[#allocation5 + $0x4] sm:$0xf] %vm5032, %v4987
      %5035 = vst.msk [vmem:[#allocation5 + $0x8] sm:$0xf] %vm5032, %v4989
      %5036 = vst.msk [vmem:[#allocation5 + $0xc] sm:$0xf] %vm5032, %v4991
      %5037 = vst.msk [vmem:[#allocation5 + $0x10] sm:$0xf] %vm5032, %v4993
      %5038 = vst.msk [vmem:[#allocation5 + $0x14] sm:$0xf] %vm5032, %v4995
      %5039 = vst.msk [vmem:[#allocation5 + $0x18] sm:$0xf] %vm5032, %v4997
      %5040 = vst.msk [vmem:[#allocation5 + $0x1c] sm:$0xf] %vm5032, %v4999
      %5041 = vst.msk [vmem:[#allocation5 + $0x20] sm:$0xf] %vm5032, %v5001
      %5042 = vst.msk [vmem:[#allocation5 + $0x24] sm:$0xf] %vm5032, %v5003
      %5043 = vst.msk [vmem:[#allocation5 + $0x28] sm:$0xf] %vm5032, %v5005
      %5044 = vst.msk [vmem:[#allocation5 + $0x2c] sm:$0xf] %vm5032, %v5007
      %5045 = vst.msk [vmem:[#allocation5 + $0x30] sm:$0xf] %vm5032, %v5009
      %5046 = vst.msk [vmem:[#allocation5 + $0x34] sm:$0xf] %vm5032, %v5011
      %5047 = vst.msk [vmem:[#allocation5 + $0x38] sm:$0xf] %vm5032, %v5013
      %5048 = vst.msk [vmem:[#allocation5 + $0x3c] sm:$0xf] %vm5032, %v5015
      %v5049 = vld [vmem:[#allocation5] sm:$0xf]
      %v5050 = vld [vmem:[#allocation5 + $0x4] sm:$0xf]
      %v5051 = vld [vmem:[#allocation5 + $0x8] sm:$0xf]
      %v5052 = vld [vmem:[#allocation5 + $0xc] sm:$0xf]
      %v5053 = vld [vmem:[#allocation5 + $0x10] sm:$0xf]
      %v5054 = vld [vmem:[#allocation5 + $0x14] sm:$0xf]
      %v5055 = vld [vmem:[#allocation5 + $0x18] sm:$0xf]
      %v5056 = vld [vmem:[#allocation5 + $0x1c] sm:$0xf]
      %v5057 = vld [vmem:[#allocation5 + $0x20] sm:$0xf]
      %v5058 = vld [vmem:[#allocation5 + $0x24] sm:$0xf]
      %v5059 = vld [vmem:[#allocation5 + $0x28] sm:$0xf]
      %v5060 = vld [vmem:[#allocation5 + $0x2c] sm:$0xf]
      %v5061 = vld [vmem:[#allocation5 + $0x30] sm:$0xf]
      %v5062 = vld [vmem:[#allocation5 + $0x34] sm:$0xf]
      %v5063 = vld [vmem:[#allocation5 + $0x38] sm:$0xf]
      %v5064 = vld [vmem:[#allocation5 + $0x3c] sm:$0xf]
      %v5065 = vld [vmem:[%s3] sm:$0xf]
      %v5066 = vld [vmem:[%s3 + $0x4] sm:$0xf]
      %v5067 = vld [vmem:[%s3 + $0x8] sm:$0xf]
      %v5068 = vld [vmem:[%s3 + $0xc] sm:$0xf]
      %v5069 = vld [vmem:[%s3 + $0x10] sm:$0xf]
      %v5070 = vld [vmem:[%s3 + $0x14] sm:$0xf]
      %v5071 = vld [vmem:[%s3 + $0x18] sm:$0xf]
      %v5072 = vld [vmem:[%s3 + $0x1c] sm:$0xf]
      %v5073 = vld [vmem:[%s3 + $0x20] sm:$0xf]
      %v5074 = vld [vmem:[%s4] sm:$0x1]
      %v5076 = vlaneseq
      %v5077 = vshrl.u32 %v5076, 7
      %v5078 = vsub.s32 0, %v5077
      %v5079 = vrot.slane %v5074, %v5078
      %v5097 = vunpack.c.l.b16 %v5049
      %v5098 = vunpack.c.l.b16 %v5050
      %v5099 = vunpack.c.l.b16 %v5051
      %v5100 = vunpack.c.l.b16 %v5052
      %v5101 = vunpack.c.l.b16 %v5053
      %v5102 = vunpack.c.l.b16 %v5054
      %v5103 = vunpack.c.l.b16 %v5055
      %v5104 = vunpack.c.l.b16 %v5056
      %v5105 = vunpack.c.l.b16 %v5057
      %v5106 = vunpack.c.l.b16 %v5058
      %v5107 = vunpack.c.l.b16 %v5059
      %v5108 = vunpack.c.l.b16 %v5060
      %v5109 = vunpack.c.l.b16 %v5061
      %v5110 = vunpack.c.l.b16 %v5062
      %v5111 = vunpack.c.l.b16 %v5063
      %v5112 = vunpack.c.l.b16 %v5064
      %v5113 = vpack.c.b16 %v5098, %v5097
      %v5114 = vpack.c.b16 %v5100, %v5099
      %v5115 = vpack.c.b16 %v5102, %v5101
      %v5116 = vpack.c.b16 %v5104, %v5103
      %v5117 = vpack.c.b16 %v5106, %v5105
      %v5118 = vpack.c.b16 %v5108, %v5107
      %v5119 = vpack.c.b16 %v5110, %v5109
      %v5120 = vpack.c.b16 %v5112, %v5111
      %v5130 = vunpack.c.l.b16 %v5065
      %v5131 = vunpack.c.l.b16 %v5066
      %v5132 = vunpack.c.l.b16 %v5067
      %v5133 = vunpack.c.l.b16 %v5068
      %v5134 = vunpack.c.l.b16 %v5069
      %v5135 = vunpack.c.l.b16 %v5070
      %v5136 = vunpack.c.l.b16 %v5071
      %v5137 = vunpack.c.l.b16 %v5072
      %v5138 = vunpack.c.l.b16 %v5073
      %v5139 = vpack.c.b16 %v5131, %v5130
      %v5140 = vpack.c.b16 %v5133, %v5132
      %v5141 = vpack.c.b16 %v5135, %v5134
      %v5142 = vpack.c.b16 %v5137, %v5136
      %v5143 = vpack.c.b16 %v5138, %v5138
      %vm5148 = vcmask 588800
      %v5150 = vsel %vm5148, %v5113, 0
      %v5153 = vsel %vm5148, %v5114, 0
      %v5156 = vsel %vm5148, %v5115, 0
      %v5159 = vsel %vm5148, %v5116, 0
      %v5162 = vsel %vm5148, %v5117, 0
      %v5165 = vsel %vm5148, %v5118, 0
      %v5168 = vsel %vm5148, %v5119, 0
      %v5171 = vsel %vm5148, %v5120, 0
      %vm5173 = vcmask 1043456
      %v5175 = vsel %vm5173, %v5143, 0
      %5177 = vmatprep.subr.bf16.mxu0 0
      %5178 = vmatpush1.bf16.msra.mxu0 0
      %5179 = vmatprep.subr.bf16.mxu0 0
      %5180 = vmatpush1.bf16.msra.mxu0 0
      %5181 = vmatprep.subr.bf16.mxu0 0
      %5182 = vmatpush1.bf16.msra.mxu0 0
      %5183 = vmatprep.subr.bf16.mxu0 0
      %5184 = vmatpush1.bf16.msra.mxu0 %v5175
      %5185 = vmatprep.subr.bf16.mxu0 0
      %5186 = vmatpush1.bf16.msra.mxu0 %v5142
      %5187 = vmatprep.subr.bf16.mxu0 0
      %5188 = vmatpush1.bf16.msra.mxu0 %v5141
      %5189 = vmatprep.subr.bf16.mxu0 0
      %5190 = vmatpush1.bf16.msra.mxu0 %v5140
      %5191 = vmatprep.subr.bf16.mxu0 0
      %5192 = vmatpush1.bf16.msra.mxu0 %v5139
      %5193 = vmatprep.subr.bf16.mxu0 0
      %5194 = vmatpush2.bf16.msra.mxu0 0
      %5195 = vmatprep.subr.bf16.mxu0 0
      %5196 = vmatpush2.bf16.msra.mxu0 0
      %5197 = vmatprep.subr.bf16.mxu0 0
      %5198 = vmatpush2.bf16.msra.mxu0 0
      %5199 = vmatprep.subr.bf16.mxu0 0
      %5200 = vmatpush2.bf16.msra.mxu0 0
      %5201 = vmatprep.subr.bf16.mxu0 0
      %5202 = vmatpush2.bf16.msra.mxu0 0
      %5203 = vmatprep.subr.bf16.mxu0 0
      %5204 = vmatpush2.bf16.msra.mxu0 0
      %5205 = vmatprep.subr.bf16.mxu0 0
      %5206 = vmatpush2.bf16.msra.mxu0 0
      %5207 = vmatprep.subr.bf16.mxu0 0
      %5208 = vmatpush2.bf16.msra.mxu0 0
      %5209 = vmatprep.mubr.bf16.mxu0 0
      %5210 = vmatmul.mubr.bf16.gmra.mxu0 %v5150
      %v5211 = vpop.f32.mrf.mxu0
      %v5212 = vadd.f32 %v5079, %v5211
      %v5213 = vpop.f32.mrf.mxu0
      %v5214 = vpop.f32.mrf.mxu0
      %v5215 = vadd.f32 %v5079, %v5214
      %v5216 = vpop.f32.mrf.mxu0
      %5217 = vmatprep.mubr.bf16.mxu0 0
      %5218 = vmatmul.mubr.bf16.gmra.mxu0 %v5153
      %v5219 = vpop.f32.mrf.mxu0
      %v5220 = vadd.f32 %v5079, %v5219
      %v5221 = vpop.f32.mrf.mxu0
      %v5222 = vpop.f32.mrf.mxu0
      %v5223 = vadd.f32 %v5079, %v5222
      %v5224 = vpop.f32.mrf.mxu0
      %5225 = vmatprep.mubr.bf16.mxu0 0
      %5226 = vmatmul.mubr.bf16.gmra.mxu0 %v5156
      %v5227 = vpop.f32.mrf.mxu0
      %v5228 = vadd.f32 %v5079, %v5227
      %v5229 = vpop.f32.mrf.mxu0
      %v5230 = vpop.f32.mrf.mxu0
      %v5231 = vadd.f32 %v5079, %v5230
      %v5232 = vpop.f32.mrf.mxu0
      %5233 = vmatprep.mubr.bf16.mxu0 0
      %5234 = vmatmul.mubr.bf16.gmra.mxu0 %v5159
      %v5235 = vpop.f32.mrf.mxu0
      %v5236 = vadd.f32 %v5079, %v5235
      %v5237 = vpop.f32.mrf.mxu0
      %v5238 = vpop.f32.mrf.mxu0
      %v5239 = vadd.f32 %v5079, %v5238
      %v5240 = vpop.f32.mrf.mxu0
      %5241 = vmatprep.mubr.bf16.mxu0 0
      %5242 = vmatmul.mubr.bf16.gmra.mxu0 %v5162
      %v5243 = vpop.f32.mrf.mxu0
      %v5244 = vadd.f32 %v5079, %v5243
      %v5245 = vpop.f32.mrf.mxu0
      %v5246 = vpop.f32.mrf.mxu0
      %v5247 = vadd.f32 %v5079, %v5246
      %v5248 = vpop.f32.mrf.mxu0
      %5249 = vmatprep.mubr.bf16.mxu0 0
      %5250 = vmatmul.mubr.bf16.gmra.mxu0 %v5165
      %v5251 = vpop.f32.mrf.mxu0
      %v5252 = vadd.f32 %v5079, %v5251
      %v5253 = vpop.f32.mrf.mxu0
      %v5254 = vpop.f32.mrf.mxu0
      %v5255 = vadd.f32 %v5079, %v5254
      %v5256 = vpop.f32.mrf.mxu0
      %5257 = vmatprep.mubr.bf16.mxu0 0
      %5258 = vmatmul.mubr.bf16.gmra.mxu0 %v5168
      %v5259 = vpop.f32.mrf.mxu0
      %v5260 = vadd.f32 %v5079, %v5259
      %v5261 = vpop.f32.mrf.mxu0
      %v5262 = vpop.f32.mrf.mxu0
      %v5263 = vadd.f32 %v5079, %v5262
      %v5264 = vpop.f32.mrf.mxu0
      %5265 = vmatprep.mubr.bf16.mxu0 0
      %5266 = vmatmul.mubr.bf16.gmra.mxu0 %v5171
      %v5267 = vpop.f32.mrf.mxu0
      %v5268 = vadd.f32 %v5079, %v5267
      %v5269 = vpop.f32.mrf.mxu0
      %v5270 = vpop.f32.mrf.mxu0
      %v5271 = vadd.f32 %v5079, %v5270
      %v5272 = vpop.f32.mrf.mxu0
      %5273 = vdwg.mxu0
      %v5274 = vmax.f32 %v5212, 0.0
      %v5275 = vmax.f32 %v5215, 0.0
      %v5276 = vmax.f32 %v5220, 0.0
      %v5277 = vmax.f32 %v5223, 0.0
      %v5278 = vmax.f32 %v5228, 0.0
      %v5279 = vmax.f32 %v5231, 0.0
      %v5280 = vmax.f32 %v5236, 0.0
      %v5281 = vmax.f32 %v5239, 0.0
      %v5282 = vmax.f32 %v5244, 0.0
      %v5283 = vmax.f32 %v5247, 0.0
      %v5284 = vmax.f32 %v5252, 0.0
      %v5285 = vmax.f32 %v5255, 0.0
      %v5286 = vmax.f32 %v5260, 0.0
      %v5287 = vmax.f32 %v5263, 0.0
      %v5288 = vmax.f32 %v5268, 0.0
      %v5289 = vmax.f32 %v5271, 0.0
      %vm5290 = vcmask 64512
      %5291 = vst.msk [vmem:[%s246] sm:$0xff] %vm5290, %v5274
      %5292 = vst.msk [vmem:[%s246 + $0x8] sm:$0xff] %vm5290, %v5275
      %5293 = vst.msk [vmem:[%s246 + $0x10] sm:$0xff] %vm5290, %v5276
      %5294 = vst.msk [vmem:[%s246 + $0x18] sm:$0xff] %vm5290, %v5277
      %5295 = vst.msk [vmem:[%s246 + $0x20] sm:$0xff] %vm5290, %v5278
      %5296 = vst.msk [vmem:[%s246 + $0x28] sm:$0xff] %vm5290, %v5279
      %5297 = vst.msk [vmem:[%s246 + $0x30] sm:$0xff] %vm5290, %v5280
      %5298 = vst.msk [vmem:[%s246 + $0x38] sm:$0xff] %vm5290, %v5281
      %5299 = vst.msk [vmem:[%s246 + $0x40] sm:$0xff] %vm5290, %v5282
      %5300 = vst.msk [vmem:[%s246 + $0x48] sm:$0xff] %vm5290, %v5283
      %5301 = vst.msk [vmem:[%s246 + $0x50] sm:$0xff] %vm5290, %v5284
      %5302 = vst.msk [vmem:[%s246 + $0x58] sm:$0xff] %vm5290, %v5285
      %5303 = vst.msk [vmem:[%s246 + $0x60] sm:$0xff] %vm5290, %v5286
      %5304 = vst.msk [vmem:[%s246 + $0x68] sm:$0xff] %vm5290, %v5287
      %5305 = vst.msk [vmem:[%s246 + $0x70] sm:$0xff] %vm5290, %v5288
      %5306 = vst.msk [vmem:[%s246 + $0x78] sm:$0xff] %vm5290, %v5289
      %s5307 = smul.u32 16, %s21
      %p5308 = scmp.lt.s32.totalorder %s20, 1
      %s5309 = scalar_select %p5308, %s20, 1
      %p5310 = scmp.lt.s32.totalorder %s5307, 31
      %s5311 = scalar_select %p5310, %s5307, 31
      %s5312 = smul.addr %s5309, 32
      %s5313 = sadd.s32 %s5311, %s5312
      %s5314 = smul.addr %s5313, 8
      %s5315 = scalar_lea.vmem %s5, %s5314
      // Predicated region
      $region41: #{tpu_custom_call.1} parent=39 // pred_check
        %p5316 = pneg %p158
      $region42: #{tpu_custom_call.1} parent=39 // pred_check_branch
        %5318 = sbr.rel (%p5316) target = $region44
      $region43: #{tpu_custom_call.1} parent=39 // pred_region
        %s5319 = smul.u32 16, %s21
      $region44: #{tpu_custom_call.1} parent=39 // pred_fallthru
        _
    $region40: #{tpu_custom_call.1} parent=5 // pred_fallthru
      _
    %p5320 = scmp.le.s32.totalorder 2, %s11
    // Predicated region
    $region45: #{tpu_custom_call.1} parent=5 // pred_check
      %p5321 = pneg %p5320
    $region46: #{tpu_custom_call.1} parent=5 // pred_check_branch
      %5323 = sbr.rel (%p5321) target = $region48
    $region47: #{tpu_custom_call.1} parent=5 // pred_region
      %s5324 = ssub.s32 %s11, 2
      // Predicated region
      $region49: #{tpu_custom_call.1} parent=47 // pred_check
        %p5325 = pneg %p164
      $region50: #{tpu_custom_call.1} parent=47 // pred_check_branch
        %5327 = sbr.rel (%p5325) target = $region52
      $region51: #{tpu_custom_call.1} parent=47 // pred_region
        %s5328 = smul.u32 16, %s23
        %p5329 = scmp.lt.s32.totalorder %s22, 1
        %s5330 = scalar_select %p5329, %s22, 1
        %p5331 = scmp.lt.s32.totalorder %s5328, 31
        %s5332 = scalar_select %p5331, %s5328, 31
        %s5333 = smul.addr %s5330, 32
        %s5334 = sadd.s32 %s5332, %s5333
        %s5335 = smul.addr %s5334, 8
        %s5336 = scalar_lea.vmem %s5, %s5335
      $region52: #{tpu_custom_call.1} parent=47 // pred_fallthru
        _
    $region48: #{tpu_custom_call.1} parent=5 // pred_fallthru
      _
  $region6: #{tpu_custom_call.1} parent=0 // loop_footer
    %s15 = sadd.s32 1, %s11
  $region7: #{tpu_custom_call.1} parent=0 // loop_footer_branch
    %10 = sbr.rel target = $region3
  $region8: #{tpu_custom_call.1} parent=0 // loop_exit
    _

</llo_original>
